<compile_context>
chip_gen: v7x
topology: tpu7x:2x2x1
jax: 0.10.0
libtpu: 0.0.40
codegen_flags: <defaults>
</compile_context>

<pallas_src>
import jax
import jax.numpy as jnp
from jax import lax
from jax.experimental import pallas as pl
from jax.experimental.pallas import tpu as pltpu


def _conv1d_kernel(x_ref, w_ref, b_ref, o_ref, xs_ref):
    # x_ref:  (N, C, L)      VMEM  raw input, exactly as PyTorch sees it
    # w_ref:  (K, F_pad, C)  VMEM  per-tap weight tiles, w_ref[k, f, c] = w[f, c, k]
    # b_ref:  (F_pad, 1)     VMEM  bias column (zero-padded rows)
    # o_ref:  (F_pad, P)     VMEM  lane-dense output slab, o[f, n*L + l] = conv[n, f, l]
    # xs_ref: (C, W)         VMEM  scratch: batches concatenated along lanes, zero tail
    N, C, L = x_ref.shape
    K, F_pad, _ = w_ref.shape
    P = o_ref.shape[1]

    # In-kernel "im2col": lay the batches end-to-end, zero the padding tail so that
    # windows running off the end just accumulate zeros (those columns are discarded).
    xs_ref[...] = jnp.zeros_like(xs_ref)
    for n in range(N):                                   # N is tiny and static
        xs_ref[:, n * L:(n + 1) * L] = x_ref[n]

    # K statically-unrolled MXU dots: acc[f, p] += sum_c w[f, c, k] * slab[c, p + k].
    acc = jnp.zeros((F_pad, P), jnp.float32)
    for k in range(K):                                   # K is static -> fully unrolled
        acc = acc + jnp.dot(w_ref[k], xs_ref[:, k:k + P],
                            preferred_element_type=jnp.float32)

    # Single vectorized bias add + unmasked full-tile store.
    o_ref[...] = (acc + b_ref[...]).astype(o_ref.dtype)


def conv1d_pallas(x, w, b):
    """Valid, stride-1 Conv1d with PyTorch semantics (cross-correlation + bias).

    x: (N, C, L) f32; w: (F, C, K) f32; b: (F,) f32 -> (N, F, L_out)."""
    N, C, L = x.shape
    F, C_w, K = w.shape
    assert C == C_w and L >= K
    L_out = L - K + 1

    F_pad = 8 * pl.cdiv(F, 8)                    # full sublane tile for MXU output rows
    P = 128 * pl.cdiv(N * L, 128)                # lane-dense output slab width
    W = 128 * pl.cdiv(P + K - 1, 128)            # scratch width incl. last tap shift

    # Only wrapper-side prep: reshuffle the tiny weight/bias tensors (a few KiB).
    w_pad = jnp.pad(w, ((0, F_pad - F), (0, 0), (0, 0))).transpose(2, 0, 1)  # (K,F_pad,C)
    b_pad = jnp.pad(b, (0, F_pad - F)).reshape(F_pad, 1)                      # (F_pad,1)

    out2d = pl.pallas_call(
        _conv1d_kernel,
        out_shape=jax.ShapeDtypeStruct((F_pad, P), x.dtype),
        in_specs=[
            pl.BlockSpec(memory_space=pltpu.MemorySpace.VMEM),   # x (N, C, L), 32 KiB
            pl.BlockSpec(memory_space=pltpu.MemorySpace.VMEM),   # w_pad (K, F_pad, C)
            pl.BlockSpec(memory_space=pltpu.MemorySpace.VMEM),   # b_pad (F_pad, 1)
        ],
        out_specs=pl.BlockSpec(memory_space=pltpu.MemorySpace.VMEM),
        scratch_shapes=[pltpu.VMEM((C, W), x.dtype)],            # concatenated-seq slab
    )(x, w_pad, b_pad)

    # out2d[f, n*L + l] = conv(x)[n, f, l] for l < L_out; drop padded rows / columns.
    return out2d[:F, :N * L].reshape(F, N, L)[:, :, :L_out].transpose(1, 0, 2)


def conv1d_reference(x, w, b):
    # Plain-JAX reference (NCL / OIK conv), used only for a correctness check.
    out = lax.conv_general_dilated(
        x, w, window_strides=(1,), padding="VALID",
        dimension_numbers=("NCH", "OIH", "NCH"))
    return out + b.reshape(1, -1, 1)


if __name__ == "__main__":
    # Module defaults: integration_window (K) = 32, nb_filters (F) = 1, nb_channels (C) = 64.
    N, C, L = 2, 64, 64
    F, K = 1, 32

    key = jax.random.PRNGKey(0)
    kx, kw, kb = jax.random.split(key, 3)

    x = jax.random.normal(kx, (N, C, L), dtype=jnp.float32)
    # Deterministic init mimicking Conv1d's uniform(-1/sqrt(C*K), 1/sqrt(C*K)).
    bound = 1.0 / jnp.sqrt(jnp.float32(C * K))
    w = jax.random.uniform(kw, (F, C, K), jnp.float32, -bound, bound)
    b = jax.random.uniform(kb, (F,), jnp.float32, -bound, bound)

    out = jax.block_until_ready(conv1d_pallas(x, w, b))
    ref = jax.block_until_ready(conv1d_reference(x, w, b))

    assert out.shape == (N, F, L - K + 1), out.shape
    assert jnp.allclose(out, ref, atol=1e-4, rtol=1e-4), "mismatch vs reference"

    print("KERNEL_OK")
</pallas_src>

<mosaic_0001>
module attributes {stable_mosaic.version = 11 : i64} {
  func.func @_conv1d_kernel(%arg0: memref<2x64x64xf32, #tpu.memory_space<vmem>>, %arg1: memref<32x8x64xf32, #tpu.memory_space<vmem>>, %arg2: memref<8x1xf32, #tpu.memory_space<vmem>>, %arg3: memref<8x128xf32, #tpu.memory_space<vmem>>, %arg4: memref<64x256xf32, #tpu.memory_space<vmem>>) attributes {dimension_semantics = [], scalar_prefetch = 0 : i64, scratch_operands = 1 : i64, tpu.core_type = #tpu.core_type<tc>} {
    %cst = arith.constant 0.000000e+00 : f32
    %0 = vector.broadcast %cst : f32 to vector<64x256xf32>
    %c0 = arith.constant 0 : index
    %c0_0 = arith.constant 0 : index
    %1 = vector.load %arg4[%c0, %c0_0] : memref<64x256xf32, #tpu.memory_space<vmem>>, vector<64x256xf32>
    tpu.vector_store %arg4[%c0, %c0_0], %0 {strides = array<i32>} : memref<64x256xf32, #tpu.memory_space<vmem>>, vector<64x256xf32>,
    %c0_1 = arith.constant 0 : index
    %c0_2 = arith.constant 0 : index
    %c0_3 = arith.constant 0 : index
    %2 = vector.load %arg0[%c0_1, %c0_2, %c0_3] : memref<2x64x64xf32, #tpu.memory_space<vmem>>, vector<1x64x64xf32>
    %3 = vector.shape_cast %2 : vector<1x64x64xf32> to vector<64x64xf32>
    %c0_4 = arith.constant 0 : index
    %c0_5 = arith.constant 0 : index
    %4 = vector.load %arg4[%c0_4, %c0_5] : memref<64x256xf32, #tpu.memory_space<vmem>>, vector<64x64xf32>
    tpu.vector_store %arg4[%c0_4, %c0_5], %3 {strides = array<i32>} : memref<64x256xf32, #tpu.memory_space<vmem>>, vector<64x64xf32>,
    %c1 = arith.constant 1 : index
    %c0_6 = arith.constant 0 : index
    %c0_7 = arith.constant 0 : index
    %5 = vector.load %arg0[%c1, %c0_6, %c0_7] : memref<2x64x64xf32, #tpu.memory_space<vmem>>, vector<1x64x64xf32>
    %6 = vector.shape_cast %5 : vector<1x64x64xf32> to vector<64x64xf32>
    %c0_8 = arith.constant 0 : index
    %c64 = arith.constant 64 : index
    %7 = vector.load %arg4[%c0_8, %c64] : memref<64x256xf32, #tpu.memory_space<vmem>>, vector<64x64xf32>
    tpu.vector_store %arg4[%c0_8, %c64], %6 {strides = array<i32>} : memref<64x256xf32, #tpu.memory_space<vmem>>, vector<64x64xf32>,
    %cst_9 = arith.constant 0.000000e+00 : f32
    %8 = vector.broadcast %cst_9 : f32 to vector<8x128xf32>
    %c0_10 = arith.constant 0 : index
    %c0_11 = arith.constant 0 : index
    %c0_12 = arith.constant 0 : index
    %9 = vector.load %arg1[%c0_10, %c0_11, %c0_12] : memref<32x8x64xf32, #tpu.memory_space<vmem>>, vector<1x8x64xf32>
    %10 = vector.shape_cast %9 : vector<1x8x64xf32> to vector<8x64xf32>
    %c0_13 = arith.constant 0 : index
    %c0_14 = arith.constant 0 : index
    %11 = vector.load %arg4[%c0_13, %c0_14] : memref<64x256xf32, #tpu.memory_space<vmem>>, vector<64x128xf32>
    %cst_15 = arith.constant dense<0.000000e+00> : vector<8x128xf32>
    %12 = tpu.matmul %10, %11, %cst_15 {dimension_numbers = #tpu.dot_dimension_numbers<[1], [0], [0], [1], [0, 0, 1, 1], [], []>} : vector<8x64xf32>, vector<64x128xf32>, vector<8x128xf32> -> vector<8x128xf32>
    %13 = arith.addf %8, %12 : vector<8x128xf32>
    %c1_16 = arith.constant 1 : index
    %c0_17 = arith.constant 0 : index
    %c0_18 = arith.constant 0 : index
    %14 = vector.load %arg1[%c1_16, %c0_17, %c0_18] : memref<32x8x64xf32, #tpu.memory_space<vmem>>, vector<1x8x64xf32>
    %15 = vector.shape_cast %14 : vector<1x8x64xf32> to vector<8x64xf32>
    %c0_19 = arith.constant 0 : index
    %c1_20 = arith.constant 1 : index
    %16 = vector.load %arg4[%c0_19, %c1_20] : memref<64x256xf32, #tpu.memory_space<vmem>>, vector<64x128xf32>
    %cst_21 = arith.constant dense<0.000000e+00> : vector<8x128xf32>
    %17 = tpu.matmul %15, %16, %cst_21 {dimension_numbers = #tpu.dot_dimension_numbers<[1], [0], [0], [1], [0, 0, 1, 1], [], []>} : vector<8x64xf32>, vector<64x128xf32>, vector<8x128xf32> -> vector<8x128xf32>
    %18 = arith.addf %13, %17 : vector<8x128xf32>
    %c2 = arith.constant 2 : index
    %c0_22 = arith.constant 0 : index
    %c0_23 = arith.constant 0 : index
    %19 = vector.load %arg1[%c2, %c0_22, %c0_23] : memref<32x8x64xf32, #tpu.memory_space<vmem>>, vector<1x8x64xf32>
    %20 = vector.shape_cast %19 : vector<1x8x64xf32> to vector<8x64xf32>
    %c0_24 = arith.constant 0 : index
    %c2_25 = arith.constant 2 : index
    %21 = vector.load %arg4[%c0_24, %c2_25] : memref<64x256xf32, #tpu.memory_space<vmem>>, vector<64x128xf32>
    %cst_26 = arith.constant dense<0.000000e+00> : vector<8x128xf32>
    %22 = tpu.matmul %20, %21, %cst_26 {dimension_numbers = #tpu.dot_dimension_numbers<[1], [0], [0], [1], [0, 0, 1, 1], [], []>} : vector<8x64xf32>, vector<64x128xf32>, vector<8x128xf32> -> vector<8x128xf32>
    %23 = arith.addf %18, %22 : vector<8x128xf32>
    %c3 = arith.constant 3 : index
    %c0_27 = arith.constant 0 : index
    %c0_28 = arith.constant 0 : index
    %24 = vector.load %arg1[%c3, %c0_27, %c0_28] : memref<32x8x64xf32, #tpu.memory_space<vmem>>, vector<1x8x64xf32>
    %25 = vector.shape_cast %24 : vector<1x8x64xf32> to vector<8x64xf32>
    %c0_29 = arith.constant 0 : index
    %c3_30 = arith.constant 3 : index
    %26 = vector.load %arg4[%c0_29, %c3_30] : memref<64x256xf32, #tpu.memory_space<vmem>>, vector<64x128xf32>
    %cst_31 = arith.constant dense<0.000000e+00> : vector<8x128xf32>
    %27 = tpu.matmul %25, %26, %cst_31 {dimension_numbers = #tpu.dot_dimension_numbers<[1], [0], [0], [1], [0, 0, 1, 1], [], []>} : vector<8x64xf32>, vector<64x128xf32>, vector<8x128xf32> -> vector<8x128xf32>
    %28 = arith.addf %23, %27 : vector<8x128xf32>
    %c4 = arith.constant 4 : index
    %c0_32 = arith.constant 0 : index
    %c0_33 = arith.constant 0 : index
    %29 = vector.load %arg1[%c4, %c0_32, %c0_33] : memref<32x8x64xf32, #tpu.memory_space<vmem>>, vector<1x8x64xf32>
    %30 = vector.shape_cast %29 : vector<1x8x64xf32> to vector<8x64xf32>
    %c0_34 = arith.constant 0 : index
    %c4_35 = arith.constant 4 : index
    %31 = vector.load %arg4[%c0_34, %c4_35] : memref<64x256xf32, #tpu.memory_space<vmem>>, vector<64x128xf32>
    %cst_36 = arith.constant dense<0.000000e+00> : vector<8x128xf32>
    %32 = tpu.matmul %30, %31, %cst_36 {dimension_numbers = #tpu.dot_dimension_numbers<[1], [0], [0], [1], [0, 0, 1, 1], [], []>} : vector<8x64xf32>, vector<64x128xf32>, vector<8x128xf32> -> vector<8x128xf32>
    %33 = arith.addf %28, %32 : vector<8x128xf32>
    %c5 = arith.constant 5 : index
    %c0_37 = arith.constant 0 : index
    %c0_38 = arith.constant 0 : index
    %34 = vector.load %arg1[%c5, %c0_37, %c0_38] : memref<32x8x64xf32, #tpu.memory_space<vmem>>, vector<1x8x64xf32>
    %35 = vector.shape_cast %34 : vector<1x8x64xf32> to vector<8x64xf32>
    %c0_39 = arith.constant 0 : index
    %c5_40 = arith.constant 5 : index
    %36 = vector.load %arg4[%c0_39, %c5_40] : memref<64x256xf32, #tpu.memory_space<vmem>>, vector<64x128xf32>
    %cst_41 = arith.constant dense<0.000000e+00> : vector<8x128xf32>
    %37 = tpu.matmul %35, %36, %cst_41 {dimension_numbers = #tpu.dot_dimension_numbers<[1], [0], [0], [1], [0, 0, 1, 1], [], []>} : vector<8x64xf32>, vector<64x128xf32>, vector<8x128xf32> -> vector<8x128xf32>
    %38 = arith.addf %33, %37 : vector<8x128xf32>
    %c6 = arith.constant 6 : index
    %c0_42 = arith.constant 0 : index
    %c0_43 = arith.constant 0 : index
    %39 = vector.load %arg1[%c6, %c0_42, %c0_43] : memref<32x8x64xf32, #tpu.memory_space<vmem>>, vector<1x8x64xf32>
    %40 = vector.shape_cast %39 : vector<1x8x64xf32> to vector<8x64xf32>
    %c0_44 = arith.constant 0 : index
    %c6_45 = arith.constant 6 : index
    %41 = vector.load %arg4[%c0_44, %c6_45] : memref<64x256xf32, #tpu.memory_space<vmem>>, vector<64x128xf32>
    %cst_46 = arith.constant dense<0.000000e+00> : vector<8x128xf32>
    %42 = tpu.matmul %40, %41, %cst_46 {dimension_numbers = #tpu.dot_dimension_numbers<[1], [0], [0], [1], [0, 0, 1, 1], [], []>} : vector<8x64xf32>, vector<64x128xf32>, vector<8x128xf32> -> vector<8x128xf32>
    %43 = arith.addf %38, %42 : vector<8x128xf32>
    %c7 = arith.constant 7 : index
    %c0_47 = arith.constant 0 : index
    %c0_48 = arith.constant 0 : index
    %44 = vector.load %arg1[%c7, %c0_47, %c0_48] : memref<32x8x64xf32, #tpu.memory_space<vmem>>, vector<1x8x64xf32>
    %45 = vector.shape_cast %44 : vector<1x8x64xf32> to vector<8x64xf32>
    %c0_49 = arith.constant 0 : index
    %c7_50 = arith.constant 7 : index
    %46 = vector.load %arg4[%c0_49, %c7_50] : memref<64x256xf32, #tpu.memory_space<vmem>>, vector<64x128xf32>
    %cst_51 = arith.constant dense<0.000000e+00> : vector<8x128xf32>
    %47 = tpu.matmul %45, %46, %cst_51 {dimension_numbers = #tpu.dot_dimension_numbers<[1], [0], [0], [1], [0, 0, 1, 1], [], []>} : vector<8x64xf32>, vector<64x128xf32>, vector<8x128xf32> -> vector<8x128xf32>
    %48 = arith.addf %43, %47 : vector<8x128xf32>
    %c8 = arith.constant 8 : index
    %c0_52 = arith.constant 0 : index
    %c0_53 = arith.constant 0 : index
    %49 = vector.load %arg1[%c8, %c0_52, %c0_53] : memref<32x8x64xf32, #tpu.memory_space<vmem>>, vector<1x8x64xf32>
    %50 = vector.shape_cast %49 : vector<1x8x64xf32> to vector<8x64xf32>
    %c0_54 = arith.constant 0 : index
    %c8_55 = arith.constant 8 : index
    %51 = vector.load %arg4[%c0_54, %c8_55] : memref<64x256xf32, #tpu.memory_space<vmem>>, vector<64x128xf32>
    %cst_56 = arith.constant dense<0.000000e+00> : vector<8x128xf32>
    %52 = tpu.matmul %50, %51, %cst_56 {dimension_numbers = #tpu.dot_dimension_numbers<[1], [0], [0], [1], [0, 0, 1, 1], [], []>} : vector<8x64xf32>, vector<64x128xf32>, vector<8x128xf32> -> vector<8x128xf32>
    %53 = arith.addf %48, %52 : vector<8x128xf32>
    %c9 = arith.constant 9 : index
    %c0_57 = arith.constant 0 : index
    %c0_58 = arith.constant 0 : index
    %54 = vector.load %arg1[%c9, %c0_57, %c0_58] : memref<32x8x64xf32, #tpu.memory_space<vmem>>, vector<1x8x64xf32>
    %55 = vector.shape_cast %54 : vector<1x8x64xf32> to vector<8x64xf32>
    %c0_59 = arith.constant 0 : index
    %c9_60 = arith.constant 9 : index
    %56 = vector.load %arg4[%c0_59, %c9_60] : memref<64x256xf32, #tpu.memory_space<vmem>>, vector<64x128xf32>
    %cst_61 = arith.constant dense<0.000000e+00> : vector<8x128xf32>
    %57 = tpu.matmul %55, %56, %cst_61 {dimension_numbers = #tpu.dot_dimension_numbers<[1], [0], [0], [1], [0, 0, 1, 1], [], []>} : vector<8x64xf32>, vector<64x128xf32>, vector<8x128xf32> -> vector<8x128xf32>
    %58 = arith.addf %53, %57 : vector<8x128xf32>
    %c10 = arith.constant 10 : index
    %c0_62 = arith.constant 0 : index
    %c0_63 = arith.constant 0 : index
    %59 = vector.load %arg1[%c10, %c0_62, %c0_63] : memref<32x8x64xf32, #tpu.memory_space<vmem>>, vector<1x8x64xf32>
    %60 = vector.shape_cast %59 : vector<1x8x64xf32> to vector<8x64xf32>
    %c0_64 = arith.constant 0 : index
    %c10_65 = arith.constant 10 : index
    %61 = vector.load %arg4[%c0_64, %c10_65] : memref<64x256xf32, #tpu.memory_space<vmem>>, vector<64x128xf32>
    %cst_66 = arith.constant dense<0.000000e+00> : vector<8x128xf32>
    %62 = tpu.matmul %60, %61, %cst_66 {dimension_numbers = #tpu.dot_dimension_numbers<[1], [0], [0], [1], [0, 0, 1, 1], [], []>} : vector<8x64xf32>, vector<64x128xf32>, vector<8x128xf32> -> vector<8x128xf32>
    %63 = arith.addf %58, %62 : vector<8x128xf32>
    %c11 = arith.constant 11 : index
    %c0_67 = arith.constant 0 : index
    %c0_68 = arith.constant 0 : index
    %64 = vector.load %arg1[%c11, %c0_67, %c0_68] : memref<32x8x64xf32, #tpu.memory_space<vmem>>, vector<1x8x64xf32>
    %65 = vector.shape_cast %64 : vector<1x8x64xf32> to vector<8x64xf32>
    %c0_69 = arith.constant 0 : index
    %c11_70 = arith.constant 11 : index
    %66 = vector.load %arg4[%c0_69, %c11_70] : memref<64x256xf32, #tpu.memory_space<vmem>>, vector<64x128xf32>
    %cst_71 = arith.constant dense<0.000000e+00> : vector<8x128xf32>
    %67 = tpu.matmul %65, %66, %cst_71 {dimension_numbers = #tpu.dot_dimension_numbers<[1], [0], [0], [1], [0, 0, 1, 1], [], []>} : vector<8x64xf32>, vector<64x128xf32>, vector<8x128xf32> -> vector<8x128xf32>
    %68 = arith.addf %63, %67 : vector<8x128xf32>
    %c12 = arith.constant 12 : index
    %c0_72 = arith.constant 0 : index
    %c0_73 = arith.constant 0 : index
    %69 = vector.load %arg1[%c12, %c0_72, %c0_73] : memref<32x8x64xf32, #tpu.memory_space<vmem>>, vector<1x8x64xf32>
    %70 = vector.shape_cast %69 : vector<1x8x64xf32> to vector<8x64xf32>
    %c0_74 = arith.constant 0 : index
    %c12_75 = arith.constant 12 : index
    %71 = vector.load %arg4[%c0_74, %c12_75] : memref<64x256xf32, #tpu.memory_space<vmem>>, vector<64x128xf32>
    %cst_76 = arith.constant dense<0.000000e+00> : vector<8x128xf32>
    %72 = tpu.matmul %70, %71, %cst_76 {dimension_numbers = #tpu.dot_dimension_numbers<[1], [0], [0], [1], [0, 0, 1, 1], [], []>} : vector<8x64xf32>, vector<64x128xf32>, vector<8x128xf32> -> vector<8x128xf32>
    %73 = arith.addf %68, %72 : vector<8x128xf32>
    %c13 = arith.constant 13 : index
    %c0_77 = arith.constant 0 : index
    %c0_78 = arith.constant 0 : index
    %74 = vector.load %arg1[%c13, %c0_77, %c0_78] : memref<32x8x64xf32, #tpu.memory_space<vmem>>, vector<1x8x64xf32>
    %75 = vector.shape_cast %74 : vector<1x8x64xf32> to vector<8x64xf32>
    %c0_79 = arith.constant 0 : index
    %c13_80 = arith.constant 13 : index
    %76 = vector.load %arg4[%c0_79, %c13_80] : memref<64x256xf32, #tpu.memory_space<vmem>>, vector<64x128xf32>
    %cst_81 = arith.constant dense<0.000000e+00> : vector<8x128xf32>
    %77 = tpu.matmul %75, %76, %cst_81 {dimension_numbers = #tpu.dot_dimension_numbers<[1], [0], [0], [1], [0, 0, 1, 1], [], []>} : vector<8x64xf32>, vector<64x128xf32>, vector<8x128xf32> -> vector<8x128xf32>
    %78 = arith.addf %73, %77 : vector<8x128xf32>
    %c14 = arith.constant 14 : index
    %c0_82 = arith.constant 0 : index
    %c0_83 = arith.constant 0 : index
    %79 = vector.load %arg1[%c14, %c0_82, %c0_83] : memref<32x8x64xf32, #tpu.memory_space<vmem>>, vector<1x8x64xf32>
    %80 = vector.shape_cast %79 : vector<1x8x64xf32> to vector<8x64xf32>
    %c0_84 = arith.constant 0 : index
    %c14_85 = arith.constant 14 : index
    %81 = vector.load %arg4[%c0_84, %c14_85] : memref<64x256xf32, #tpu.memory_space<vmem>>, vector<64x128xf32>
    %cst_86 = arith.constant dense<0.000000e+00> : vector<8x128xf32>
    %82 = tpu.matmul %80, %81, %cst_86 {dimension_numbers = #tpu.dot_dimension_numbers<[1], [0], [0], [1], [0, 0, 1, 1], [], []>} : vector<8x64xf32>, vector<64x128xf32>, vector<8x128xf32> -> vector<8x128xf32>
    %83 = arith.addf %78, %82 : vector<8x128xf32>
    %c15 = arith.constant 15 : index
    %c0_87 = arith.constant 0 : index
    %c0_88 = arith.constant 0 : index
    %84 = vector.load %arg1[%c15, %c0_87, %c0_88] : memref<32x8x64xf32, #tpu.memory_space<vmem>>, vector<1x8x64xf32>
    %85 = vector.shape_cast %84 : vector<1x8x64xf32> to vector<8x64xf32>
    %c0_89 = arith.constant 0 : index
    %c15_90 = arith.constant 15 : index
    %86 = vector.load %arg4[%c0_89, %c15_90] : memref<64x256xf32, #tpu.memory_space<vmem>>, vector<64x128xf32>
    %cst_91 = arith.constant dense<0.000000e+00> : vector<8x128xf32>
    %87 = tpu.matmul %85, %86, %cst_91 {dimension_numbers = #tpu.dot_dimension_numbers<[1], [0], [0], [1], [0, 0, 1, 1], [], []>} : vector<8x64xf32>, vector<64x128xf32>, vector<8x128xf32> -> vector<8x128xf32>
    %88 = arith.addf %83, %87 : vector<8x128xf32>
    %c16 = arith.constant 16 : index
    %c0_92 = arith.constant 0 : index
    %c0_93 = arith.constant 0 : index
    %89 = vector.load %arg1[%c16, %c0_92, %c0_93] : memref<32x8x64xf32, #tpu.memory_space<vmem>>, vector<1x8x64xf32>
    %90 = vector.shape_cast %89 : vector<1x8x64xf32> to vector<8x64xf32>
    %c0_94 = arith.constant 0 : index
    %c16_95 = arith.constant 16 : index
    %91 = vector.load %arg4[%c0_94, %c16_95] : memref<64x256xf32, #tpu.memory_space<vmem>>, vector<64x128xf32>
    %cst_96 = arith.constant dense<0.000000e+00> : vector<8x128xf32>
    %92 = tpu.matmul %90, %91, %cst_96 {dimension_numbers = #tpu.dot_dimension_numbers<[1], [0], [0], [1], [0, 0, 1, 1], [], []>} : vector<8x64xf32>, vector<64x128xf32>, vector<8x128xf32> -> vector<8x128xf32>
    %93 = arith.addf %88, %92 : vector<8x128xf32>
    %c17 = arith.constant 17 : index
    %c0_97 = arith.constant 0 : index
    %c0_98 = arith.constant 0 : index
    %94 = vector.load %arg1[%c17, %c0_97, %c0_98] : memref<32x8x64xf32, #tpu.memory_space<vmem>>, vector<1x8x64xf32>
    %95 = vector.shape_cast %94 : vector<1x8x64xf32> to vector<8x64xf32>
    %c0_99 = arith.constant 0 : index
    %c17_100 = arith.constant 17 : index
    %96 = vector.load %arg4[%c0_99, %c17_100] : memref<64x256xf32, #tpu.memory_space<vmem>>, vector<64x128xf32>
    %cst_101 = arith.constant dense<0.000000e+00> : vector<8x128xf32>
    %97 = tpu.matmul %95, %96, %cst_101 {dimension_numbers = #tpu.dot_dimension_numbers<[1], [0], [0], [1], [0, 0, 1, 1], [], []>} : vector<8x64xf32>, vector<64x128xf32>, vector<8x128xf32> -> vector<8x128xf32>
    %98 = arith.addf %93, %97 : vector<8x128xf32>
    %c18 = arith.constant 18 : index
    %c0_102 = arith.constant 0 : index
    %c0_103 = arith.constant 0 : index
    %99 = vector.load %arg1[%c18, %c0_102, %c0_103] : memref<32x8x64xf32, #tpu.memory_space<vmem>>, vector<1x8x64xf32>
    %100 = vector.shape_cast %99 : vector<1x8x64xf32> to vector<8x64xf32>
    %c0_104 = arith.constant 0 : index
    %c18_105 = arith.constant 18 : index
    %101 = vector.load %arg4[%c0_104, %c18_105] : memref<64x256xf32, #tpu.memory_space<vmem>>, vector<64x128xf32>
    %cst_106 = arith.constant dense<0.000000e+00> : vector<8x128xf32>
    %102 = tpu.matmul %100, %101, %cst_106 {dimension_numbers = #tpu.dot_dimension_numbers<[1], [0], [0], [1], [0, 0, 1, 1], [], []>} : vector<8x64xf32>, vector<64x128xf32>, vector<8x128xf32> -> vector<8x128xf32>
    %103 = arith.addf %98, %102 : vector<8x128xf32>
    %c19 = arith.constant 19 : index
    %c0_107 = arith.constant 0 : index
    %c0_108 = arith.constant 0 : index
    %104 = vector.load %arg1[%c19, %c0_107, %c0_108] : memref<32x8x64xf32, #tpu.memory_space<vmem>>, vector<1x8x64xf32>
    %105 = vector.shape_cast %104 : vector<1x8x64xf32> to vector<8x64xf32>
    %c0_109 = arith.constant 0 : index
    %c19_110 = arith.constant 19 : index
    %106 = vector.load %arg4[%c0_109, %c19_110] : memref<64x256xf32, #tpu.memory_space<vmem>>, vector<64x128xf32>
    %cst_111 = arith.constant dense<0.000000e+00> : vector<8x128xf32>
    %107 = tpu.matmul %105, %106, %cst_111 {dimension_numbers = #tpu.dot_dimension_numbers<[1], [0], [0], [1], [0, 0, 1, 1], [], []>} : vector<8x64xf32>, vector<64x128xf32>, vector<8x128xf32> -> vector<8x128xf32>
    %108 = arith.addf %103, %107 : vector<8x128xf32>
    %c20 = arith.constant 20 : index
    %c0_112 = arith.constant 0 : index
    %c0_113 = arith.constant 0 : index
    %109 = vector.load %arg1[%c20, %c0_112, %c0_113] : memref<32x8x64xf32, #tpu.memory_space<vmem>>, vector<1x8x64xf32>
    %110 = vector.shape_cast %109 : vector<1x8x64xf32> to vector<8x64xf32>
    %c0_114 = arith.constant 0 : index
    %c20_115 = arith.constant 20 : index
    %111 = vector.load %arg4[%c0_114, %c20_115] : memref<64x256xf32, #tpu.memory_space<vmem>>, vector<64x128xf32>
    %cst_116 = arith.constant dense<0.000000e+00> : vector<8x128xf32>
    %112 = tpu.matmul %110, %111, %cst_116 {dimension_numbers = #tpu.dot_dimension_numbers<[1], [0], [0], [1], [0, 0, 1, 1], [], []>} : vector<8x64xf32>, vector<64x128xf32>, vector<8x128xf32> -> vector<8x128xf32>
    %113 = arith.addf %108, %112 : vector<8x128xf32>
    %c21 = arith.constant 21 : index
    %c0_117 = arith.constant 0 : index
    %c0_118 = arith.constant 0 : index
    %114 = vector.load %arg1[%c21, %c0_117, %c0_118] : memref<32x8x64xf32, #tpu.memory_space<vmem>>, vector<1x8x64xf32>
    %115 = vector.shape_cast %114 : vector<1x8x64xf32> to vector<8x64xf32>
    %c0_119 = arith.constant 0 : index
    %c21_120 = arith.constant 21 : index
    %116 = vector.load %arg4[%c0_119, %c21_120] : memref<64x256xf32, #tpu.memory_space<vmem>>, vector<64x128xf32>
    %cst_121 = arith.constant dense<0.000000e+00> : vector<8x128xf32>
    %117 = tpu.matmul %115, %116, %cst_121 {dimension_numbers = #tpu.dot_dimension_numbers<[1], [0], [0], [1], [0, 0, 1, 1], [], []>} : vector<8x64xf32>, vector<64x128xf32>, vector<8x128xf32> -> vector<8x128xf32>
    %118 = arith.addf %113, %117 : vector<8x128xf32>
    %c22 = arith.constant 22 : index
    %c0_122 = arith.constant 0 : index
    %c0_123 = arith.constant 0 : index
    %119 = vector.load %arg1[%c22, %c0_122, %c0_123] : memref<32x8x64xf32, #tpu.memory_space<vmem>>, vector<1x8x64xf32>
    %120 = vector.shape_cast %119 : vector<1x8x64xf32> to vector<8x64xf32>
    %c0_124 = arith.constant 0 : index
    %c22_125 = arith.constant 22 : index
    %121 = vector.load %arg4[%c0_124, %c22_125] : memref<64x256xf32, #tpu.memory_space<vmem>>, vector<64x128xf32>
    %cst_126 = arith.constant dense<0.000000e+00> : vector<8x128xf32>
    %122 = tpu.matmul %120, %121, %cst_126 {dimension_numbers = #tpu.dot_dimension_numbers<[1], [0], [0], [1], [0, 0, 1, 1], [], []>} : vector<8x64xf32>, vector<64x128xf32>, vector<8x128xf32> -> vector<8x128xf32>
    %123 = arith.addf %118, %122 : vector<8x128xf32>
    %c23 = arith.constant 23 : index
    %c0_127 = arith.constant 0 : index
    %c0_128 = arith.constant 0 : index
    %124 = vector.load %arg1[%c23, %c0_127, %c0_128] : memref<32x8x64xf32, #tpu.memory_space<vmem>>, vector<1x8x64xf32>
    %125 = vector.shape_cast %124 : vector<1x8x64xf32> to vector<8x64xf32>
    %c0_129 = arith.constant 0 : index
    %c23_130 = arith.constant 23 : index
    %126 = vector.load %arg4[%c0_129, %c23_130] : memref<64x256xf32, #tpu.memory_space<vmem>>, vector<64x128xf32>
    %cst_131 = arith.constant dense<0.000000e+00> : vector<8x128xf32>
    %127 = tpu.matmul %125, %126, %cst_131 {dimension_numbers = #tpu.dot_dimension_numbers<[1], [0], [0], [1], [0, 0, 1, 1], [], []>} : vector<8x64xf32>, vector<64x128xf32>, vector<8x128xf32> -> vector<8x128xf32>
    %128 = arith.addf %123, %127 : vector<8x128xf32>
    %c24 = arith.constant 24 : index
    %c0_132 = arith.constant 0 : index
    %c0_133 = arith.constant 0 : index
    %129 = vector.load %arg1[%c24, %c0_132, %c0_133] : memref<32x8x64xf32, #tpu.memory_space<vmem>>, vector<1x8x64xf32>
    %130 = vector.shape_cast %129 : vector<1x8x64xf32> to vector<8x64xf32>
    %c0_134 = arith.constant 0 : index
    %c24_135 = arith.constant 24 : index
    %131 = vector.load %arg4[%c0_134, %c24_135] : memref<64x256xf32, #tpu.memory_space<vmem>>, vector<64x128xf32>
    %cst_136 = arith.constant dense<0.000000e+00> : vector<8x128xf32>
    %132 = tpu.matmul %130, %131, %cst_136 {dimension_numbers = #tpu.dot_dimension_numbers<[1], [0], [0], [1], [0, 0, 1, 1], [], []>} : vector<8x64xf32>, vector<64x128xf32>, vector<8x128xf32> -> vector<8x128xf32>
    %133 = arith.addf %128, %132 : vector<8x128xf32>
    %c25 = arith.constant 25 : index
    %c0_137 = arith.constant 0 : index
    %c0_138 = arith.constant 0 : index
    %134 = vector.load %arg1[%c25, %c0_137, %c0_138] : memref<32x8x64xf32, #tpu.memory_space<vmem>>, vector<1x8x64xf32>
    %135 = vector.shape_cast %134 : vector<1x8x64xf32> to vector<8x64xf32>
    %c0_139 = arith.constant 0 : index
    %c25_140 = arith.constant 25 : index
    %136 = vector.load %arg4[%c0_139, %c25_140] : memref<64x256xf32, #tpu.memory_space<vmem>>, vector<64x128xf32>
    %cst_141 = arith.constant dense<0.000000e+00> : vector<8x128xf32>
    %137 = tpu.matmul %135, %136, %cst_141 {dimension_numbers = #tpu.dot_dimension_numbers<[1], [0], [0], [1], [0, 0, 1, 1], [], []>} : vector<8x64xf32>, vector<64x128xf32>, vector<8x128xf32> -> vector<8x128xf32>
    %138 = arith.addf %133, %137 : vector<8x128xf32>
    %c26 = arith.constant 26 : index
    %c0_142 = arith.constant 0 : index
    %c0_143 = arith.constant 0 : index
    %139 = vector.load %arg1[%c26, %c0_142, %c0_143] : memref<32x8x64xf32, #tpu.memory_space<vmem>>, vector<1x8x64xf32>
    %140 = vector.shape_cast %139 : vector<1x8x64xf32> to vector<8x64xf32>
    %c0_144 = arith.constant 0 : index
    %c26_145 = arith.constant 26 : index
    %141 = vector.load %arg4[%c0_144, %c26_145] : memref<64x256xf32, #tpu.memory_space<vmem>>, vector<64x128xf32>
    %cst_146 = arith.constant dense<0.000000e+00> : vector<8x128xf32>
    %142 = tpu.matmul %140, %141, %cst_146 {dimension_numbers = #tpu.dot_dimension_numbers<[1], [0], [0], [1], [0, 0, 1, 1], [], []>} : vector<8x64xf32>, vector<64x128xf32>, vector<8x128xf32> -> vector<8x128xf32>
    %143 = arith.addf %138, %142 : vector<8x128xf32>
    %c27 = arith.constant 27 : index
    %c0_147 = arith.constant 0 : index
    %c0_148 = arith.constant 0 : index
    %144 = vector.load %arg1[%c27, %c0_147, %c0_148] : memref<32x8x64xf32, #tpu.memory_space<vmem>>, vector<1x8x64xf32>
    %145 = vector.shape_cast %144 : vector<1x8x64xf32> to vector<8x64xf32>
    %c0_149 = arith.constant 0 : index
    %c27_150 = arith.constant 27 : index
    %146 = vector.load %arg4[%c0_149, %c27_150] : memref<64x256xf32, #tpu.memory_space<vmem>>, vector<64x128xf32>
    %cst_151 = arith.constant dense<0.000000e+00> : vector<8x128xf32>
    %147 = tpu.matmul %145, %146, %cst_151 {dimension_numbers = #tpu.dot_dimension_numbers<[1], [0], [0], [1], [0, 0, 1, 1], [], []>} : vector<8x64xf32>, vector<64x128xf32>, vector<8x128xf32> -> vector<8x128xf32>
    %148 = arith.addf %143, %147 : vector<8x128xf32>
    %c28 = arith.constant 28 : index
    %c0_152 = arith.constant 0 : index
    %c0_153 = arith.constant 0 : index
    %149 = vector.load %arg1[%c28, %c0_152, %c0_153] : memref<32x8x64xf32, #tpu.memory_space<vmem>>, vector<1x8x64xf32>
    %150 = vector.shape_cast %149 : vector<1x8x64xf32> to vector<8x64xf32>
    %c0_154 = arith.constant 0 : index
    %c28_155 = arith.constant 28 : index
    %151 = vector.load %arg4[%c0_154, %c28_155] : memref<64x256xf32, #tpu.memory_space<vmem>>, vector<64x128xf32>
    %cst_156 = arith.constant dense<0.000000e+00> : vector<8x128xf32>
    %152 = tpu.matmul %150, %151, %cst_156 {dimension_numbers = #tpu.dot_dimension_numbers<[1], [0], [0], [1], [0, 0, 1, 1], [], []>} : vector<8x64xf32>, vector<64x128xf32>, vector<8x128xf32> -> vector<8x128xf32>
    %153 = arith.addf %148, %152 : vector<8x128xf32>
    %c29 = arith.constant 29 : index
    %c0_157 = arith.constant 0 : index
    %c0_158 = arith.constant 0 : index
    %154 = vector.load %arg1[%c29, %c0_157, %c0_158] : memref<32x8x64xf32, #tpu.memory_space<vmem>>, vector<1x8x64xf32>
    %155 = vector.shape_cast %154 : vector<1x8x64xf32> to vector<8x64xf32>
    %c0_159 = arith.constant 0 : index
    %c29_160 = arith.constant 29 : index
    %156 = vector.load %arg4[%c0_159, %c29_160] : memref<64x256xf32, #tpu.memory_space<vmem>>, vector<64x128xf32>
    %cst_161 = arith.constant dense<0.000000e+00> : vector<8x128xf32>
    %157 = tpu.matmul %155, %156, %cst_161 {dimension_numbers = #tpu.dot_dimension_numbers<[1], [0], [0], [1], [0, 0, 1, 1], [], []>} : vector<8x64xf32>, vector<64x128xf32>, vector<8x128xf32> -> vector<8x128xf32>
    %158 = arith.addf %153, %157 : vector<8x128xf32>
    %c30 = arith.constant 30 : index
    %c0_162 = arith.constant 0 : index
    %c0_163 = arith.constant 0 : index
    %159 = vector.load %arg1[%c30, %c0_162, %c0_163] : memref<32x8x64xf32, #tpu.memory_space<vmem>>, vector<1x8x64xf32>
    %160 = vector.shape_cast %159 : vector<1x8x64xf32> to vector<8x64xf32>
    %c0_164 = arith.constant 0 : index
    %c30_165 = arith.constant 30 : index
    %161 = vector.load %arg4[%c0_164, %c30_165] : memref<64x256xf32, #tpu.memory_space<vmem>>, vector<64x128xf32>
    %cst_166 = arith.constant dense<0.000000e+00> : vector<8x128xf32>
    %162 = tpu.matmul %160, %161, %cst_166 {dimension_numbers = #tpu.dot_dimension_numbers<[1], [0], [0], [1], [0, 0, 1, 1], [], []>} : vector<8x64xf32>, vector<64x128xf32>, vector<8x128xf32> -> vector<8x128xf32>
    %163 = arith.addf %158, %162 : vector<8x128xf32>
    %c31 = arith.constant 31 : index
    %c0_167 = arith.constant 0 : index
    %c0_168 = arith.constant 0 : index
    %164 = vector.load %arg1[%c31, %c0_167, %c0_168] : memref<32x8x64xf32, #tpu.memory_space<vmem>>, vector<1x8x64xf32>
    %165 = vector.shape_cast %164 : vector<1x8x64xf32> to vector<8x64xf32>
    %c0_169 = arith.constant 0 : index
    %c31_170 = arith.constant 31 : index
    %166 = vector.load %arg4[%c0_169, %c31_170] : memref<64x256xf32, #tpu.memory_space<vmem>>, vector<64x128xf32>
    %cst_171 = arith.constant dense<0.000000e+00> : vector<8x128xf32>
    %167 = tpu.matmul %165, %166, %cst_171 {dimension_numbers = #tpu.dot_dimension_numbers<[1], [0], [0], [1], [0, 0, 1, 1], [], []>} : vector<8x64xf32>, vector<64x128xf32>, vector<8x128xf32> -> vector<8x128xf32>
    %168 = arith.addf %163, %167 : vector<8x128xf32>
    %c0_172 = arith.constant 0 : index
    %c0_173 = arith.constant 0 : index
    %169 = vector.load %arg2[%c0_172, %c0_173] : memref<8x1xf32, #tpu.memory_space<vmem>>, vector<8x1xf32>
    %170 = vector.broadcast %169 : vector<8x1xf32> to vector<8x128xf32>
    %171 = arith.addf %168, %170 : vector<8x128xf32>
    %c0_174 = arith.constant 0 : index
    %c0_175 = arith.constant 0 : index
    %172 = vector.load %arg3[%c0_174, %c0_175] : memref<8x128xf32, #tpu.memory_space<vmem>>, vector<8x128xf32>
    tpu.vector_store %arg3[%c0_174, %c0_175], %171 {strides = array<i32>} : memref<8x128xf32, #tpu.memory_space<vmem>>, vector<8x128xf32>,
    return
  }
}

</mosaic_0001>

<llo_original>
// kernel: tpu_custom_call.1
$region0: #{tpu_custom_call.1}
  #allocation0 [shape = 'u32[]', space=smem, size = 0x4, offset = 0x4, fixed_abs, tag = 'smem constant byte address 0x4 - core index']
  #allocation1 [shape = 'u32[144,128]{1,0:T(1,128)}', space=vmem, size = 0x12000, scoped, tag = 'internal scratch']
  #allocation2 [shape = 'f32[64,256]{1,0:T(8,128)}', space=vmem, size = 0x10000, scoped, tag = 'scratch operand']
  %s0 = inlined_call_operand.hbm [shape: f32[2,64,64], index: 0, kind: input, shape index: {}]
  %s1 = inlined_call_operand.hbm [shape: f32[32,8,64], index: 1, kind: input, shape index: {}]
  %s2 = inlined_call_operand.vmem [shape: f32[8,1], index: 2, kind: input, shape index: {}]
  %s3 = inlined_call_operand.hbm [shape: f32[8,128], index: 3, kind: output, shape index: {}]
  %s4 = sld [smem:[#allocation0]]
  $region30: #{tpu_custom_call.1} parent=0
    _
  %s6 = ssub.s32 1, %s4
  %s7 = scalar_select 0, %s6, %s4
  $region1: #{tpu_custom_call.1} parent=0
    #allocation3 [shape = 'u8[65536]{0}', space=vmem, size = 0x10000, scoped, tag = 'input window, operand 0, single buffered']
    #allocation4 [shape = 's32[1]{0}', space=sflag, size = 0x4, scoped, tag = 'scoped memory for tpu_custom_call.1']
    #allocation5 [shape = 's32[1]{0}', space=sflag, size = 0x4, scoped, tag = 'scoped memory for tpu_custom_call.1']
    #allocation6 [shape = 'u8[131072]{0}', space=vmem, size = 0x20000, scoped, tag = 'input window, operand 1, single buffered']
    #allocation7 [shape = 's32[1]{0}', space=sflag, size = 0x4, scoped, tag = 'scoped memory for tpu_custom_call.1']
    #allocation8 [shape = 'u8[4096]{0}', space=vmem, size = 0x1000, scoped, tag = 'output window, operand 0, single buffered']
    %8 = vsyncpa [#allocation4], 0
    %9 = vsyncpa [#allocation7], 0
    %10 = vsyncpa [#allocation5], 0
    // Predicated region
    $region2: #{tpu_custom_call.1} parent=1 // pred_check
      _
    $region3: #{tpu_custom_call.1} parent=1 // pred_check_branch
      %12 = sbr.rel (0) target = $region5
    $region4: #{tpu_custom_call.1} parent=1 // pred_region
      %s14 = ssub.s32 2048, 2048
      %15 = vsyncadd [#allocation4], %s14
      %s16 = sshll.u32 [#allocation3], 4
      %s17 = int_to_ptr.vmem [resolvable:$true] %s16
      %22 = dma.hbm_to_vmem [thread:$0]  %s0, 2048, %s17, [#allocation4], 128, 128, 8
    $region5: #{tpu_custom_call.1} parent=1 // pred_fallthru
      _
    // Predicated region
    $region6: #{tpu_custom_call.1} parent=1 // pred_check
      _
    $region7: #{tpu_custom_call.1} parent=1 // pred_check_branch
      %24 = sbr.rel (0) target = $region9
    $region8: #{tpu_custom_call.1} parent=1 // pred_region
      %s26 = ssub.s32 4096, 4096
      %27 = vsyncadd [#allocation7], %s26
      %s28 = sshll.u32 [#allocation6], 4
      %s29 = int_to_ptr.vmem [resolvable:$true] %s28
      %34 = dma.hbm_to_vmem [thread:$0]  %s1, 4096, %s29, [#allocation7], 128, 128, 8
    $region9: #{tpu_custom_call.1} parent=1 // pred_fallthru
      _
    // Predicated region
    $region10: #{tpu_custom_call.1} parent=1 // pred_check
      _
    $region11: #{tpu_custom_call.1} parent=1 // pred_check_branch
      %36 = sbr.rel (0) target = $region13
    $region12: #{tpu_custom_call.1} parent=1 // pred_region
      _
    $region13: #{tpu_custom_call.1} parent=1 // pred_fallthru
      _
    // Predicated region
    $region14: #{tpu_custom_call.1} parent=1 // pred_check
      _
    $region15: #{tpu_custom_call.1} parent=1 // pred_check_branch
      %38 = sbr.rel (0) target = $region17
    $region16: #{tpu_custom_call.1} parent=1 // pred_region
      %39 = dma.done [#allocation4], 2048
    $region17: #{tpu_custom_call.1} parent=1 // pred_fallthru
      _
    // Predicated region
    $region18: #{tpu_custom_call.1} parent=1 // pred_check
      _
    $region19: #{tpu_custom_call.1} parent=1 // pred_check_branch
      %41 = sbr.rel (0) target = $region21
    $region20: #{tpu_custom_call.1} parent=1 // pred_region
      %42 = dma.done [#allocation7], 4096
    $region21: #{tpu_custom_call.1} parent=1 // pred_fallthru
      _
    %43 = vst [vmem:[#allocation2] sm:$0xff] 0.0
    %44 = vst [vmem:[#allocation2 + $0x8] sm:$0xff] 0.0
    %45 = vst [vmem:[#allocation2 + $0x10] sm:$0xff] 0.0
    %46 = vst [vmem:[#allocation2 + $0x18] sm:$0xff] 0.0
    %47 = vst [vmem:[#allocation2 + $0x20] sm:$0xff] 0.0
    %48 = vst [vmem:[#allocation2 + $0x28] sm:$0xff] 0.0
    %49 = vst [vmem:[#allocation2 + $0x30] sm:$0xff] 0.0
    %50 = vst [vmem:[#allocation2 + $0x38] sm:$0xff] 0.0
    %51 = vst [vmem:[#allocation2 + $0x40] sm:$0xff] 0.0
    %52 = vst [vmem:[#allocation2 + $0x48] sm:$0xff] 0.0
    %53 = vst [vmem:[#allocation2 + $0x50] sm:$0xff] 0.0
    %54 = vst [vmem:[#allocation2 + $0x58] sm:$0xff] 0.0
    %55 = vst [vmem:[#allocation2 + $0x60] sm:$0xff] 0.0
    %56 = vst [vmem:[#allocation2 + $0x68] sm:$0xff] 0.0
    %57 = vst [vmem:[#allocation2 + $0x70] sm:$0xff] 0.0
    %58 = vst [vmem:[#allocation2 + $0x78] sm:$0xff] 0.0
    %v59 = vld [vmem:[#allocation3] sm:$0xff]
    %v60 = vld [vmem:[#allocation3 + $0x8] sm:$0xff]
    %v61 = vld [vmem:[#allocation3 + $0x10] sm:$0xff]
    %v62 = vld [vmem:[#allocation3 + $0x18] sm:$0xff]
    %v63 = vld [vmem:[#allocation3 + $0x20] sm:$0xff]
    %v64 = vld [vmem:[#allocation3 + $0x28] sm:$0xff]
    %v65 = vld [vmem:[#allocation3 + $0x30] sm:$0xff]
    %v66 = vld [vmem:[#allocation3 + $0x38] sm:$0xff]
    %vm67 = vcmask 523264
    %68 = vst.msk [vmem:[#allocation2] sm:$0xff] %vm67, %v59
    %69 = vst.msk [vmem:[#allocation2 + $0x10] sm:$0xff] %vm67, %v60
    %70 = vst.msk [vmem:[#allocation2 + $0x20] sm:$0xff] %vm67, %v61
    %71 = vst.msk [vmem:[#allocation2 + $0x30] sm:$0xff] %vm67, %v62
    %72 = vst.msk [vmem:[#allocation2 + $0x40] sm:$0xff] %vm67, %v63
    %73 = vst.msk [vmem:[#allocation2 + $0x50] sm:$0xff] %vm67, %v64
    %74 = vst.msk [vmem:[#allocation2 + $0x60] sm:$0xff] %vm67, %v65
    %75 = vst.msk [vmem:[#allocation2 + $0x70] sm:$0xff] %vm67, %v66
    %s76 = scalar_lea.vmem [#allocation3], 64
    %v77 = vld [vmem:[%s76] sm:$0xff]
    %v78 = vld [vmem:[%s76 + $0x8] sm:$0xff]
    %v79 = vld [vmem:[%s76 + $0x10] sm:$0xff]
    %v80 = vld [vmem:[%s76 + $0x18] sm:$0xff]
    %v81 = vld [vmem:[%s76 + $0x20] sm:$0xff]
    %v82 = vld [vmem:[%s76 + $0x28] sm:$0xff]
    %v83 = vld [vmem:[%s76 + $0x30] sm:$0xff]
    %v84 = vld [vmem:[%s76 + $0x38] sm:$0xff]
    %93 = vrot.lane.b32.xlu0 %v77, 64
    %v94 = vpop.permute.xlu0 %93
    %95 = vrot.lane.b32.xlu0 %v78, 64
    %v96 = vpop.permute.xlu0 %95
    %97 = vrot.lane.b32.xlu0 %v79, 64
    %v98 = vpop.permute.xlu0 %97
    %99 = vrot.lane.b32.xlu0 %v80, 64
    %v100 = vpop.permute.xlu0 %99
    %101 = vrot.lane.b32.xlu0 %v81, 64
    %v102 = vpop.permute.xlu0 %101
    %103 = vrot.lane.b32.xlu0 %v82, 64
    %v104 = vpop.permute.xlu0 %103
    %105 = vrot.lane.b32.xlu0 %v83, 64
    %v106 = vpop.permute.xlu0 %105
    %107 = vrot.lane.b32.xlu0 %v84, 64
    %v108 = vpop.permute.xlu0 %107
    %vm117 = vcmask 1048064
    %118 = vst.msk [vmem:[#allocation2] sm:$0xff] %vm117, %v94
    %119 = vst.msk [vmem:[#allocation2 + $0x10] sm:$0xff] %vm117, %v96
    %120 = vst.msk [vmem:[#allocation2 + $0x20] sm:$0xff] %vm117, %v98
    %121 = vst.msk [vmem:[#allocation2 + $0x30] sm:$0xff] %vm117, %v100
    %122 = vst.msk [vmem:[#allocation2 + $0x40] sm:$0xff] %vm117, %v102
    %123 = vst.msk [vmem:[#allocation2 + $0x50] sm:$0xff] %vm117, %v104
    %124 = vst.msk [vmem:[#allocation2 + $0x60] sm:$0xff] %vm117, %v106
    %125 = vst.msk [vmem:[#allocation2 + $0x70] sm:$0xff] %vm117, %v108
    %v126 = vld [vmem:[#allocation6] sm:$0xff]
    %v127 = vld [vmem:[#allocation2] sm:$0xff]
    %v128 = vld [vmem:[#allocation2 + $0x10] sm:$0xff]
    %v129 = vld [vmem:[#allocation2 + $0x20] sm:$0xff]
    %v130 = vld [vmem:[#allocation2 + $0x30] sm:$0xff]
    %v131 = vld [vmem:[#allocation2 + $0x40] sm:$0xff]
    %v132 = vld [vmem:[#allocation2 + $0x50] sm:$0xff]
    %v133 = vld [vmem:[#allocation2 + $0x60] sm:$0xff]
    %v134 = vld [vmem:[#allocation2 + $0x70] sm:$0xff]
    %s135 = scalar_lea.vmem [#allocation6], 8
    %v136 = vld [vmem:[%s135] sm:$0xff]
    %v137 = vld [vmem:[#allocation2] sm:$0xff]
    %v138 = vld [vmem:[#allocation2 + $0x8] sm:$0xff]
    %v139 = vld [vmem:[#allocation2 + $0x10] sm:$0xff]
    %v140 = vld [vmem:[#allocation2 + $0x18] sm:$0xff]
    %v141 = vld [vmem:[#allocation2 + $0x20] sm:$0xff]
    %v142 = vld [vmem:[#allocation2 + $0x28] sm:$0xff]
    %v143 = vld [vmem:[#allocation2 + $0x30] sm:$0xff]
    %v144 = vld [vmem:[#allocation2 + $0x38] sm:$0xff]
    %v145 = vld [vmem:[#allocation2 + $0x40] sm:$0xff]
    %v146 = vld [vmem:[#allocation2 + $0x48] sm:$0xff]
    %v147 = vld [vmem:[#allocation2 + $0x50] sm:$0xff]
    %v148 = vld [vmem:[#allocation2 + $0x58] sm:$0xff]
    %v149 = vld [vmem:[#allocation2 + $0x60] sm:$0xff]
    %v150 = vld [vmem:[#allocation2 + $0x68] sm:$0xff]
    %v151 = vld [vmem:[#allocation2 + $0x70] sm:$0xff]
    %v152 = vld [vmem:[#allocation2 + $0x78] sm:$0xff]
    %169 = vrot.lane.b32.xlu0 %v137, 127
    %v170 = vpop.permute.xlu0 %169
    %171 = vrot.lane.b32.xlu0 %v138, 127
    %v172 = vpop.permute.xlu0 %171
    %173 = vrot.lane.b32.xlu0 %v139, 127
    %v174 = vpop.permute.xlu0 %173
    %175 = vrot.lane.b32.xlu0 %v140, 127
    %v176 = vpop.permute.xlu0 %175
    %177 = vrot.lane.b32.xlu0 %v141, 127
    %v178 = vpop.permute.xlu0 %177
    %179 = vrot.lane.b32.xlu0 %v142, 127
    %v180 = vpop.permute.xlu0 %179
    %181 = vrot.lane.b32.xlu0 %v143, 127
    %v182 = vpop.permute.xlu0 %181
    %183 = vrot.lane.b32.xlu0 %v144, 127
    %v184 = vpop.permute.xlu0 %183
    %185 = vrot.lane.b32.xlu0 %v145, 127
    %v186 = vpop.permute.xlu0 %185
    %187 = vrot.lane.b32.xlu0 %v146, 127
    %v188 = vpop.permute.xlu0 %187
    %189 = vrot.lane.b32.xlu0 %v147, 127
    %v190 = vpop.permute.xlu0 %189
    %191 = vrot.lane.b32.xlu0 %v148, 127
    %v192 = vpop.permute.xlu0 %191
    %193 = vrot.lane.b32.xlu0 %v149, 127
    %v194 = vpop.permute.xlu0 %193
    %195 = vrot.lane.b32.xlu0 %v150, 127
    %v196 = vpop.permute.xlu0 %195
    %197 = vrot.lane.b32.xlu0 %v151, 127
    %v198 = vpop.permute.xlu0 %197
    %199 = vrot.lane.b32.xlu0 %v152, 127
    %v200 = vpop.permute.xlu0 %199
    %vm201 = vcmask 1039360
    %v202 = vsel %vm201, %v170, %v172
    %v203 = vsel %vm201, %v174, %v176
    %v204 = vsel %vm201, %v178, %v180
    %v205 = vsel %vm201, %v182, %v184
    %v206 = vsel %vm201, %v186, %v188
    %v207 = vsel %vm201, %v190, %v192
    %v208 = vsel %vm201, %v194, %v196
    %v209 = vsel %vm201, %v198, %v200
    %v219 = vsel %vm67, %v136, 0
    %221 = vmatprep.subr.mxu0 0.0
    %222 = vmatpush1.msra.mxu0 %v202
    %223 = vmatprep.subr.mxu0 0.0
    %224 = vmatpush1.msra.mxu0 %v203
    %225 = vmatprep.subr.mxu0 0.0
    %226 = vmatpush1.msra.mxu0 %v204
    %227 = vmatprep.subr.mxu0 0.0
    %228 = vmatpush1.msra.mxu0 %v205
    %229 = vmatprep.subr.mxu0 0.0
    %230 = vmatpush1.msra.mxu0 %v206
    %231 = vmatprep.subr.mxu0 0.0
    %232 = vmatpush1.msra.mxu0 %v207
    %233 = vmatprep.subr.mxu0 0.0
    %234 = vmatpush1.msra.mxu0 %v208
    %235 = vmatprep.subr.mxu0 0.0
    %236 = vmatpush1.msra.mxu0 %v209
    %237 = vmatprep.subr.mxu0 0.0
    %238 = vmatpush1.msra.mxu0 0.0
    %239 = vmatprep.subr.mxu0 0.0
    %240 = vmatpush1.msra.mxu0 0.0
    %241 = vmatprep.subr.mxu0 0.0
    %242 = vmatpush1.msra.mxu0 0.0
    %243 = vmatprep.subr.mxu0 0.0
    %244 = vmatpush1.msra.mxu0 0.0
    %245 = vmatprep.subr.mxu0 0.0
    %246 = vmatpush1.msra.mxu0 0.0
    %247 = vmatprep.subr.mxu0 0.0
    %248 = vmatpush1.msra.mxu0 0.0
    %249 = vmatprep.subr.mxu0 0.0
    %250 = vmatpush1.msra.mxu0 0.0
    %251 = vmatprep.subr.mxu0 0.0
    %252 = vmatpush1.msra.mxu0 0.0
    %253 = vmatprep.subr.mxu0 0.0
    %254 = vmatpush1.msra.mxu0 0.0
    %255 = vmatprep.subr.mxu0 0.0
    %256 = vmatpush1.msra.mxu0 0.0
    %257 = vmatprep.subr.mxu0 0.0
    %258 = vmatpush1.msra.mxu0 0.0
    %259 = vmatprep.subr.mxu0 0.0
    %260 = vmatpush1.msra.mxu0 0.0
    %261 = vmatprep.subr.mxu0 0.0
    %262 = vmatpush1.msra.mxu0 0.0
    %263 = vmatprep.subr.mxu0 0.0
    %264 = vmatpush1.msra.mxu0 0.0
    %265 = vmatprep.subr.mxu0 0.0
    %266 = vmatpush1.msra.mxu0 0.0
    %267 = vmatprep.subr.mxu0 0.0
    %268 = vmatpush1.msra.mxu0 0.0
    %269 = vmatprep.subr.mxu0 0.0
    %270 = vmatpush1.msra.mxu0 0.0
    %271 = vmatprep.subr.mxu0 0.0
    %272 = vmatpush1.msra.mxu0 0.0
    %273 = vmatprep.subr.mxu0 0.0
    %274 = vmatpush1.msra.mxu0 0.0
    %275 = vmatprep.subr.mxu0 0.0
    %276 = vmatpush1.msra.mxu0 0.0
    %277 = vmatprep.subr.mxu0 0.0
    %278 = vmatpush1.msra.mxu0 0.0
    %279 = vmatprep.subr.mxu0 0.0
    %280 = vmatpush1.msra.mxu0 0.0
    %281 = vmatprep.subr.mxu0 0.0
    %282 = vmatpush1.msra.mxu0 0.0
    %283 = vmatprep.subr.mxu0 0.0
    %284 = vmatpush1.msra.mxu0 0.0
    %285 = vmatprep.mubr.f32.mxu0 0.0
    %286 = vmatmul.mubr.f32.gmra.mrb[0].mxu0 %v219
    %v287 = vpop.f32.mrb[0].mxu0
    %v288 = vadd.f32 0.0, %v287
    %v289 = vpop.f32.mrb[0].mxu0
    %290 = vdwg.mxu0
    %v292 = vsel %vm67, %v126, 0
    %294 = vmatprep.subr.mxu0 0.0
    %295 = vmatpush1.msra.mxu0 %v127
    %296 = vmatprep.subr.mxu0 0.0
    %297 = vmatpush1.msra.mxu0 %v128
    %298 = vmatprep.subr.mxu0 0.0
    %299 = vmatpush1.msra.mxu0 %v129
    %300 = vmatprep.subr.mxu0 0.0
    %301 = vmatpush1.msra.mxu0 %v130
    %302 = vmatprep.subr.mxu0 0.0
    %303 = vmatpush1.msra.mxu0 %v131
    %304 = vmatprep.subr.mxu0 0.0
    %305 = vmatpush1.msra.mxu0 %v132
    %306 = vmatprep.subr.mxu0 0.0
    %307 = vmatpush1.msra.mxu0 %v133
    %308 = vmatprep.subr.mxu0 0.0
    %309 = vmatpush1.msra.mxu0 %v134
    %310 = vmatprep.subr.mxu0 0.0
    %311 = vmatpush1.msra.mxu0 0.0
    %312 = vmatprep.subr.mxu0 0.0
    %313 = vmatpush1.msra.mxu0 0.0
    %314 = vmatprep.subr.mxu0 0.0
    %315 = vmatpush1.msra.mxu0 0.0
    %316 = vmatprep.subr.mxu0 0.0
    %317 = vmatpush1.msra.mxu0 0.0
    %318 = vmatprep.subr.mxu0 0.0
    %319 = vmatpush1.msra.mxu0 0.0
    %320 = vmatprep.subr.mxu0 0.0
    %321 = vmatpush1.msra.mxu0 0.0
    %322 = vmatprep.subr.mxu0 0.0
    %323 = vmatpush1.msra.mxu0 0.0
    %324 = vmatprep.subr.mxu0 0.0
    %325 = vmatpush1.msra.mxu0 0.0
    %326 = vmatprep.subr.mxu0 0.0
    %327 = vmatpush1.msra.mxu0 0.0
    %328 = vmatprep.subr.mxu0 0.0
    %329 = vmatpush1.msra.mxu0 0.0
    %330 = vmatprep.subr.mxu0 0.0
    %331 = vmatpush1.msra.mxu0 0.0
    %332 = vmatprep.subr.mxu0 0.0
    %333 = vmatpush1.msra.mxu0 0.0
    %334 = vmatprep.subr.mxu0 0.0
    %335 = vmatpush1.msra.mxu0 0.0
    %336 = vmatprep.subr.mxu0 0.0
    %337 = vmatpush1.msra.mxu0 0.0
    %338 = vmatprep.subr.mxu0 0.0
    %339 = vmatpush1.msra.mxu0 0.0
    %340 = vmatprep.subr.mxu0 0.0
    %341 = vmatpush1.msra.mxu0 0.0
    %342 = vmatprep.subr.mxu0 0.0
    %343 = vmatpush1.msra.mxu0 0.0
    %344 = vmatprep.subr.mxu0 0.0
    %345 = vmatpush1.msra.mxu0 0.0
    %346 = vmatprep.subr.mxu0 0.0
    %347 = vmatpush1.msra.mxu0 0.0
    %348 = vmatprep.subr.mxu0 0.0
    %349 = vmatpush1.msra.mxu0 0.0
    %350 = vmatprep.subr.mxu0 0.0
    %351 = vmatpush1.msra.mxu0 0.0
    %352 = vmatprep.subr.mxu0 0.0
    %353 = vmatpush1.msra.mxu0 0.0
    %354 = vmatprep.subr.mxu0 0.0
    %355 = vmatpush1.msra.mxu0 0.0
    %356 = vmatprep.subr.mxu0 0.0
    %357 = vmatpush1.msra.mxu0 0.0
    %358 = vmatprep.mubr.f32.mxu0 0.0
    %359 = vmatmul.mubr.f32.gmra.mrb[0].mxu0 %v292
    %v360 = vpop.f32.mrb[0].mxu0
    %v361 = vadd.f32 %v288, %v360
    %v362 = vpop.f32.mrb[0].mxu0
    %363 = vdwg.mxu0
    %s364 = scalar_lea.vmem [#allocation6], 16
    %v365 = vld [vmem:[%s364] sm:$0xff]
    %366 = vrot.lane.b32.xlu0 %v137, 126
    %v367 = vpop.permute.xlu0 %366
    %368 = vrot.lane.b32.xlu0 %v138, 126
    %v369 = vpop.permute.xlu0 %368
    %370 = vrot.lane.b32.xlu0 %v139, 126
    %v371 = vpop.permute.xlu0 %370
    %372 = vrot.lane.b32.xlu0 %v140, 126
    %v373 = vpop.permute.xlu0 %372
    %374 = vrot.lane.b32.xlu0 %v141, 126
    %v375 = vpop.permute.xlu0 %374
    %376 = vrot.lane.b32.xlu0 %v142, 126
    %v377 = vpop.permute.xlu0 %376
    %378 = vrot.lane.b32.xlu0 %v143, 126
    %v379 = vpop.permute.xlu0 %378
    %380 = vrot.lane.b32.xlu0 %v144, 126
    %v381 = vpop.permute.xlu0 %380
    %382 = vrot.lane.b32.xlu0 %v145, 126
    %v383 = vpop.permute.xlu0 %382
    %384 = vrot.lane.b32.xlu0 %v146, 126
    %v385 = vpop.permute.xlu0 %384
    %386 = vrot.lane.b32.xlu0 %v147, 126
    %v387 = vpop.permute.xlu0 %386
    %388 = vrot.lane.b32.xlu0 %v148, 126
    %v389 = vpop.permute.xlu0 %388
    %390 = vrot.lane.b32.xlu0 %v149, 126
    %v391 = vpop.permute.xlu0 %390
    %392 = vrot.lane.b32.xlu0 %v150, 126
    %v393 = vpop.permute.xlu0 %392
    %394 = vrot.lane.b32.xlu0 %v151, 126
    %v395 = vpop.permute.xlu0 %394
    %396 = vrot.lane.b32.xlu0 %v152, 126
    %v397 = vpop.permute.xlu0 %396
    %vm398 = vcmask 1031168
    %v399 = vsel %vm398, %v367, %v369
    %v400 = vsel %vm398, %v371, %v373
    %v401 = vsel %vm398, %v375, %v377
    %v402 = vsel %vm398, %v379, %v381
    %v403 = vsel %vm398, %v383, %v385
    %v404 = vsel %vm398, %v387, %v389
    %v405 = vsel %vm398, %v391, %v393
    %v406 = vsel %vm398, %v395, %v397
    %v416 = vsel %vm67, %v365, 0
    %418 = vmatprep.subr.mxu0 0.0
    %419 = vmatpush1.msra.mxu0 %v399
    %420 = vmatprep.subr.mxu0 0.0
    %421 = vmatpush1.msra.mxu0 %v400
    %422 = vmatprep.subr.mxu0 0.0
    %423 = vmatpush1.msra.mxu0 %v401
    %424 = vmatprep.subr.mxu0 0.0
    %425 = vmatpush1.msra.mxu0 %v402
    %426 = vmatprep.subr.mxu0 0.0
    %427 = vmatpush1.msra.mxu0 %v403
    %428 = vmatprep.subr.mxu0 0.0
    %429 = vmatpush1.msra.mxu0 %v404
    %430 = vmatprep.subr.mxu0 0.0
    %431 = vmatpush1.msra.mxu0 %v405
    %432 = vmatprep.subr.mxu0 0.0
    %433 = vmatpush1.msra.mxu0 %v406
    %434 = vmatprep.subr.mxu0 0.0
    %435 = vmatpush1.msra.mxu0 0.0
    %436 = vmatprep.subr.mxu0 0.0
    %437 = vmatpush1.msra.mxu0 0.0
    %438 = vmatprep.subr.mxu0 0.0
    %439 = vmatpush1.msra.mxu0 0.0
    %440 = vmatprep.subr.mxu0 0.0
    %441 = vmatpush1.msra.mxu0 0.0
    %442 = vmatprep.subr.mxu0 0.0
    %443 = vmatpush1.msra.mxu0 0.0
    %444 = vmatprep.subr.mxu0 0.0
    %445 = vmatpush1.msra.mxu0 0.0
    %446 = vmatprep.subr.mxu0 0.0
    %447 = vmatpush1.msra.mxu0 0.0
    %448 = vmatprep.subr.mxu0 0.0
    %449 = vmatpush1.msra.mxu0 0.0
    %450 = vmatprep.subr.mxu0 0.0
    %451 = vmatpush1.msra.mxu0 0.0
    %452 = vmatprep.subr.mxu0 0.0
    %453 = vmatpush1.msra.mxu0 0.0
    %454 = vmatprep.subr.mxu0 0.0
    %455 = vmatpush1.msra.mxu0 0.0
    %456 = vmatprep.subr.mxu0 0.0
    %457 = vmatpush1.msra.mxu0 0.0
    %458 = vmatprep.subr.mxu0 0.0
    %459 = vmatpush1.msra.mxu0 0.0
    %460 = vmatprep.subr.mxu0 0.0
    %461 = vmatpush1.msra.mxu0 0.0
    %462 = vmatprep.subr.mxu0 0.0
    %463 = vmatpush1.msra.mxu0 0.0
    %464 = vmatprep.subr.mxu0 0.0
    %465 = vmatpush1.msra.mxu0 0.0
    %466 = vmatprep.subr.mxu0 0.0
    %467 = vmatpush1.msra.mxu0 0.0
    %468 = vmatprep.subr.mxu0 0.0
    %469 = vmatpush1.msra.mxu0 0.0
    %470 = vmatprep.subr.mxu0 0.0
    %471 = vmatpush1.msra.mxu0 0.0
    %472 = vmatprep.subr.mxu0 0.0
    %473 = vmatpush1.msra.mxu0 0.0
    %474 = vmatprep.subr.mxu0 0.0
    %475 = vmatpush1.msra.mxu0 0.0
    %476 = vmatprep.subr.mxu0 0.0
    %477 = vmatpush1.msra.mxu0 0.0
    %478 = vmatprep.subr.mxu0 0.0
    %479 = vmatpush1.msra.mxu0 0.0
    %480 = vmatprep.subr.mxu0 0.0
    %481 = vmatpush1.msra.mxu0 0.0
    %482 = vmatprep.mubr.f32.mxu0 0.0
    %483 = vmatmul.mubr.f32.gmra.mrb[0].mxu0 %v416
    %v484 = vpop.f32.mrb[0].mxu0
    %v485 = vadd.f32 0.0, %v484
    %v486 = vpop.f32.mrb[0].mxu0
    %487 = vdwg.mxu0
    %v488 = vadd.f32 %v361, %v485
    %s489 = scalar_lea.vmem [#allocation6], 24
    %v490 = vld [vmem:[%s489] sm:$0xff]
    %491 = vrot.lane.b32.xlu0 %v137, 125
    %v492 = vpop.permute.xlu0 %491
    %493 = vrot.lane.b32.xlu0 %v138, 125
    %v494 = vpop.permute.xlu0 %493
    %495 = vrot.lane.b32.xlu0 %v139, 125
    %v496 = vpop.permute.xlu0 %495
    %497 = vrot.lane.b32.xlu0 %v140, 125
    %v498 = vpop.permute.xlu0 %497
    %499 = vrot.lane.b32.xlu0 %v141, 125
    %v500 = vpop.permute.xlu0 %499
    %501 = vrot.lane.b32.xlu0 %v142, 125
    %v502 = vpop.permute.xlu0 %501
    %503 = vrot.lane.b32.xlu0 %v143, 125
    %v504 = vpop.permute.xlu0 %503
    %505 = vrot.lane.b32.xlu0 %v144, 125
    %v506 = vpop.permute.xlu0 %505
    %507 = vrot.lane.b32.xlu0 %v145, 125
    %v508 = vpop.permute.xlu0 %507
    %509 = vrot.lane.b32.xlu0 %v146, 125
    %v510 = vpop.permute.xlu0 %509
    %511 = vrot.lane.b32.xlu0 %v147, 125
    %v512 = vpop.permute.xlu0 %511
    %513 = vrot.lane.b32.xlu0 %v148, 125
    %v514 = vpop.permute.xlu0 %513
    %515 = vrot.lane.b32.xlu0 %v149, 125
    %v516 = vpop.permute.xlu0 %515
    %517 = vrot.lane.b32.xlu0 %v150, 125
    %v518 = vpop.permute.xlu0 %517
    %519 = vrot.lane.b32.xlu0 %v151, 125
    %v520 = vpop.permute.xlu0 %519
    %521 = vrot.lane.b32.xlu0 %v152, 125
    %v522 = vpop.permute.xlu0 %521
    %vm523 = vcmask 1022976
    %v524 = vsel %vm523, %v492, %v494
    %v525 = vsel %vm523, %v496, %v498
    %v526 = vsel %vm523, %v500, %v502
    %v527 = vsel %vm523, %v504, %v506
    %v528 = vsel %vm523, %v508, %v510
    %v529 = vsel %vm523, %v512, %v514
    %v530 = vsel %vm523, %v516, %v518
    %v531 = vsel %vm523, %v520, %v522
    %v541 = vsel %vm67, %v490, 0
    %543 = vmatprep.subr.mxu0 0.0
    %544 = vmatpush1.msra.mxu0 %v524
    %545 = vmatprep.subr.mxu0 0.0
    %546 = vmatpush1.msra.mxu0 %v525
    %547 = vmatprep.subr.mxu0 0.0
    %548 = vmatpush1.msra.mxu0 %v526
    %549 = vmatprep.subr.mxu0 0.0
    %550 = vmatpush1.msra.mxu0 %v527
    %551 = vmatprep.subr.mxu0 0.0
    %552 = vmatpush1.msra.mxu0 %v528
    %553 = vmatprep.subr.mxu0 0.0
    %554 = vmatpush1.msra.mxu0 %v529
    %555 = vmatprep.subr.mxu0 0.0
    %556 = vmatpush1.msra.mxu0 %v530
    %557 = vmatprep.subr.mxu0 0.0
    %558 = vmatpush1.msra.mxu0 %v531
    %559 = vmatprep.subr.mxu0 0.0
    %560 = vmatpush1.msra.mxu0 0.0
    %561 = vmatprep.subr.mxu0 0.0
    %562 = vmatpush1.msra.mxu0 0.0
    %563 = vmatprep.subr.mxu0 0.0
    %564 = vmatpush1.msra.mxu0 0.0
    %565 = vmatprep.subr.mxu0 0.0
    %566 = vmatpush1.msra.mxu0 0.0
    %567 = vmatprep.subr.mxu0 0.0
    %568 = vmatpush1.msra.mxu0 0.0
    %569 = vmatprep.subr.mxu0 0.0
    %570 = vmatpush1.msra.mxu0 0.0
    %571 = vmatprep.subr.mxu0 0.0
    %572 = vmatpush1.msra.mxu0 0.0
    %573 = vmatprep.subr.mxu0 0.0
    %574 = vmatpush1.msra.mxu0 0.0
    %575 = vmatprep.subr.mxu0 0.0
    %576 = vmatpush1.msra.mxu0 0.0
    %577 = vmatprep.subr.mxu0 0.0
    %578 = vmatpush1.msra.mxu0 0.0
    %579 = vmatprep.subr.mxu0 0.0
    %580 = vmatpush1.msra.mxu0 0.0
    %581 = vmatprep.subr.mxu0 0.0
    %582 = vmatpush1.msra.mxu0 0.0
    %583 = vmatprep.subr.mxu0 0.0
    %584 = vmatpush1.msra.mxu0 0.0
    %585 = vmatprep.subr.mxu0 0.0
    %586 = vmatpush1.msra.mxu0 0.0
    %587 = vmatprep.subr.mxu0 0.0
    %588 = vmatpush1.msra.mxu0 0.0
    %589 = vmatprep.subr.mxu0 0.0
    %590 = vmatpush1.msra.mxu0 0.0
    %591 = vmatprep.subr.mxu0 0.0
    %592 = vmatpush1.msra.mxu0 0.0
    %593 = vmatprep.subr.mxu0 0.0
    %594 = vmatpush1.msra.mxu0 0.0
    %595 = vmatprep.subr.mxu0 0.0
    %596 = vmatpush1.msra.mxu0 0.0
    %597 = vmatprep.subr.mxu0 0.0
    %598 = vmatpush1.msra.mxu0 0.0
    %599 = vmatprep.subr.mxu0 0.0
    %600 = vmatpush1.msra.mxu0 0.0
    %601 = vmatprep.subr.mxu0 0.0
    %602 = vmatpush1.msra.mxu0 0.0
    %603 = vmatprep.subr.mxu0 0.0
    %604 = vmatpush1.msra.mxu0 0.0
    %605 = vmatprep.subr.mxu0 0.0
    %606 = vmatpush1.msra.mxu0 0.0
    %607 = vmatprep.mubr.f32.mxu0 0.0
    %608 = vmatmul.mubr.f32.gmra.mrb[0].mxu0 %v541
    %v609 = vpop.f32.mrb[0].mxu0
    %v610 = vadd.f32 0.0, %v609
    %v611 = vpop.f32.mrb[0].mxu0
    %612 = vdwg.mxu0
    %v613 = vadd.f32 %v488, %v610
    %s614 = scalar_lea.vmem [#allocation6], 32
    %v615 = vld [vmem:[%s614] sm:$0xff]
    %616 = vrot.lane.b32.xlu0 %v137, 124
    %v617 = vpop.permute.xlu0 %616
    %618 = vrot.lane.b32.xlu0 %v138, 124
    %v619 = vpop.permute.xlu0 %618
    %620 = vrot.lane.b32.xlu0 %v139, 124
    %v621 = vpop.permute.xlu0 %620
    %622 = vrot.lane.b32.xlu0 %v140, 124
    %v623 = vpop.permute.xlu0 %622
    %624 = vrot.lane.b32.xlu0 %v141, 124
    %v625 = vpop.permute.xlu0 %624
    %626 = vrot.lane.b32.xlu0 %v142, 124
    %v627 = vpop.permute.xlu0 %626
    %628 = vrot.lane.b32.xlu0 %v143, 124
    %v629 = vpop.permute.xlu0 %628
    %630 = vrot.lane.b32.xlu0 %v144, 124
    %v631 = vpop.permute.xlu0 %630
    %632 = vrot.lane.b32.xlu0 %v145, 124
    %v633 = vpop.permute.xlu0 %632
    %634 = vrot.lane.b32.xlu0 %v146, 124
    %v635 = vpop.permute.xlu0 %634
    %636 = vrot.lane.b32.xlu0 %v147, 124
    %v637 = vpop.permute.xlu0 %636
    %638 = vrot.lane.b32.xlu0 %v148, 124
    %v639 = vpop.permute.xlu0 %638
    %640 = vrot.lane.b32.xlu0 %v149, 124
    %v641 = vpop.permute.xlu0 %640
    %642 = vrot.lane.b32.xlu0 %v150, 124
    %v643 = vpop.permute.xlu0 %642
    %644 = vrot.lane.b32.xlu0 %v151, 124
    %v645 = vpop.permute.xlu0 %644
    %646 = vrot.lane.b32.xlu0 %v152, 124
    %v647 = vpop.permute.xlu0 %646
    %vm648 = vcmask 1014784
    %v649 = vsel %vm648, %v617, %v619
    %v650 = vsel %vm648, %v621, %v623
    %v651 = vsel %vm648, %v625, %v627
    %v652 = vsel %vm648, %v629, %v631
    %v653 = vsel %vm648, %v633, %v635
    %v654 = vsel %vm648, %v637, %v639
    %v655 = vsel %vm648, %v641, %v643
    %v656 = vsel %vm648, %v645, %v647
    %v666 = vsel %vm67, %v615, 0
    %668 = vmatprep.subr.mxu0 0.0
    %669 = vmatpush1.msra.mxu0 %v649
    %670 = vmatprep.subr.mxu0 0.0
    %671 = vmatpush1.msra.mxu0 %v650
    %672 = vmatprep.subr.mxu0 0.0
    %673 = vmatpush1.msra.mxu0 %v651
    %674 = vmatprep.subr.mxu0 0.0
    %675 = vmatpush1.msra.mxu0 %v652
    %676 = vmatprep.subr.mxu0 0.0
    %677 = vmatpush1.msra.mxu0 %v653
    %678 = vmatprep.subr.mxu0 0.0
    %679 = vmatpush1.msra.mxu0 %v654
    %680 = vmatprep.subr.mxu0 0.0
    %681 = vmatpush1.msra.mxu0 %v655
    %682 = vmatprep.subr.mxu0 0.0
    %683 = vmatpush1.msra.mxu0 %v656
    %684 = vmatprep.subr.mxu0 0.0
    %685 = vmatpush1.msra.mxu0 0.0
    %686 = vmatprep.subr.mxu0 0.0
    %687 = vmatpush1.msra.mxu0 0.0
    %688 = vmatprep.subr.mxu0 0.0
    %689 = vmatpush1.msra.mxu0 0.0
    %690 = vmatprep.subr.mxu0 0.0
    %691 = vmatpush1.msra.mxu0 0.0
    %692 = vmatprep.subr.mxu0 0.0
    %693 = vmatpush1.msra.mxu0 0.0
    %694 = vmatprep.subr.mxu0 0.0
    %695 = vmatpush1.msra.mxu0 0.0
    %696 = vmatprep.subr.mxu0 0.0
    %697 = vmatpush1.msra.mxu0 0.0
    %698 = vmatprep.subr.mxu0 0.0
    %699 = vmatpush1.msra.mxu0 0.0
    %700 = vmatprep.subr.mxu0 0.0
    %701 = vmatpush1.msra.mxu0 0.0
    %702 = vmatprep.subr.mxu0 0.0
    %703 = vmatpush1.msra.mxu0 0.0
    %704 = vmatprep.subr.mxu0 0.0
    %705 = vmatpush1.msra.mxu0 0.0
    %706 = vmatprep.subr.mxu0 0.0
    %707 = vmatpush1.msra.mxu0 0.0
    %708 = vmatprep.subr.mxu0 0.0
    %709 = vmatpush1.msra.mxu0 0.0
    %710 = vmatprep.subr.mxu0 0.0
    %711 = vmatpush1.msra.mxu0 0.0
    %712 = vmatprep.subr.mxu0 0.0
    %713 = vmatpush1.msra.mxu0 0.0
    %714 = vmatprep.subr.mxu0 0.0
    %715 = vmatpush1.msra.mxu0 0.0
    %716 = vmatprep.subr.mxu0 0.0
    %717 = vmatpush1.msra.mxu0 0.0
    %718 = vmatprep.subr.mxu0 0.0
    %719 = vmatpush1.msra.mxu0 0.0
    %720 = vmatprep.subr.mxu0 0.0
    %721 = vmatpush1.msra.mxu0 0.0
    %722 = vmatprep.subr.mxu0 0.0
    %723 = vmatpush1.msra.mxu0 0.0
    %724 = vmatprep.subr.mxu0 0.0
    %725 = vmatpush1.msra.mxu0 0.0
    %726 = vmatprep.subr.mxu0 0.0
    %727 = vmatpush1.msra.mxu0 0.0
    %728 = vmatprep.subr.mxu0 0.0
    %729 = vmatpush1.msra.mxu0 0.0
    %730 = vmatprep.subr.mxu0 0.0
    %731 = vmatpush1.msra.mxu0 0.0
    %732 = vmatprep.mubr.f32.mxu0 0.0
    %733 = vmatmul.mubr.f32.gmra.mrb[0].mxu0 %v666
    %v734 = vpop.f32.mrb[0].mxu0
    %v735 = vadd.f32 0.0, %v734
    %v736 = vpop.f32.mrb[0].mxu0
    %737 = vdwg.mxu0
    %v738 = vadd.f32 %v613, %v735
    %s739 = scalar_lea.vmem [#allocation6], 40
    %v740 = vld [vmem:[%s739] sm:$0xff]
    %741 = vrot.lane.b32.xlu0 %v137, 123
    %v742 = vpop.permute.xlu0 %741
    %743 = vrot.lane.b32.xlu0 %v138, 123
    %v744 = vpop.permute.xlu0 %743
    %745 = vrot.lane.b32.xlu0 %v139, 123
    %v746 = vpop.permute.xlu0 %745
    %747 = vrot.lane.b32.xlu0 %v140, 123
    %v748 = vpop.permute.xlu0 %747
    %749 = vrot.lane.b32.xlu0 %v141, 123
    %v750 = vpop.permute.xlu0 %749
    %751 = vrot.lane.b32.xlu0 %v142, 123
    %v752 = vpop.permute.xlu0 %751
    %753 = vrot.lane.b32.xlu0 %v143, 123
    %v754 = vpop.permute.xlu0 %753
    %755 = vrot.lane.b32.xlu0 %v144, 123
    %v756 = vpop.permute.xlu0 %755
    %757 = vrot.lane.b32.xlu0 %v145, 123
    %v758 = vpop.permute.xlu0 %757
    %759 = vrot.lane.b32.xlu0 %v146, 123
    %v760 = vpop.permute.xlu0 %759
    %761 = vrot.lane.b32.xlu0 %v147, 123
    %v762 = vpop.permute.xlu0 %761
    %763 = vrot.lane.b32.xlu0 %v148, 123
    %v764 = vpop.permute.xlu0 %763
    %765 = vrot.lane.b32.xlu0 %v149, 123
    %v766 = vpop.permute.xlu0 %765
    %767 = vrot.lane.b32.xlu0 %v150, 123
    %v768 = vpop.permute.xlu0 %767
    %769 = vrot.lane.b32.xlu0 %v151, 123
    %v770 = vpop.permute.xlu0 %769
    %771 = vrot.lane.b32.xlu0 %v152, 123
    %v772 = vpop.permute.xlu0 %771
    %vm773 = vcmask 1006592
    %v774 = vsel %vm773, %v742, %v744
    %v775 = vsel %vm773, %v746, %v748
    %v776 = vsel %vm773, %v750, %v752
    %v777 = vsel %vm773, %v754, %v756
    %v778 = vsel %vm773, %v758, %v760
    %v779 = vsel %vm773, %v762, %v764
    %v780 = vsel %vm773, %v766, %v768
    %v781 = vsel %vm773, %v770, %v772
    %v791 = vsel %vm67, %v740, 0
    %793 = vmatprep.subr.mxu0 0.0
    %794 = vmatpush1.msra.mxu0 %v774
    %795 = vmatprep.subr.mxu0 0.0
    %796 = vmatpush1.msra.mxu0 %v775
    %797 = vmatprep.subr.mxu0 0.0
    %798 = vmatpush1.msra.mxu0 %v776
    %799 = vmatprep.subr.mxu0 0.0
    %800 = vmatpush1.msra.mxu0 %v777
    %801 = vmatprep.subr.mxu0 0.0
    %802 = vmatpush1.msra.mxu0 %v778
    %803 = vmatprep.subr.mxu0 0.0
    %804 = vmatpush1.msra.mxu0 %v779
    %805 = vmatprep.subr.mxu0 0.0
    %806 = vmatpush1.msra.mxu0 %v780
    %807 = vmatprep.subr.mxu0 0.0
    %808 = vmatpush1.msra.mxu0 %v781
    %809 = vmatprep.subr.mxu0 0.0
    %810 = vmatpush1.msra.mxu0 0.0
    %811 = vmatprep.subr.mxu0 0.0
    %812 = vmatpush1.msra.mxu0 0.0
    %813 = vmatprep.subr.mxu0 0.0
    %814 = vmatpush1.msra.mxu0 0.0
    %815 = vmatprep.subr.mxu0 0.0
    %816 = vmatpush1.msra.mxu0 0.0
    %817 = vmatprep.subr.mxu0 0.0
    %818 = vmatpush1.msra.mxu0 0.0
    %819 = vmatprep.subr.mxu0 0.0
    %820 = vmatpush1.msra.mxu0 0.0
    %821 = vmatprep.subr.mxu0 0.0
    %822 = vmatpush1.msra.mxu0 0.0
    %823 = vmatprep.subr.mxu0 0.0
    %824 = vmatpush1.msra.mxu0 0.0
    %825 = vmatprep.subr.mxu0 0.0
    %826 = vmatpush1.msra.mxu0 0.0
    %827 = vmatprep.subr.mxu0 0.0
    %828 = vmatpush1.msra.mxu0 0.0
    %829 = vmatprep.subr.mxu0 0.0
    %830 = vmatpush1.msra.mxu0 0.0
    %831 = vmatprep.subr.mxu0 0.0
    %832 = vmatpush1.msra.mxu0 0.0
    %833 = vmatprep.subr.mxu0 0.0
    %834 = vmatpush1.msra.mxu0 0.0
    %835 = vmatprep.subr.mxu0 0.0
    %836 = vmatpush1.msra.mxu0 0.0
    %837 = vmatprep.subr.mxu0 0.0
    %838 = vmatpush1.msra.mxu0 0.0
    %839 = vmatprep.subr.mxu0 0.0
    %840 = vmatpush1.msra.mxu0 0.0
    %841 = vmatprep.subr.mxu0 0.0
    %842 = vmatpush1.msra.mxu0 0.0
    %843 = vmatprep.subr.mxu0 0.0
    %844 = vmatpush1.msra.mxu0 0.0
    %845 = vmatprep.subr.mxu0 0.0
    %846 = vmatpush1.msra.mxu0 0.0
    %847 = vmatprep.subr.mxu0 0.0
    %848 = vmatpush1.msra.mxu0 0.0
    %849 = vmatprep.subr.mxu0 0.0
    %850 = vmatpush1.msra.mxu0 0.0
    %851 = vmatprep.subr.mxu0 0.0
    %852 = vmatpush1.msra.mxu0 0.0
    %853 = vmatprep.subr.mxu0 0.0
    %854 = vmatpush1.msra.mxu0 0.0
    %855 = vmatprep.subr.mxu0 0.0
    %856 = vmatpush1.msra.mxu0 0.0
    %857 = vmatprep.mubr.f32.mxu0 0.0
    %858 = vmatmul.mubr.f32.gmra.mrb[0].mxu0 %v791
    %v859 = vpop.f32.mrb[0].mxu0
    %v860 = vadd.f32 0.0, %v859
    %v861 = vpop.f32.mrb[0].mxu0
    %862 = vdwg.mxu0
    %v863 = vadd.f32 %v738, %v860
    %s864 = scalar_lea.vmem [#allocation6], 48
    %v865 = vld [vmem:[%s864] sm:$0xff]
    %866 = vrot.lane.b32.xlu0 %v137, 122
    %v867 = vpop.permute.xlu0 %866
    %868 = vrot.lane.b32.xlu0 %v138, 122
    %v869 = vpop.permute.xlu0 %868
    %870 = vrot.lane.b32.xlu0 %v139, 122
    %v871 = vpop.permute.xlu0 %870
    %872 = vrot.lane.b32.xlu0 %v140, 122
    %v873 = vpop.permute.xlu0 %872
    %874 = vrot.lane.b32.xlu0 %v141, 122
    %v875 = vpop.permute.xlu0 %874
    %876 = vrot.lane.b32.xlu0 %v142, 122
    %v877 = vpop.permute.xlu0 %876
    %878 = vrot.lane.b32.xlu0 %v143, 122
    %v879 = vpop.permute.xlu0 %878
    %880 = vrot.lane.b32.xlu0 %v144, 122
    %v881 = vpop.permute.xlu0 %880
    %882 = vrot.lane.b32.xlu0 %v145, 122
    %v883 = vpop.permute.xlu0 %882
    %884 = vrot.lane.b32.xlu0 %v146, 122
    %v885 = vpop.permute.xlu0 %884
    %886 = vrot.lane.b32.xlu0 %v147, 122
    %v887 = vpop.permute.xlu0 %886
    %888 = vrot.lane.b32.xlu0 %v148, 122
    %v889 = vpop.permute.xlu0 %888
    %890 = vrot.lane.b32.xlu0 %v149, 122
    %v891 = vpop.permute.xlu0 %890
    %892 = vrot.lane.b32.xlu0 %v150, 122
    %v893 = vpop.permute.xlu0 %892
    %894 = vrot.lane.b32.xlu0 %v151, 122
    %v895 = vpop.permute.xlu0 %894
    %896 = vrot.lane.b32.xlu0 %v152, 122
    %v897 = vpop.permute.xlu0 %896
    %vm898 = vcmask 998400
    %v899 = vsel %vm898, %v867, %v869
    %v900 = vsel %vm898, %v871, %v873
    %v901 = vsel %vm898, %v875, %v877
    %v902 = vsel %vm898, %v879, %v881
    %v903 = vsel %vm898, %v883, %v885
    %v904 = vsel %vm898, %v887, %v889
    %v905 = vsel %vm898, %v891, %v893
    %v906 = vsel %vm898, %v895, %v897
    %v916 = vsel %vm67, %v865, 0
    %918 = vmatprep.subr.mxu0 0.0
    %919 = vmatpush1.msra.mxu0 %v899
    %920 = vmatprep.subr.mxu0 0.0
    %921 = vmatpush1.msra.mxu0 %v900
    %922 = vmatprep.subr.mxu0 0.0
    %923 = vmatpush1.msra.mxu0 %v901
    %924 = vmatprep.subr.mxu0 0.0
    %925 = vmatpush1.msra.mxu0 %v902
    %926 = vmatprep.subr.mxu0 0.0
    %927 = vmatpush1.msra.mxu0 %v903
    %928 = vmatprep.subr.mxu0 0.0
    %929 = vmatpush1.msra.mxu0 %v904
    %930 = vmatprep.subr.mxu0 0.0
    %931 = vmatpush1.msra.mxu0 %v905
    %932 = vmatprep.subr.mxu0 0.0
    %933 = vmatpush1.msra.mxu0 %v906
    %934 = vmatprep.subr.mxu0 0.0
    %935 = vmatpush1.msra.mxu0 0.0
    %936 = vmatprep.subr.mxu0 0.0
    %937 = vmatpush1.msra.mxu0 0.0
    %938 = vmatprep.subr.mxu0 0.0
    %939 = vmatpush1.msra.mxu0 0.0
    %940 = vmatprep.subr.mxu0 0.0
    %941 = vmatpush1.msra.mxu0 0.0
    %942 = vmatprep.subr.mxu0 0.0
    %943 = vmatpush1.msra.mxu0 0.0
    %944 = vmatprep.subr.mxu0 0.0
    %945 = vmatpush1.msra.mxu0 0.0
    %946 = vmatprep.subr.mxu0 0.0
    %947 = vmatpush1.msra.mxu0 0.0
    %948 = vmatprep.subr.mxu0 0.0
    %949 = vmatpush1.msra.mxu0 0.0
    %950 = vmatprep.subr.mxu0 0.0
    %951 = vmatpush1.msra.mxu0 0.0
    %952 = vmatprep.subr.mxu0 0.0
    %953 = vmatpush1.msra.mxu0 0.0
    %954 = vmatprep.subr.mxu0 0.0
    %955 = vmatpush1.msra.mxu0 0.0
    %956 = vmatprep.subr.mxu0 0.0
    %957 = vmatpush1.msra.mxu0 0.0
    %958 = vmatprep.subr.mxu0 0.0
    %959 = vmatpush1.msra.mxu0 0.0
    %960 = vmatprep.subr.mxu0 0.0
    %961 = vmatpush1.msra.mxu0 0.0
    %962 = vmatprep.subr.mxu0 0.0
    %963 = vmatpush1.msra.mxu0 0.0
    %964 = vmatprep.subr.mxu0 0.0
    %965 = vmatpush1.msra.mxu0 0.0
    %966 = vmatprep.subr.mxu0 0.0
    %967 = vmatpush1.msra.mxu0 0.0
    %968 = vmatprep.subr.mxu0 0.0
    %969 = vmatpush1.msra.mxu0 0.0
    %970 = vmatprep.subr.mxu0 0.0
    %971 = vmatpush1.msra.mxu0 0.0
    %972 = vmatprep.subr.mxu0 0.0
    %973 = vmatpush1.msra.mxu0 0.0
    %974 = vmatprep.subr.mxu0 0.0
    %975 = vmatpush1.msra.mxu0 0.0
    %976 = vmatprep.subr.mxu0 0.0
    %977 = vmatpush1.msra.mxu0 0.0
    %978 = vmatprep.subr.mxu0 0.0
    %979 = vmatpush1.msra.mxu0 0.0
    %980 = vmatprep.subr.mxu0 0.0
    %981 = vmatpush1.msra.mxu0 0.0
    %982 = vmatprep.mubr.f32.mxu0 0.0
    %983 = vmatmul.mubr.f32.gmra.mrb[0].mxu0 %v916
    %v984 = vpop.f32.mrb[0].mxu0
    %v985 = vadd.f32 0.0, %v984
    %v986 = vpop.f32.mrb[0].mxu0
    %987 = vdwg.mxu0
    %v988 = vadd.f32 %v863, %v985
    %s989 = scalar_lea.vmem [#allocation6], 56
    %v990 = vld [vmem:[%s989] sm:$0xff]
    %991 = vrot.lane.b32.xlu0 %v137, 121
    %v992 = vpop.permute.xlu0 %991
    %993 = vrot.lane.b32.xlu0 %v138, 121
    %v994 = vpop.permute.xlu0 %993
    %995 = vrot.lane.b32.xlu0 %v139, 121
    %v996 = vpop.permute.xlu0 %995
    %997 = vrot.lane.b32.xlu0 %v140, 121
    %v998 = vpop.permute.xlu0 %997
    %999 = vrot.lane.b32.xlu0 %v141, 121
    %v1000 = vpop.permute.xlu0 %999
    %1001 = vrot.lane.b32.xlu0 %v142, 121
    %v1002 = vpop.permute.xlu0 %1001
    %1003 = vrot.lane.b32.xlu0 %v143, 121
    %v1004 = vpop.permute.xlu0 %1003
    %1005 = vrot.lane.b32.xlu0 %v144, 121
    %v1006 = vpop.permute.xlu0 %1005
    %1007 = vrot.lane.b32.xlu0 %v145, 121
    %v1008 = vpop.permute.xlu0 %1007
    %1009 = vrot.lane.b32.xlu0 %v146, 121
    %v1010 = vpop.permute.xlu0 %1009
    %1011 = vrot.lane.b32.xlu0 %v147, 121
    %v1012 = vpop.permute.xlu0 %1011
    %1013 = vrot.lane.b32.xlu0 %v148, 121
    %v1014 = vpop.permute.xlu0 %1013
    %1015 = vrot.lane.b32.xlu0 %v149, 121
    %v1016 = vpop.permute.xlu0 %1015
    %1017 = vrot.lane.b32.xlu0 %v150, 121
    %v1018 = vpop.permute.xlu0 %1017
    %1019 = vrot.lane.b32.xlu0 %v151, 121
    %v1020 = vpop.permute.xlu0 %1019
    %1021 = vrot.lane.b32.xlu0 %v152, 121
    %v1022 = vpop.permute.xlu0 %1021
    %vm1023 = vcmask 990208
    %v1024 = vsel %vm1023, %v992, %v994
    %v1025 = vsel %vm1023, %v996, %v998
    %v1026 = vsel %vm1023, %v1000, %v1002
    %v1027 = vsel %vm1023, %v1004, %v1006
    %v1028 = vsel %vm1023, %v1008, %v1010
    %v1029 = vsel %vm1023, %v1012, %v1014
    %v1030 = vsel %vm1023, %v1016, %v1018
    %v1031 = vsel %vm1023, %v1020, %v1022
    %v1041 = vsel %vm67, %v990, 0
    %1043 = vmatprep.subr.mxu0 0.0
    %1044 = vmatpush1.msra.mxu0 %v1024
    %1045 = vmatprep.subr.mxu0 0.0
    %1046 = vmatpush1.msra.mxu0 %v1025
    %1047 = vmatprep.subr.mxu0 0.0
    %1048 = vmatpush1.msra.mxu0 %v1026
    %1049 = vmatprep.subr.mxu0 0.0
    %1050 = vmatpush1.msra.mxu0 %v1027
    %1051 = vmatprep.subr.mxu0 0.0
    %1052 = vmatpush1.msra.mxu0 %v1028
    %1053 = vmatprep.subr.mxu0 0.0
    %1054 = vmatpush1.msra.mxu0 %v1029
    %1055 = vmatprep.subr.mxu0 0.0
    %1056 = vmatpush1.msra.mxu0 %v1030
    %1057 = vmatprep.subr.mxu0 0.0
    %1058 = vmatpush1.msra.mxu0 %v1031
    %1059 = vmatprep.subr.mxu0 0.0
    %1060 = vmatpush1.msra.mxu0 0.0
    %1061 = vmatprep.subr.mxu0 0.0
    %1062 = vmatpush1.msra.mxu0 0.0
    %1063 = vmatprep.subr.mxu0 0.0
    %1064 = vmatpush1.msra.mxu0 0.0
    %1065 = vmatprep.subr.mxu0 0.0
    %1066 = vmatpush1.msra.mxu0 0.0
    %1067 = vmatprep.subr.mxu0 0.0
    %1068 = vmatpush1.msra.mxu0 0.0
    %1069 = vmatprep.subr.mxu0 0.0
    %1070 = vmatpush1.msra.mxu0 0.0
    %1071 = vmatprep.subr.mxu0 0.0
    %1072 = vmatpush1.msra.mxu0 0.0
    %1073 = vmatprep.subr.mxu0 0.0
    %1074 = vmatpush1.msra.mxu0 0.0
    %1075 = vmatprep.subr.mxu0 0.0
    %1076 = vmatpush1.msra.mxu0 0.0
    %1077 = vmatprep.subr.mxu0 0.0
    %1078 = vmatpush1.msra.mxu0 0.0
    %1079 = vmatprep.subr.mxu0 0.0
    %1080 = vmatpush1.msra.mxu0 0.0
    %1081 = vmatprep.subr.mxu0 0.0
    %1082 = vmatpush1.msra.mxu0 0.0
    %1083 = vmatprep.subr.mxu0 0.0
    %1084 = vmatpush1.msra.mxu0 0.0
    %1085 = vmatprep.subr.mxu0 0.0
    %1086 = vmatpush1.msra.mxu0 0.0
    %1087 = vmatprep.subr.mxu0 0.0
    %1088 = vmatpush1.msra.mxu0 0.0
    %1089 = vmatprep.subr.mxu0 0.0
    %1090 = vmatpush1.msra.mxu0 0.0
    %1091 = vmatprep.subr.mxu0 0.0
    %1092 = vmatpush1.msra.mxu0 0.0
    %1093 = vmatprep.subr.mxu0 0.0
    %1094 = vmatpush1.msra.mxu0 0.0
    %1095 = vmatprep.subr.mxu0 0.0
    %1096 = vmatpush1.msra.mxu0 0.0
    %1097 = vmatprep.subr.mxu0 0.0
    %1098 = vmatpush1.msra.mxu0 0.0
    %1099 = vmatprep.subr.mxu0 0.0
    %1100 = vmatpush1.msra.mxu0 0.0
    %1101 = vmatprep.subr.mxu0 0.0
    %1102 = vmatpush1.msra.mxu0 0.0
    %1103 = vmatprep.subr.mxu0 0.0
    %1104 = vmatpush1.msra.mxu0 0.0
    %1105 = vmatprep.subr.mxu0 0.0
    %1106 = vmatpush1.msra.mxu0 0.0
    %1107 = vmatprep.mubr.f32.mxu0 0.0
    %1108 = vmatmul.mubr.f32.gmra.mrb[0].mxu0 %v1041
    %v1109 = vpop.f32.mrb[0].mxu0
    %v1110 = vadd.f32 0.0, %v1109
    %v1111 = vpop.f32.mrb[0].mxu0
    %1112 = vdwg.mxu0
    %v1113 = vadd.f32 %v988, %v1110
    %s1114 = scalar_lea.vmem [#allocation6], 64
    %v1115 = vld [vmem:[%s1114] sm:$0xff]
    %1116 = vrot.lane.b32.xlu0 %v137, 120
    %v1117 = vpop.permute.xlu0 %1116
    %1118 = vrot.lane.b32.xlu0 %v138, 120
    %v1119 = vpop.permute.xlu0 %1118
    %1120 = vrot.lane.b32.xlu0 %v139, 120
    %v1121 = vpop.permute.xlu0 %1120
    %1122 = vrot.lane.b32.xlu0 %v140, 120
    %v1123 = vpop.permute.xlu0 %1122
    %1124 = vrot.lane.b32.xlu0 %v141, 120
    %v1125 = vpop.permute.xlu0 %1124
    %1126 = vrot.lane.b32.xlu0 %v142, 120
    %v1127 = vpop.permute.xlu0 %1126
    %1128 = vrot.lane.b32.xlu0 %v143, 120
    %v1129 = vpop.permute.xlu0 %1128
    %1130 = vrot.lane.b32.xlu0 %v144, 120
    %v1131 = vpop.permute.xlu0 %1130
    %1132 = vrot.lane.b32.xlu0 %v145, 120
    %v1133 = vpop.permute.xlu0 %1132
    %1134 = vrot.lane.b32.xlu0 %v146, 120
    %v1135 = vpop.permute.xlu0 %1134
    %1136 = vrot.lane.b32.xlu0 %v147, 120
    %v1137 = vpop.permute.xlu0 %1136
    %1138 = vrot.lane.b32.xlu0 %v148, 120
    %v1139 = vpop.permute.xlu0 %1138
    %1140 = vrot.lane.b32.xlu0 %v149, 120
    %v1141 = vpop.permute.xlu0 %1140
    %1142 = vrot.lane.b32.xlu0 %v150, 120
    %v1143 = vpop.permute.xlu0 %1142
    %1144 = vrot.lane.b32.xlu0 %v151, 120
    %v1145 = vpop.permute.xlu0 %1144
    %1146 = vrot.lane.b32.xlu0 %v152, 120
    %v1147 = vpop.permute.xlu0 %1146
    %vm1148 = vcmask 982016
    %v1149 = vsel %vm1148, %v1117, %v1119
    %v1150 = vsel %vm1148, %v1121, %v1123
    %v1151 = vsel %vm1148, %v1125, %v1127
    %v1152 = vsel %vm1148, %v1129, %v1131
    %v1153 = vsel %vm1148, %v1133, %v1135
    %v1154 = vsel %vm1148, %v1137, %v1139
    %v1155 = vsel %vm1148, %v1141, %v1143
    %v1156 = vsel %vm1148, %v1145, %v1147
    %v1166 = vsel %vm67, %v1115, 0
    %1168 = vmatprep.subr.mxu0 0.0
    %1169 = vmatpush1.msra.mxu0 %v1149
    %1170 = vmatprep.subr.mxu0 0.0
    %1171 = vmatpush1.msra.mxu0 %v1150
    %1172 = vmatprep.subr.mxu0 0.0
    %1173 = vmatpush1.msra.mxu0 %v1151
    %1174 = vmatprep.subr.mxu0 0.0
    %1175 = vmatpush1.msra.mxu0 %v1152
    %1176 = vmatprep.subr.mxu0 0.0
    %1177 = vmatpush1.msra.mxu0 %v1153
    %1178 = vmatprep.subr.mxu0 0.0
    %1179 = vmatpush1.msra.mxu0 %v1154
    %1180 = vmatprep.subr.mxu0 0.0
    %1181 = vmatpush1.msra.mxu0 %v1155
    %1182 = vmatprep.subr.mxu0 0.0
    %1183 = vmatpush1.msra.mxu0 %v1156
    %1184 = vmatprep.subr.mxu0 0.0
    %1185 = vmatpush1.msra.mxu0 0.0
    %1186 = vmatprep.subr.mxu0 0.0
    %1187 = vmatpush1.msra.mxu0 0.0
    %1188 = vmatprep.subr.mxu0 0.0
    %1189 = vmatpush1.msra.mxu0 0.0
    %1190 = vmatprep.subr.mxu0 0.0
    %1191 = vmatpush1.msra.mxu0 0.0
    %1192 = vmatprep.subr.mxu0 0.0
    %1193 = vmatpush1.msra.mxu0 0.0
    %1194 = vmatprep.subr.mxu0 0.0
    %1195 = vmatpush1.msra.mxu0 0.0
    %1196 = vmatprep.subr.mxu0 0.0
    %1197 = vmatpush1.msra.mxu0 0.0
    %1198 = vmatprep.subr.mxu0 0.0
    %1199 = vmatpush1.msra.mxu0 0.0
    %1200 = vmatprep.subr.mxu0 0.0
    %1201 = vmatpush1.msra.mxu0 0.0
    %1202 = vmatprep.subr.mxu0 0.0
    %1203 = vmatpush1.msra.mxu0 0.0
    %1204 = vmatprep.subr.mxu0 0.0
    %1205 = vmatpush1.msra.mxu0 0.0
    %1206 = vmatprep.subr.mxu0 0.0
    %1207 = vmatpush1.msra.mxu0 0.0
    %1208 = vmatprep.subr.mxu0 0.0
    %1209 = vmatpush1.msra.mxu0 0.0
    %1210 = vmatprep.subr.mxu0 0.0
    %1211 = vmatpush1.msra.mxu0 0.0
    %1212 = vmatprep.subr.mxu0 0.0
    %1213 = vmatpush1.msra.mxu0 0.0
    %1214 = vmatprep.subr.mxu0 0.0
    %1215 = vmatpush1.msra.mxu0 0.0
    %1216 = vmatprep.subr.mxu0 0.0
    %1217 = vmatpush1.msra.mxu0 0.0
    %1218 = vmatprep.subr.mxu0 0.0
    %1219 = vmatpush1.msra.mxu0 0.0
    %1220 = vmatprep.subr.mxu0 0.0
    %1221 = vmatpush1.msra.mxu0 0.0
    %1222 = vmatprep.subr.mxu0 0.0
    %1223 = vmatpush1.msra.mxu0 0.0
    %1224 = vmatprep.subr.mxu0 0.0
    %1225 = vmatpush1.msra.mxu0 0.0
    %1226 = vmatprep.subr.mxu0 0.0
    %1227 = vmatpush1.msra.mxu0 0.0
    %1228 = vmatprep.subr.mxu0 0.0
    %1229 = vmatpush1.msra.mxu0 0.0
    %1230 = vmatprep.subr.mxu0 0.0
    %1231 = vmatpush1.msra.mxu0 0.0
    %1232 = vmatprep.mubr.f32.mxu0 0.0
    %1233 = vmatmul.mubr.f32.gmra.mrb[0].mxu0 %v1166
    %v1234 = vpop.f32.mrb[0].mxu0
    %v1235 = vadd.f32 0.0, %v1234
    %v1236 = vpop.f32.mrb[0].mxu0
    %1237 = vdwg.mxu0
    %v1238 = vadd.f32 %v1113, %v1235
    %s1239 = scalar_lea.vmem [#allocation6], 72
    %v1240 = vld [vmem:[%s1239] sm:$0xff]
    %1241 = vrot.lane.b32.xlu0 %v137, 119
    %v1242 = vpop.permute.xlu0 %1241
    %1243 = vrot.lane.b32.xlu0 %v138, 119
    %v1244 = vpop.permute.xlu0 %1243
    %1245 = vrot.lane.b32.xlu0 %v139, 119
    %v1246 = vpop.permute.xlu0 %1245
    %1247 = vrot.lane.b32.xlu0 %v140, 119
    %v1248 = vpop.permute.xlu0 %1247
    %1249 = vrot.lane.b32.xlu0 %v141, 119
    %v1250 = vpop.permute.xlu0 %1249
    %1251 = vrot.lane.b32.xlu0 %v142, 119
    %v1252 = vpop.permute.xlu0 %1251
    %1253 = vrot.lane.b32.xlu0 %v143, 119
    %v1254 = vpop.permute.xlu0 %1253
    %1255 = vrot.lane.b32.xlu0 %v144, 119
    %v1256 = vpop.permute.xlu0 %1255
    %1257 = vrot.lane.b32.xlu0 %v145, 119
    %v1258 = vpop.permute.xlu0 %1257
    %1259 = vrot.lane.b32.xlu0 %v146, 119
    %v1260 = vpop.permute.xlu0 %1259
    %1261 = vrot.lane.b32.xlu0 %v147, 119
    %v1262 = vpop.permute.xlu0 %1261
    %1263 = vrot.lane.b32.xlu0 %v148, 119
    %v1264 = vpop.permute.xlu0 %1263
    %1265 = vrot.lane.b32.xlu0 %v149, 119
    %v1266 = vpop.permute.xlu0 %1265
    %1267 = vrot.lane.b32.xlu0 %v150, 119
    %v1268 = vpop.permute.xlu0 %1267
    %1269 = vrot.lane.b32.xlu0 %v151, 119
    %v1270 = vpop.permute.xlu0 %1269
    %1271 = vrot.lane.b32.xlu0 %v152, 119
    %v1272 = vpop.permute.xlu0 %1271
    %vm1273 = vcmask 973824
    %v1274 = vsel %vm1273, %v1242, %v1244
    %v1275 = vsel %vm1273, %v1246, %v1248
    %v1276 = vsel %vm1273, %v1250, %v1252
    %v1277 = vsel %vm1273, %v1254, %v1256
    %v1278 = vsel %vm1273, %v1258, %v1260
    %v1279 = vsel %vm1273, %v1262, %v1264
    %v1280 = vsel %vm1273, %v1266, %v1268
    %v1281 = vsel %vm1273, %v1270, %v1272
    %v1291 = vsel %vm67, %v1240, 0
    %1293 = vmatprep.subr.mxu0 0.0
    %1294 = vmatpush1.msra.mxu0 %v1274
    %1295 = vmatprep.subr.mxu0 0.0
    %1296 = vmatpush1.msra.mxu0 %v1275
    %1297 = vmatprep.subr.mxu0 0.0
    %1298 = vmatpush1.msra.mxu0 %v1276
    %1299 = vmatprep.subr.mxu0 0.0
    %1300 = vmatpush1.msra.mxu0 %v1277
    %1301 = vmatprep.subr.mxu0 0.0
    %1302 = vmatpush1.msra.mxu0 %v1278
    %1303 = vmatprep.subr.mxu0 0.0
    %1304 = vmatpush1.msra.mxu0 %v1279
    %1305 = vmatprep.subr.mxu0 0.0
    %1306 = vmatpush1.msra.mxu0 %v1280
    %1307 = vmatprep.subr.mxu0 0.0
    %1308 = vmatpush1.msra.mxu0 %v1281
    %1309 = vmatprep.subr.mxu0 0.0
    %1310 = vmatpush1.msra.mxu0 0.0
    %1311 = vmatprep.subr.mxu0 0.0
    %1312 = vmatpush1.msra.mxu0 0.0
    %1313 = vmatprep.subr.mxu0 0.0
    %1314 = vmatpush1.msra.mxu0 0.0
    %1315 = vmatprep.subr.mxu0 0.0
    %1316 = vmatpush1.msra.mxu0 0.0
    %1317 = vmatprep.subr.mxu0 0.0
    %1318 = vmatpush1.msra.mxu0 0.0
    %1319 = vmatprep.subr.mxu0 0.0
    %1320 = vmatpush1.msra.mxu0 0.0
    %1321 = vmatprep.subr.mxu0 0.0
    %1322 = vmatpush1.msra.mxu0 0.0
    %1323 = vmatprep.subr.mxu0 0.0
    %1324 = vmatpush1.msra.mxu0 0.0
    %1325 = vmatprep.subr.mxu0 0.0
    %1326 = vmatpush1.msra.mxu0 0.0
    %1327 = vmatprep.subr.mxu0 0.0
    %1328 = vmatpush1.msra.mxu0 0.0
    %1329 = vmatprep.subr.mxu0 0.0
    %1330 = vmatpush1.msra.mxu0 0.0
    %1331 = vmatprep.subr.mxu0 0.0
    %1332 = vmatpush1.msra.mxu0 0.0
    %1333 = vmatprep.subr.mxu0 0.0
    %1334 = vmatpush1.msra.mxu0 0.0
    %1335 = vmatprep.subr.mxu0 0.0
    %1336 = vmatpush1.msra.mxu0 0.0
    %1337 = vmatprep.subr.mxu0 0.0
    %1338 = vmatpush1.msra.mxu0 0.0
    %1339 = vmatprep.subr.mxu0 0.0
    %1340 = vmatpush1.msra.mxu0 0.0
    %1341 = vmatprep.subr.mxu0 0.0
    %1342 = vmatpush1.msra.mxu0 0.0
    %1343 = vmatprep.subr.mxu0 0.0
    %1344 = vmatpush1.msra.mxu0 0.0
    %1345 = vmatprep.subr.mxu0 0.0
    %1346 = vmatpush1.msra.mxu0 0.0
    %1347 = vmatprep.subr.mxu0 0.0
    %1348 = vmatpush1.msra.mxu0 0.0
    %1349 = vmatprep.subr.mxu0 0.0
    %1350 = vmatpush1.msra.mxu0 0.0
    %1351 = vmatprep.subr.mxu0 0.0
    %1352 = vmatpush1.msra.mxu0 0.0
    %1353 = vmatprep.subr.mxu0 0.0
    %1354 = vmatpush1.msra.mxu0 0.0
    %1355 = vmatprep.subr.mxu0 0.0
    %1356 = vmatpush1.msra.mxu0 0.0
    %1357 = vmatprep.mubr.f32.mxu0 0.0
    %1358 = vmatmul.mubr.f32.gmra.mrb[0].mxu0 %v1291
    %v1359 = vpop.f32.mrb[0].mxu0
    %v1360 = vadd.f32 0.0, %v1359
    %v1361 = vpop.f32.mrb[0].mxu0
    %1362 = vdwg.mxu0
    %v1363 = vadd.f32 %v1238, %v1360
    %s1364 = scalar_lea.vmem [#allocation6], 80
    %v1365 = vld [vmem:[%s1364] sm:$0xff]
    %1366 = vrot.lane.b32.xlu0 %v137, 118
    %v1367 = vpop.permute.xlu0 %1366
    %1368 = vrot.lane.b32.xlu0 %v138, 118
    %v1369 = vpop.permute.xlu0 %1368
    %1370 = vrot.lane.b32.xlu0 %v139, 118
    %v1371 = vpop.permute.xlu0 %1370
    %1372 = vrot.lane.b32.xlu0 %v140, 118
    %v1373 = vpop.permute.xlu0 %1372
    %1374 = vrot.lane.b32.xlu0 %v141, 118
    %v1375 = vpop.permute.xlu0 %1374
    %1376 = vrot.lane.b32.xlu0 %v142, 118
    %v1377 = vpop.permute.xlu0 %1376
    %1378 = vrot.lane.b32.xlu0 %v143, 118
    %v1379 = vpop.permute.xlu0 %1378
    %1380 = vrot.lane.b32.xlu0 %v144, 118
    %v1381 = vpop.permute.xlu0 %1380
    %1382 = vrot.lane.b32.xlu0 %v145, 118
    %v1383 = vpop.permute.xlu0 %1382
    %1384 = vrot.lane.b32.xlu0 %v146, 118
    %v1385 = vpop.permute.xlu0 %1384
    %1386 = vrot.lane.b32.xlu0 %v147, 118
    %v1387 = vpop.permute.xlu0 %1386
    %1388 = vrot.lane.b32.xlu0 %v148, 118
    %v1389 = vpop.permute.xlu0 %1388
    %1390 = vrot.lane.b32.xlu0 %v149, 118
    %v1391 = vpop.permute.xlu0 %1390
    %1392 = vrot.lane.b32.xlu0 %v150, 118
    %v1393 = vpop.permute.xlu0 %1392
    %1394 = vrot.lane.b32.xlu0 %v151, 118
    %v1395 = vpop.permute.xlu0 %1394
    %1396 = vrot.lane.b32.xlu0 %v152, 118
    %v1397 = vpop.permute.xlu0 %1396
    %vm1398 = vcmask 965632
    %v1399 = vsel %vm1398, %v1367, %v1369
    %v1400 = vsel %vm1398, %v1371, %v1373
    %v1401 = vsel %vm1398, %v1375, %v1377
    %v1402 = vsel %vm1398, %v1379, %v1381
    %v1403 = vsel %vm1398, %v1383, %v1385
    %v1404 = vsel %vm1398, %v1387, %v1389
    %v1405 = vsel %vm1398, %v1391, %v1393
    %v1406 = vsel %vm1398, %v1395, %v1397
    %v1416 = vsel %vm67, %v1365, 0
    %1418 = vmatprep.subr.mxu0 0.0
    %1419 = vmatpush1.msra.mxu0 %v1399
    %1420 = vmatprep.subr.mxu0 0.0
    %1421 = vmatpush1.msra.mxu0 %v1400
    %1422 = vmatprep.subr.mxu0 0.0
    %1423 = vmatpush1.msra.mxu0 %v1401
    %1424 = vmatprep.subr.mxu0 0.0
    %1425 = vmatpush1.msra.mxu0 %v1402
    %1426 = vmatprep.subr.mxu0 0.0
    %1427 = vmatpush1.msra.mxu0 %v1403
    %1428 = vmatprep.subr.mxu0 0.0
    %1429 = vmatpush1.msra.mxu0 %v1404
    %1430 = vmatprep.subr.mxu0 0.0
    %1431 = vmatpush1.msra.mxu0 %v1405
    %1432 = vmatprep.subr.mxu0 0.0
    %1433 = vmatpush1.msra.mxu0 %v1406
    %1434 = vmatprep.subr.mxu0 0.0
    %1435 = vmatpush1.msra.mxu0 0.0
    %1436 = vmatprep.subr.mxu0 0.0
    %1437 = vmatpush1.msra.mxu0 0.0
    %1438 = vmatprep.subr.mxu0 0.0
    %1439 = vmatpush1.msra.mxu0 0.0
    %1440 = vmatprep.subr.mxu0 0.0
    %1441 = vmatpush1.msra.mxu0 0.0
    %1442 = vmatprep.subr.mxu0 0.0
    %1443 = vmatpush1.msra.mxu0 0.0
    %1444 = vmatprep.subr.mxu0 0.0
    %1445 = vmatpush1.msra.mxu0 0.0
    %1446 = vmatprep.subr.mxu0 0.0
    %1447 = vmatpush1.msra.mxu0 0.0
    %1448 = vmatprep.subr.mxu0 0.0
    %1449 = vmatpush1.msra.mxu0 0.0
    %1450 = vmatprep.subr.mxu0 0.0
    %1451 = vmatpush1.msra.mxu0 0.0
    %1452 = vmatprep.subr.mxu0 0.0
    %1453 = vmatpush1.msra.mxu0 0.0
    %1454 = vmatprep.subr.mxu0 0.0
    %1455 = vmatpush1.msra.mxu0 0.0
    %1456 = vmatprep.subr.mxu0 0.0
    %1457 = vmatpush1.msra.mxu0 0.0
    %1458 = vmatprep.subr.mxu0 0.0
    %1459 = vmatpush1.msra.mxu0 0.0
    %1460 = vmatprep.subr.mxu0 0.0
    %1461 = vmatpush1.msra.mxu0 0.0
    %1462 = vmatprep.subr.mxu0 0.0
    %1463 = vmatpush1.msra.mxu0 0.0
    %1464 = vmatprep.subr.mxu0 0.0
    %1465 = vmatpush1.msra.mxu0 0.0
    %1466 = vmatprep.subr.mxu0 0.0
    %1467 = vmatpush1.msra.mxu0 0.0
    %1468 = vmatprep.subr.mxu0 0.0
    %1469 = vmatpush1.msra.mxu0 0.0
    %1470 = vmatprep.subr.mxu0 0.0
    %1471 = vmatpush1.msra.mxu0 0.0
    %1472 = vmatprep.subr.mxu0 0.0
    %1473 = vmatpush1.msra.mxu0 0.0
    %1474 = vmatprep.subr.mxu0 0.0
    %1475 = vmatpush1.msra.mxu0 0.0
    %1476 = vmatprep.subr.mxu0 0.0
    %1477 = vmatpush1.msra.mxu0 0.0
    %1478 = vmatprep.subr.mxu0 0.0
    %1479 = vmatpush1.msra.mxu0 0.0
    %1480 = vmatprep.subr.mxu0 0.0
    %1481 = vmatpush1.msra.mxu0 0.0
    %1482 = vmatprep.mubr.f32.mxu0 0.0
    %1483 = vmatmul.mubr.f32.gmra.mrb[0].mxu0 %v1416
    %v1484 = vpop.f32.mrb[0].mxu0
    %v1485 = vadd.f32 0.0, %v1484
    %v1486 = vpop.f32.mrb[0].mxu0
    %1487 = vdwg.mxu0
    %v1488 = vadd.f32 %v1363, %v1485
    %s1489 = scalar_lea.vmem [#allocation6], 88
    %v1490 = vld [vmem:[%s1489] sm:$0xff]
    %1491 = vrot.lane.b32.xlu0 %v137, 117
    %v1492 = vpop.permute.xlu0 %1491
    %1493 = vrot.lane.b32.xlu0 %v138, 117
    %v1494 = vpop.permute.xlu0 %1493
    %1495 = vrot.lane.b32.xlu0 %v139, 117
    %v1496 = vpop.permute.xlu0 %1495
    %1497 = vrot.lane.b32.xlu0 %v140, 117
    %v1498 = vpop.permute.xlu0 %1497
    %1499 = vrot.lane.b32.xlu0 %v141, 117
    %v1500 = vpop.permute.xlu0 %1499
    %1501 = vrot.lane.b32.xlu0 %v142, 117
    %v1502 = vpop.permute.xlu0 %1501
    %1503 = vrot.lane.b32.xlu0 %v143, 117
    %v1504 = vpop.permute.xlu0 %1503
    %1505 = vrot.lane.b32.xlu0 %v144, 117
    %v1506 = vpop.permute.xlu0 %1505
    %1507 = vrot.lane.b32.xlu0 %v145, 117
    %v1508 = vpop.permute.xlu0 %1507
    %1509 = vrot.lane.b32.xlu0 %v146, 117
    %v1510 = vpop.permute.xlu0 %1509
    %1511 = vrot.lane.b32.xlu0 %v147, 117
    %v1512 = vpop.permute.xlu0 %1511
    %1513 = vrot.lane.b32.xlu0 %v148, 117
    %v1514 = vpop.permute.xlu0 %1513
    %1515 = vrot.lane.b32.xlu0 %v149, 117
    %v1516 = vpop.permute.xlu0 %1515
    %1517 = vrot.lane.b32.xlu0 %v150, 117
    %v1518 = vpop.permute.xlu0 %1517
    %1519 = vrot.lane.b32.xlu0 %v151, 117
    %v1520 = vpop.permute.xlu0 %1519
    %1521 = vrot.lane.b32.xlu0 %v152, 117
    %v1522 = vpop.permute.xlu0 %1521
    %vm1523 = vcmask 957440
    %v1524 = vsel %vm1523, %v1492, %v1494
    %v1525 = vsel %vm1523, %v1496, %v1498
    %v1526 = vsel %vm1523, %v1500, %v1502
    %v1527 = vsel %vm1523, %v1504, %v1506
    %v1528 = vsel %vm1523, %v1508, %v1510
    %v1529 = vsel %vm1523, %v1512, %v1514
    %v1530 = vsel %vm1523, %v1516, %v1518
    %v1531 = vsel %vm1523, %v1520, %v1522
    %v1541 = vsel %vm67, %v1490, 0
    %1543 = vmatprep.subr.mxu0 0.0
    %1544 = vmatpush1.msra.mxu0 %v1524
    %1545 = vmatprep.subr.mxu0 0.0
    %1546 = vmatpush1.msra.mxu0 %v1525
    %1547 = vmatprep.subr.mxu0 0.0
    %1548 = vmatpush1.msra.mxu0 %v1526
    %1549 = vmatprep.subr.mxu0 0.0
    %1550 = vmatpush1.msra.mxu0 %v1527
    %1551 = vmatprep.subr.mxu0 0.0
    %1552 = vmatpush1.msra.mxu0 %v1528
    %1553 = vmatprep.subr.mxu0 0.0
    %1554 = vmatpush1.msra.mxu0 %v1529
    %1555 = vmatprep.subr.mxu0 0.0
    %1556 = vmatpush1.msra.mxu0 %v1530
    %1557 = vmatprep.subr.mxu0 0.0
    %1558 = vmatpush1.msra.mxu0 %v1531
    %1559 = vmatprep.subr.mxu0 0.0
    %1560 = vmatpush1.msra.mxu0 0.0
    %1561 = vmatprep.subr.mxu0 0.0
    %1562 = vmatpush1.msra.mxu0 0.0
    %1563 = vmatprep.subr.mxu0 0.0
    %1564 = vmatpush1.msra.mxu0 0.0
    %1565 = vmatprep.subr.mxu0 0.0
    %1566 = vmatpush1.msra.mxu0 0.0
    %1567 = vmatprep.subr.mxu0 0.0
    %1568 = vmatpush1.msra.mxu0 0.0
    %1569 = vmatprep.subr.mxu0 0.0
    %1570 = vmatpush1.msra.mxu0 0.0
    %1571 = vmatprep.subr.mxu0 0.0
    %1572 = vmatpush1.msra.mxu0 0.0
    %1573 = vmatprep.subr.mxu0 0.0
    %1574 = vmatpush1.msra.mxu0 0.0
    %1575 = vmatprep.subr.mxu0 0.0
    %1576 = vmatpush1.msra.mxu0 0.0
    %1577 = vmatprep.subr.mxu0 0.0
    %1578 = vmatpush1.msra.mxu0 0.0
    %1579 = vmatprep.subr.mxu0 0.0
    %1580 = vmatpush1.msra.mxu0 0.0
    %1581 = vmatprep.subr.mxu0 0.0
    %1582 = vmatpush1.msra.mxu0 0.0
    %1583 = vmatprep.subr.mxu0 0.0
    %1584 = vmatpush1.msra.mxu0 0.0
    %1585 = vmatprep.subr.mxu0 0.0
    %1586 = vmatpush1.msra.mxu0 0.0
    %1587 = vmatprep.subr.mxu0 0.0
    %1588 = vmatpush1.msra.mxu0 0.0
    %1589 = vmatprep.subr.mxu0 0.0
    %1590 = vmatpush1.msra.mxu0 0.0
    %1591 = vmatprep.subr.mxu0 0.0
    %1592 = vmatpush1.msra.mxu0 0.0
    %1593 = vmatprep.subr.mxu0 0.0
    %1594 = vmatpush1.msra.mxu0 0.0
    %1595 = vmatprep.subr.mxu0 0.0
    %1596 = vmatpush1.msra.mxu0 0.0
    %1597 = vmatprep.subr.mxu0 0.0
    %1598 = vmatpush1.msra.mxu0 0.0
    %1599 = vmatprep.subr.mxu0 0.0
    %1600 = vmatpush1.msra.mxu0 0.0
    %1601 = vmatprep.subr.mxu0 0.0
    %1602 = vmatpush1.msra.mxu0 0.0
    %1603 = vmatprep.subr.mxu0 0.0
    %1604 = vmatpush1.msra.mxu0 0.0
    %1605 = vmatprep.subr.mxu0 0.0
    %1606 = vmatpush1.msra.mxu0 0.0
    %1607 = vmatprep.mubr.f32.mxu0 0.0
    %1608 = vmatmul.mubr.f32.gmra.mrb[0].mxu0 %v1541
    %v1609 = vpop.f32.mrb[0].mxu0
    %v1610 = vadd.f32 0.0, %v1609
    %v1611 = vpop.f32.mrb[0].mxu0
    %1612 = vdwg.mxu0
    %v1613 = vadd.f32 %v1488, %v1610
    %s1614 = scalar_lea.vmem [#allocation6], 96
    %v1615 = vld [vmem:[%s1614] sm:$0xff]
    %1616 = vrot.lane.b32.xlu0 %v137, 116
    %v1617 = vpop.permute.xlu0 %1616
    %1618 = vrot.lane.b32.xlu0 %v138, 116
    %v1619 = vpop.permute.xlu0 %1618
    %1620 = vrot.lane.b32.xlu0 %v139, 116
    %v1621 = vpop.permute.xlu0 %1620
    %1622 = vrot.lane.b32.xlu0 %v140, 116
    %v1623 = vpop.permute.xlu0 %1622
    %1624 = vrot.lane.b32.xlu0 %v141, 116
    %v1625 = vpop.permute.xlu0 %1624
    %1626 = vrot.lane.b32.xlu0 %v142, 116
    %v1627 = vpop.permute.xlu0 %1626
    %1628 = vrot.lane.b32.xlu0 %v143, 116
    %v1629 = vpop.permute.xlu0 %1628
    %1630 = vrot.lane.b32.xlu0 %v144, 116
    %v1631 = vpop.permute.xlu0 %1630
    %1632 = vrot.lane.b32.xlu0 %v145, 116
    %v1633 = vpop.permute.xlu0 %1632
    %1634 = vrot.lane.b32.xlu0 %v146, 116
    %v1635 = vpop.permute.xlu0 %1634
    %1636 = vrot.lane.b32.xlu0 %v147, 116
    %v1637 = vpop.permute.xlu0 %1636
    %1638 = vrot.lane.b32.xlu0 %v148, 116
    %v1639 = vpop.permute.xlu0 %1638
    %1640 = vrot.lane.b32.xlu0 %v149, 116
    %v1641 = vpop.permute.xlu0 %1640
    %1642 = vrot.lane.b32.xlu0 %v150, 116
    %v1643 = vpop.permute.xlu0 %1642
    %1644 = vrot.lane.b32.xlu0 %v151, 116
    %v1645 = vpop.permute.xlu0 %1644
    %1646 = vrot.lane.b32.xlu0 %v152, 116
    %v1647 = vpop.permute.xlu0 %1646
    %vm1648 = vcmask 949248
    %v1649 = vsel %vm1648, %v1617, %v1619
    %v1650 = vsel %vm1648, %v1621, %v1623
    %v1651 = vsel %vm1648, %v1625, %v1627
    %v1652 = vsel %vm1648, %v1629, %v1631
    %v1653 = vsel %vm1648, %v1633, %v1635
    %v1654 = vsel %vm1648, %v1637, %v1639
    %v1655 = vsel %vm1648, %v1641, %v1643
    %v1656 = vsel %vm1648, %v1645, %v1647
    %v1666 = vsel %vm67, %v1615, 0
    %1668 = vmatprep.subr.mxu0 0.0
    %1669 = vmatpush1.msra.mxu0 %v1649
    %1670 = vmatprep.subr.mxu0 0.0
    %1671 = vmatpush1.msra.mxu0 %v1650
    %1672 = vmatprep.subr.mxu0 0.0
    %1673 = vmatpush1.msra.mxu0 %v1651
    %1674 = vmatprep.subr.mxu0 0.0
    %1675 = vmatpush1.msra.mxu0 %v1652
    %1676 = vmatprep.subr.mxu0 0.0
    %1677 = vmatpush1.msra.mxu0 %v1653
    %1678 = vmatprep.subr.mxu0 0.0
    %1679 = vmatpush1.msra.mxu0 %v1654
    %1680 = vmatprep.subr.mxu0 0.0
    %1681 = vmatpush1.msra.mxu0 %v1655
    %1682 = vmatprep.subr.mxu0 0.0
    %1683 = vmatpush1.msra.mxu0 %v1656
    %1684 = vmatprep.subr.mxu0 0.0
    %1685 = vmatpush1.msra.mxu0 0.0
    %1686 = vmatprep.subr.mxu0 0.0
    %1687 = vmatpush1.msra.mxu0 0.0
    %1688 = vmatprep.subr.mxu0 0.0
    %1689 = vmatpush1.msra.mxu0 0.0
    %1690 = vmatprep.subr.mxu0 0.0
    %1691 = vmatpush1.msra.mxu0 0.0
    %1692 = vmatprep.subr.mxu0 0.0
    %1693 = vmatpush1.msra.mxu0 0.0
    %1694 = vmatprep.subr.mxu0 0.0
    %1695 = vmatpush1.msra.mxu0 0.0
    %1696 = vmatprep.subr.mxu0 0.0
    %1697 = vmatpush1.msra.mxu0 0.0
    %1698 = vmatprep.subr.mxu0 0.0
    %1699 = vmatpush1.msra.mxu0 0.0
    %1700 = vmatprep.subr.mxu0 0.0
    %1701 = vmatpush1.msra.mxu0 0.0
    %1702 = vmatprep.subr.mxu0 0.0
    %1703 = vmatpush1.msra.mxu0 0.0
    %1704 = vmatprep.subr.mxu0 0.0
    %1705 = vmatpush1.msra.mxu0 0.0
    %1706 = vmatprep.subr.mxu0 0.0
    %1707 = vmatpush1.msra.mxu0 0.0
    %1708 = vmatprep.subr.mxu0 0.0
    %1709 = vmatpush1.msra.mxu0 0.0
    %1710 = vmatprep.subr.mxu0 0.0
    %1711 = vmatpush1.msra.mxu0 0.0
    %1712 = vmatprep.subr.mxu0 0.0
    %1713 = vmatpush1.msra.mxu0 0.0
    %1714 = vmatprep.subr.mxu0 0.0
    %1715 = vmatpush1.msra.mxu0 0.0
    %1716 = vmatprep.subr.mxu0 0.0
    %1717 = vmatpush1.msra.mxu0 0.0
    %1718 = vmatprep.subr.mxu0 0.0
    %1719 = vmatpush1.msra.mxu0 0.0
    %1720 = vmatprep.subr.mxu0 0.0
    %1721 = vmatpush1.msra.mxu0 0.0
    %1722 = vmatprep.subr.mxu0 0.0
    %1723 = vmatpush1.msra.mxu0 0.0
    %1724 = vmatprep.subr.mxu0 0.0
    %1725 = vmatpush1.msra.mxu0 0.0
    %1726 = vmatprep.subr.mxu0 0.0
    %1727 = vmatpush1.msra.mxu0 0.0
    %1728 = vmatprep.subr.mxu0 0.0
    %1729 = vmatpush1.msra.mxu0 0.0
    %1730 = vmatprep.subr.mxu0 0.0
    %1731 = vmatpush1.msra.mxu0 0.0
    %1732 = vmatprep.mubr.f32.mxu0 0.0
    %1733 = vmatmul.mubr.f32.gmra.mrb[0].mxu0 %v1666
    %v1734 = vpop.f32.mrb[0].mxu0
    %v1735 = vadd.f32 0.0, %v1734
    %v1736 = vpop.f32.mrb[0].mxu0
    %1737 = vdwg.mxu0
    %v1738 = vadd.f32 %v1613, %v1735
    %s1739 = scalar_lea.vmem [#allocation6], 104
    %v1740 = vld [vmem:[%s1739] sm:$0xff]
    %1741 = vrot.lane.b32.xlu0 %v137, 115
    %v1742 = vpop.permute.xlu0 %1741
    %1743 = vrot.lane.b32.xlu0 %v138, 115
    %v1744 = vpop.permute.xlu0 %1743
    %1745 = vrot.lane.b32.xlu0 %v139, 115
    %v1746 = vpop.permute.xlu0 %1745
    %1747 = vrot.lane.b32.xlu0 %v140, 115
    %v1748 = vpop.permute.xlu0 %1747
    %1749 = vrot.lane.b32.xlu0 %v141, 115
    %v1750 = vpop.permute.xlu0 %1749
    %1751 = vrot.lane.b32.xlu0 %v142, 115
    %v1752 = vpop.permute.xlu0 %1751
    %1753 = vrot.lane.b32.xlu0 %v143, 115
    %v1754 = vpop.permute.xlu0 %1753
    %1755 = vrot.lane.b32.xlu0 %v144, 115
    %v1756 = vpop.permute.xlu0 %1755
    %1757 = vrot.lane.b32.xlu0 %v145, 115
    %v1758 = vpop.permute.xlu0 %1757
    %1759 = vrot.lane.b32.xlu0 %v146, 115
    %v1760 = vpop.permute.xlu0 %1759
    %1761 = vrot.lane.b32.xlu0 %v147, 115
    %v1762 = vpop.permute.xlu0 %1761
    %1763 = vrot.lane.b32.xlu0 %v148, 115
    %v1764 = vpop.permute.xlu0 %1763
    %1765 = vrot.lane.b32.xlu0 %v149, 115
    %v1766 = vpop.permute.xlu0 %1765
    %1767 = vrot.lane.b32.xlu0 %v150, 115
    %v1768 = vpop.permute.xlu0 %1767
    %1769 = vrot.lane.b32.xlu0 %v151, 115
    %v1770 = vpop.permute.xlu0 %1769
    %1771 = vrot.lane.b32.xlu0 %v152, 115
    %v1772 = vpop.permute.xlu0 %1771
    %vm1773 = vcmask 941056
    %v1774 = vsel %vm1773, %v1742, %v1744
    %v1775 = vsel %vm1773, %v1746, %v1748
    %v1776 = vsel %vm1773, %v1750, %v1752
    %v1777 = vsel %vm1773, %v1754, %v1756
    %v1778 = vsel %vm1773, %v1758, %v1760
    %v1779 = vsel %vm1773, %v1762, %v1764
    %v1780 = vsel %vm1773, %v1766, %v1768
    %v1781 = vsel %vm1773, %v1770, %v1772
    %v1791 = vsel %vm67, %v1740, 0
    %1793 = vmatprep.subr.mxu0 0.0
    %1794 = vmatpush1.msra.mxu0 %v1774
    %1795 = vmatprep.subr.mxu0 0.0
    %1796 = vmatpush1.msra.mxu0 %v1775
    %1797 = vmatprep.subr.mxu0 0.0
    %1798 = vmatpush1.msra.mxu0 %v1776
    %1799 = vmatprep.subr.mxu0 0.0
    %1800 = vmatpush1.msra.mxu0 %v1777
    %1801 = vmatprep.subr.mxu0 0.0
    %1802 = vmatpush1.msra.mxu0 %v1778
    %1803 = vmatprep.subr.mxu0 0.0
    %1804 = vmatpush1.msra.mxu0 %v1779
    %1805 = vmatprep.subr.mxu0 0.0
    %1806 = vmatpush1.msra.mxu0 %v1780
    %1807 = vmatprep.subr.mxu0 0.0
    %1808 = vmatpush1.msra.mxu0 %v1781
    %1809 = vmatprep.subr.mxu0 0.0
    %1810 = vmatpush1.msra.mxu0 0.0
    %1811 = vmatprep.subr.mxu0 0.0
    %1812 = vmatpush1.msra.mxu0 0.0
    %1813 = vmatprep.subr.mxu0 0.0
    %1814 = vmatpush1.msra.mxu0 0.0
    %1815 = vmatprep.subr.mxu0 0.0
    %1816 = vmatpush1.msra.mxu0 0.0
    %1817 = vmatprep.subr.mxu0 0.0
    %1818 = vmatpush1.msra.mxu0 0.0
    %1819 = vmatprep.subr.mxu0 0.0
    %1820 = vmatpush1.msra.mxu0 0.0
    %1821 = vmatprep.subr.mxu0 0.0
    %1822 = vmatpush1.msra.mxu0 0.0
    %1823 = vmatprep.subr.mxu0 0.0
    %1824 = vmatpush1.msra.mxu0 0.0
    %1825 = vmatprep.subr.mxu0 0.0
    %1826 = vmatpush1.msra.mxu0 0.0
    %1827 = vmatprep.subr.mxu0 0.0
    %1828 = vmatpush1.msra.mxu0 0.0
    %1829 = vmatprep.subr.mxu0 0.0
    %1830 = vmatpush1.msra.mxu0 0.0
    %1831 = vmatprep.subr.mxu0 0.0
    %1832 = vmatpush1.msra.mxu0 0.0
    %1833 = vmatprep.subr.mxu0 0.0
    %1834 = vmatpush1.msra.mxu0 0.0
    %1835 = vmatprep.subr.mxu0 0.0
    %1836 = vmatpush1.msra.mxu0 0.0
    %1837 = vmatprep.subr.mxu0 0.0
    %1838 = vmatpush1.msra.mxu0 0.0
    %1839 = vmatprep.subr.mxu0 0.0
    %1840 = vmatpush1.msra.mxu0 0.0
    %1841 = vmatprep.subr.mxu0 0.0
    %1842 = vmatpush1.msra.mxu0 0.0
    %1843 = vmatprep.subr.mxu0 0.0
    %1844 = vmatpush1.msra.mxu0 0.0
    %1845 = vmatprep.subr.mxu0 0.0
    %1846 = vmatpush1.msra.mxu0 0.0
    %1847 = vmatprep.subr.mxu0 0.0
    %1848 = vmatpush1.msra.mxu0 0.0
    %1849 = vmatprep.subr.mxu0 0.0
    %1850 = vmatpush1.msra.mxu0 0.0
    %1851 = vmatprep.subr.mxu0 0.0
    %1852 = vmatpush1.msra.mxu0 0.0
    %1853 = vmatprep.subr.mxu0 0.0
    %1854 = vmatpush1.msra.mxu0 0.0
    %1855 = vmatprep.subr.mxu0 0.0
    %1856 = vmatpush1.msra.mxu0 0.0
    %1857 = vmatprep.mubr.f32.mxu0 0.0
    %1858 = vmatmul.mubr.f32.gmra.mrb[0].mxu0 %v1791
    %v1859 = vpop.f32.mrb[0].mxu0
    %v1860 = vadd.f32 0.0, %v1859
    %v1861 = vpop.f32.mrb[0].mxu0
    %1862 = vdwg.mxu0
    %v1863 = vadd.f32 %v1738, %v1860
    %s1864 = scalar_lea.vmem [#allocation6], 112
    %v1865 = vld [vmem:[%s1864] sm:$0xff]
    %1866 = vrot.lane.b32.xlu0 %v137, 114
    %v1867 = vpop.permute.xlu0 %1866
    %1868 = vrot.lane.b32.xlu0 %v138, 114
    %v1869 = vpop.permute.xlu0 %1868
    %1870 = vrot.lane.b32.xlu0 %v139, 114
    %v1871 = vpop.permute.xlu0 %1870
    %1872 = vrot.lane.b32.xlu0 %v140, 114
    %v1873 = vpop.permute.xlu0 %1872
    %1874 = vrot.lane.b32.xlu0 %v141, 114
    %v1875 = vpop.permute.xlu0 %1874
    %1876 = vrot.lane.b32.xlu0 %v142, 114
    %v1877 = vpop.permute.xlu0 %1876
    %1878 = vrot.lane.b32.xlu0 %v143, 114
    %v1879 = vpop.permute.xlu0 %1878
    %1880 = vrot.lane.b32.xlu0 %v144, 114
    %v1881 = vpop.permute.xlu0 %1880
    %1882 = vrot.lane.b32.xlu0 %v145, 114
    %v1883 = vpop.permute.xlu0 %1882
    %1884 = vrot.lane.b32.xlu0 %v146, 114
    %v1885 = vpop.permute.xlu0 %1884
    %1886 = vrot.lane.b32.xlu0 %v147, 114
    %v1887 = vpop.permute.xlu0 %1886
    %1888 = vrot.lane.b32.xlu0 %v148, 114
    %v1889 = vpop.permute.xlu0 %1888
    %1890 = vrot.lane.b32.xlu0 %v149, 114
    %v1891 = vpop.permute.xlu0 %1890
    %1892 = vrot.lane.b32.xlu0 %v150, 114
    %v1893 = vpop.permute.xlu0 %1892
    %1894 = vrot.lane.b32.xlu0 %v151, 114
    %v1895 = vpop.permute.xlu0 %1894
    %1896 = vrot.lane.b32.xlu0 %v152, 114
    %v1897 = vpop.permute.xlu0 %1896
    %vm1898 = vcmask 932864
    %v1899 = vsel %vm1898, %v1867, %v1869
    %v1900 = vsel %vm1898, %v1871, %v1873
    %v1901 = vsel %vm1898, %v1875, %v1877
    %v1902 = vsel %vm1898, %v1879, %v1881
    %v1903 = vsel %vm1898, %v1883, %v1885
    %v1904 = vsel %vm1898, %v1887, %v1889
    %v1905 = vsel %vm1898, %v1891, %v1893
    %v1906 = vsel %vm1898, %v1895, %v1897
    %v1916 = vsel %vm67, %v1865, 0
    %1918 = vmatprep.subr.mxu0 0.0
    %1919 = vmatpush1.msra.mxu0 %v1899
    %1920 = vmatprep.subr.mxu0 0.0
    %1921 = vmatpush1.msra.mxu0 %v1900
    %1922 = vmatprep.subr.mxu0 0.0
    %1923 = vmatpush1.msra.mxu0 %v1901
    %1924 = vmatprep.subr.mxu0 0.0
    %1925 = vmatpush1.msra.mxu0 %v1902
    %1926 = vmatprep.subr.mxu0 0.0
    %1927 = vmatpush1.msra.mxu0 %v1903
    %1928 = vmatprep.subr.mxu0 0.0
    %1929 = vmatpush1.msra.mxu0 %v1904
    %1930 = vmatprep.subr.mxu0 0.0
    %1931 = vmatpush1.msra.mxu0 %v1905
    %1932 = vmatprep.subr.mxu0 0.0
    %1933 = vmatpush1.msra.mxu0 %v1906
    %1934 = vmatprep.subr.mxu0 0.0
    %1935 = vmatpush1.msra.mxu0 0.0
    %1936 = vmatprep.subr.mxu0 0.0
    %1937 = vmatpush1.msra.mxu0 0.0
    %1938 = vmatprep.subr.mxu0 0.0
    %1939 = vmatpush1.msra.mxu0 0.0
    %1940 = vmatprep.subr.mxu0 0.0
    %1941 = vmatpush1.msra.mxu0 0.0
    %1942 = vmatprep.subr.mxu0 0.0
    %1943 = vmatpush1.msra.mxu0 0.0
    %1944 = vmatprep.subr.mxu0 0.0
    %1945 = vmatpush1.msra.mxu0 0.0
    %1946 = vmatprep.subr.mxu0 0.0
    %1947 = vmatpush1.msra.mxu0 0.0
    %1948 = vmatprep.subr.mxu0 0.0
    %1949 = vmatpush1.msra.mxu0 0.0
    %1950 = vmatprep.subr.mxu0 0.0
    %1951 = vmatpush1.msra.mxu0 0.0
    %1952 = vmatprep.subr.mxu0 0.0
    %1953 = vmatpush1.msra.mxu0 0.0
    %1954 = vmatprep.subr.mxu0 0.0
    %1955 = vmatpush1.msra.mxu0 0.0
    %1956 = vmatprep.subr.mxu0 0.0
    %1957 = vmatpush1.msra.mxu0 0.0
    %1958 = vmatprep.subr.mxu0 0.0
    %1959 = vmatpush1.msra.mxu0 0.0
    %1960 = vmatprep.subr.mxu0 0.0
    %1961 = vmatpush1.msra.mxu0 0.0
    %1962 = vmatprep.subr.mxu0 0.0
    %1963 = vmatpush1.msra.mxu0 0.0
    %1964 = vmatprep.subr.mxu0 0.0
    %1965 = vmatpush1.msra.mxu0 0.0
    %1966 = vmatprep.subr.mxu0 0.0
    %1967 = vmatpush1.msra.mxu0 0.0
    %1968 = vmatprep.subr.mxu0 0.0
    %1969 = vmatpush1.msra.mxu0 0.0
    %1970 = vmatprep.subr.mxu0 0.0
    %1971 = vmatpush1.msra.mxu0 0.0
    %1972 = vmatprep.subr.mxu0 0.0
    %1973 = vmatpush1.msra.mxu0 0.0
    %1974 = vmatprep.subr.mxu0 0.0
    %1975 = vmatpush1.msra.mxu0 0.0
    %1976 = vmatprep.subr.mxu0 0.0
    %1977 = vmatpush1.msra.mxu0 0.0
    %1978 = vmatprep.subr.mxu0 0.0
    %1979 = vmatpush1.msra.mxu0 0.0
    %1980 = vmatprep.subr.mxu0 0.0
    %1981 = vmatpush1.msra.mxu0 0.0
    %1982 = vmatprep.mubr.f32.mxu0 0.0
    %1983 = vmatmul.mubr.f32.gmra.mrb[0].mxu0 %v1916
    %v1984 = vpop.f32.mrb[0].mxu0
    %v1985 = vadd.f32 0.0, %v1984
    %v1986 = vpop.f32.mrb[0].mxu0
    %1987 = vdwg.mxu0
    %v1988 = vadd.f32 %v1863, %v1985
    %s1989 = scalar_lea.vmem [#allocation6], 120
    %v1990 = vld [vmem:[%s1989] sm:$0xff]
    %1991 = vrot.lane.b32.xlu0 %v137, 113
    %v1992 = vpop.permute.xlu0 %1991
    %1993 = vrot.lane.b32.xlu0 %v138, 113
    %v1994 = vpop.permute.xlu0 %1993
    %1995 = vrot.lane.b32.xlu0 %v139, 113
    %v1996 = vpop.permute.xlu0 %1995
    %1997 = vrot.lane.b32.xlu0 %v140, 113
    %v1998 = vpop.permute.xlu0 %1997
    %1999 = vrot.lane.b32.xlu0 %v141, 113
    %v2000 = vpop.permute.xlu0 %1999
    %2001 = vrot.lane.b32.xlu0 %v142, 113
    %v2002 = vpop.permute.xlu0 %2001
    %2003 = vrot.lane.b32.xlu0 %v143, 113
    %v2004 = vpop.permute.xlu0 %2003
    %2005 = vrot.lane.b32.xlu0 %v144, 113
    %v2006 = vpop.permute.xlu0 %2005
    %2007 = vrot.lane.b32.xlu0 %v145, 113
    %v2008 = vpop.permute.xlu0 %2007
    %2009 = vrot.lane.b32.xlu0 %v146, 113
    %v2010 = vpop.permute.xlu0 %2009
    %2011 = vrot.lane.b32.xlu0 %v147, 113
    %v2012 = vpop.permute.xlu0 %2011
    %2013 = vrot.lane.b32.xlu0 %v148, 113
    %v2014 = vpop.permute.xlu0 %2013
    %2015 = vrot.lane.b32.xlu0 %v149, 113
    %v2016 = vpop.permute.xlu0 %2015
    %2017 = vrot.lane.b32.xlu0 %v150, 113
    %v2018 = vpop.permute.xlu0 %2017
    %2019 = vrot.lane.b32.xlu0 %v151, 113
    %v2020 = vpop.permute.xlu0 %2019
    %2021 = vrot.lane.b32.xlu0 %v152, 113
    %v2022 = vpop.permute.xlu0 %2021
    %vm2023 = vcmask 924672
    %v2024 = vsel %vm2023, %v1992, %v1994
    %v2025 = vsel %vm2023, %v1996, %v1998
    %v2026 = vsel %vm2023, %v2000, %v2002
    %v2027 = vsel %vm2023, %v2004, %v2006
    %v2028 = vsel %vm2023, %v2008, %v2010
    %v2029 = vsel %vm2023, %v2012, %v2014
    %v2030 = vsel %vm2023, %v2016, %v2018
    %v2031 = vsel %vm2023, %v2020, %v2022
    %v2041 = vsel %vm67, %v1990, 0
    %2043 = vmatprep.subr.mxu0 0.0
    %2044 = vmatpush1.msra.mxu0 %v2024
    %2045 = vmatprep.subr.mxu0 0.0
    %2046 = vmatpush1.msra.mxu0 %v2025
    %2047 = vmatprep.subr.mxu0 0.0
    %2048 = vmatpush1.msra.mxu0 %v2026
    %2049 = vmatprep.subr.mxu0 0.0
    %2050 = vmatpush1.msra.mxu0 %v2027
    %2051 = vmatprep.subr.mxu0 0.0
    %2052 = vmatpush1.msra.mxu0 %v2028
    %2053 = vmatprep.subr.mxu0 0.0
    %2054 = vmatpush1.msra.mxu0 %v2029
    %2055 = vmatprep.subr.mxu0 0.0
    %2056 = vmatpush1.msra.mxu0 %v2030
    %2057 = vmatprep.subr.mxu0 0.0
    %2058 = vmatpush1.msra.mxu0 %v2031
    %2059 = vmatprep.subr.mxu0 0.0
    %2060 = vmatpush1.msra.mxu0 0.0
    %2061 = vmatprep.subr.mxu0 0.0
    %2062 = vmatpush1.msra.mxu0 0.0
    %2063 = vmatprep.subr.mxu0 0.0
    %2064 = vmatpush1.msra.mxu0 0.0
    %2065 = vmatprep.subr.mxu0 0.0
    %2066 = vmatpush1.msra.mxu0 0.0
    %2067 = vmatprep.subr.mxu0 0.0
    %2068 = vmatpush1.msra.mxu0 0.0
    %2069 = vmatprep.subr.mxu0 0.0
    %2070 = vmatpush1.msra.mxu0 0.0
    %2071 = vmatprep.subr.mxu0 0.0
    %2072 = vmatpush1.msra.mxu0 0.0
    %2073 = vmatprep.subr.mxu0 0.0
    %2074 = vmatpush1.msra.mxu0 0.0
    %2075 = vmatprep.subr.mxu0 0.0
    %2076 = vmatpush1.msra.mxu0 0.0
    %2077 = vmatprep.subr.mxu0 0.0
    %2078 = vmatpush1.msra.mxu0 0.0
    %2079 = vmatprep.subr.mxu0 0.0
    %2080 = vmatpush1.msra.mxu0 0.0
    %2081 = vmatprep.subr.mxu0 0.0
    %2082 = vmatpush1.msra.mxu0 0.0
    %2083 = vmatprep.subr.mxu0 0.0
    %2084 = vmatpush1.msra.mxu0 0.0
    %2085 = vmatprep.subr.mxu0 0.0
    %2086 = vmatpush1.msra.mxu0 0.0
    %2087 = vmatprep.subr.mxu0 0.0
    %2088 = vmatpush1.msra.mxu0 0.0
    %2089 = vmatprep.subr.mxu0 0.0
    %2090 = vmatpush1.msra.mxu0 0.0
    %2091 = vmatprep.subr.mxu0 0.0
    %2092 = vmatpush1.msra.mxu0 0.0
    %2093 = vmatprep.subr.mxu0 0.0
    %2094 = vmatpush1.msra.mxu0 0.0
    %2095 = vmatprep.subr.mxu0 0.0
    %2096 = vmatpush1.msra.mxu0 0.0
    %2097 = vmatprep.subr.mxu0 0.0
    %2098 = vmatpush1.msra.mxu0 0.0
    %2099 = vmatprep.subr.mxu0 0.0
    %2100 = vmatpush1.msra.mxu0 0.0
    %2101 = vmatprep.subr.mxu0 0.0
    %2102 = vmatpush1.msra.mxu0 0.0
    %2103 = vmatprep.subr.mxu0 0.0
    %2104 = vmatpush1.msra.mxu0 0.0
    %2105 = vmatprep.subr.mxu0 0.0
    %2106 = vmatpush1.msra.mxu0 0.0
    %2107 = vmatprep.mubr.f32.mxu0 0.0
    %2108 = vmatmul.mubr.f32.gmra.mrb[0].mxu0 %v2041
    %v2109 = vpop.f32.mrb[0].mxu0
    %v2110 = vadd.f32 0.0, %v2109
    %v2111 = vpop.f32.mrb[0].mxu0
    %2112 = vdwg.mxu0
    %v2113 = vadd.f32 %v1988, %v2110
    %s2114 = scalar_lea.vmem [#allocation6], 128
    %v2115 = vld [vmem:[%s2114] sm:$0xff]
    %2116 = vrot.lane.b32.xlu0 %v137, 112
    %v2117 = vpop.permute.xlu0 %2116
    %2118 = vrot.lane.b32.xlu0 %v138, 112
    %v2119 = vpop.permute.xlu0 %2118
    %2120 = vrot.lane.b32.xlu0 %v139, 112
    %v2121 = vpop.permute.xlu0 %2120
    %2122 = vrot.lane.b32.xlu0 %v140, 112
    %v2123 = vpop.permute.xlu0 %2122
    %2124 = vrot.lane.b32.xlu0 %v141, 112
    %v2125 = vpop.permute.xlu0 %2124
    %2126 = vrot.lane.b32.xlu0 %v142, 112
    %v2127 = vpop.permute.xlu0 %2126
    %2128 = vrot.lane.b32.xlu0 %v143, 112
    %v2129 = vpop.permute.xlu0 %2128
    %2130 = vrot.lane.b32.xlu0 %v144, 112
    %v2131 = vpop.permute.xlu0 %2130
    %2132 = vrot.lane.b32.xlu0 %v145, 112
    %v2133 = vpop.permute.xlu0 %2132
    %2134 = vrot.lane.b32.xlu0 %v146, 112
    %v2135 = vpop.permute.xlu0 %2134
    %2136 = vrot.lane.b32.xlu0 %v147, 112
    %v2137 = vpop.permute.xlu0 %2136
    %2138 = vrot.lane.b32.xlu0 %v148, 112
    %v2139 = vpop.permute.xlu0 %2138
    %2140 = vrot.lane.b32.xlu0 %v149, 112
    %v2141 = vpop.permute.xlu0 %2140
    %2142 = vrot.lane.b32.xlu0 %v150, 112
    %v2143 = vpop.permute.xlu0 %2142
    %2144 = vrot.lane.b32.xlu0 %v151, 112
    %v2145 = vpop.permute.xlu0 %2144
    %2146 = vrot.lane.b32.xlu0 %v152, 112
    %v2147 = vpop.permute.xlu0 %2146
    %vm2148 = vcmask 916480
    %v2149 = vsel %vm2148, %v2117, %v2119
    %v2150 = vsel %vm2148, %v2121, %v2123
    %v2151 = vsel %vm2148, %v2125, %v2127
    %v2152 = vsel %vm2148, %v2129, %v2131
    %v2153 = vsel %vm2148, %v2133, %v2135
    %v2154 = vsel %vm2148, %v2137, %v2139
    %v2155 = vsel %vm2148, %v2141, %v2143
    %v2156 = vsel %vm2148, %v2145, %v2147
    %v2166 = vsel %vm67, %v2115, 0
    %2168 = vmatprep.subr.mxu0 0.0
    %2169 = vmatpush1.msra.mxu0 %v2149
    %2170 = vmatprep.subr.mxu0 0.0
    %2171 = vmatpush1.msra.mxu0 %v2150
    %2172 = vmatprep.subr.mxu0 0.0
    %2173 = vmatpush1.msra.mxu0 %v2151
    %2174 = vmatprep.subr.mxu0 0.0
    %2175 = vmatpush1.msra.mxu0 %v2152
    %2176 = vmatprep.subr.mxu0 0.0
    %2177 = vmatpush1.msra.mxu0 %v2153
    %2178 = vmatprep.subr.mxu0 0.0
    %2179 = vmatpush1.msra.mxu0 %v2154
    %2180 = vmatprep.subr.mxu0 0.0
    %2181 = vmatpush1.msra.mxu0 %v2155
    %2182 = vmatprep.subr.mxu0 0.0
    %2183 = vmatpush1.msra.mxu0 %v2156
    %2184 = vmatprep.subr.mxu0 0.0
    %2185 = vmatpush1.msra.mxu0 0.0
    %2186 = vmatprep.subr.mxu0 0.0
    %2187 = vmatpush1.msra.mxu0 0.0
    %2188 = vmatprep.subr.mxu0 0.0
    %2189 = vmatpush1.msra.mxu0 0.0
    %2190 = vmatprep.subr.mxu0 0.0
    %2191 = vmatpush1.msra.mxu0 0.0
    %2192 = vmatprep.subr.mxu0 0.0
    %2193 = vmatpush1.msra.mxu0 0.0
    %2194 = vmatprep.subr.mxu0 0.0
    %2195 = vmatpush1.msra.mxu0 0.0
    %2196 = vmatprep.subr.mxu0 0.0
    %2197 = vmatpush1.msra.mxu0 0.0
    %2198 = vmatprep.subr.mxu0 0.0
    %2199 = vmatpush1.msra.mxu0 0.0
    %2200 = vmatprep.subr.mxu0 0.0
    %2201 = vmatpush1.msra.mxu0 0.0
    %2202 = vmatprep.subr.mxu0 0.0
    %2203 = vmatpush1.msra.mxu0 0.0
    %2204 = vmatprep.subr.mxu0 0.0
    %2205 = vmatpush1.msra.mxu0 0.0
    %2206 = vmatprep.subr.mxu0 0.0
    %2207 = vmatpush1.msra.mxu0 0.0
    %2208 = vmatprep.subr.mxu0 0.0
    %2209 = vmatpush1.msra.mxu0 0.0
    %2210 = vmatprep.subr.mxu0 0.0
    %2211 = vmatpush1.msra.mxu0 0.0
    %2212 = vmatprep.subr.mxu0 0.0
    %2213 = vmatpush1.msra.mxu0 0.0
    %2214 = vmatprep.subr.mxu0 0.0
    %2215 = vmatpush1.msra.mxu0 0.0
    %2216 = vmatprep.subr.mxu0 0.0
    %2217 = vmatpush1.msra.mxu0 0.0
    %2218 = vmatprep.subr.mxu0 0.0
    %2219 = vmatpush1.msra.mxu0 0.0
    %2220 = vmatprep.subr.mxu0 0.0
    %2221 = vmatpush1.msra.mxu0 0.0
    %2222 = vmatprep.subr.mxu0 0.0
    %2223 = vmatpush1.msra.mxu0 0.0
    %2224 = vmatprep.subr.mxu0 0.0
    %2225 = vmatpush1.msra.mxu0 0.0
    %2226 = vmatprep.subr.mxu0 0.0
    %2227 = vmatpush1.msra.mxu0 0.0
    %2228 = vmatprep.subr.mxu0 0.0
    %2229 = vmatpush1.msra.mxu0 0.0
    %2230 = vmatprep.subr.mxu0 0.0
    %2231 = vmatpush1.msra.mxu0 0.0
    %2232 = vmatprep.mubr.f32.mxu0 0.0
    %2233 = vmatmul.mubr.f32.gmra.mrb[0].mxu0 %v2166
    %v2234 = vpop.f32.mrb[0].mxu0
    %v2235 = vadd.f32 0.0, %v2234
    %v2236 = vpop.f32.mrb[0].mxu0
    %2237 = vdwg.mxu0
    %v2238 = vadd.f32 %v2113, %v2235
    %s2239 = scalar_lea.vmem [#allocation6], 136
    %v2240 = vld [vmem:[%s2239] sm:$0xff]
    %2241 = vrot.lane.b32.xlu0 %v137, 111
    %v2242 = vpop.permute.xlu0 %2241
    %2243 = vrot.lane.b32.xlu0 %v138, 111
    %v2244 = vpop.permute.xlu0 %2243
    %2245 = vrot.lane.b32.xlu0 %v139, 111
    %v2246 = vpop.permute.xlu0 %2245
    %2247 = vrot.lane.b32.xlu0 %v140, 111
    %v2248 = vpop.permute.xlu0 %2247
    %2249 = vrot.lane.b32.xlu0 %v141, 111
    %v2250 = vpop.permute.xlu0 %2249
    %2251 = vrot.lane.b32.xlu0 %v142, 111
    %v2252 = vpop.permute.xlu0 %2251
    %2253 = vrot.lane.b32.xlu0 %v143, 111
    %v2254 = vpop.permute.xlu0 %2253
    %2255 = vrot.lane.b32.xlu0 %v144, 111
    %v2256 = vpop.permute.xlu0 %2255
    %2257 = vrot.lane.b32.xlu0 %v145, 111
    %v2258 = vpop.permute.xlu0 %2257
    %2259 = vrot.lane.b32.xlu0 %v146, 111
    %v2260 = vpop.permute.xlu0 %2259
    %2261 = vrot.lane.b32.xlu0 %v147, 111
    %v2262 = vpop.permute.xlu0 %2261
    %2263 = vrot.lane.b32.xlu0 %v148, 111
    %v2264 = vpop.permute.xlu0 %2263
    %2265 = vrot.lane.b32.xlu0 %v149, 111
    %v2266 = vpop.permute.xlu0 %2265
    %2267 = vrot.lane.b32.xlu0 %v150, 111
    %v2268 = vpop.permute.xlu0 %2267
    %2269 = vrot.lane.b32.xlu0 %v151, 111
    %v2270 = vpop.permute.xlu0 %2269
    %2271 = vrot.lane.b32.xlu0 %v152, 111
    %v2272 = vpop.permute.xlu0 %2271
    %vm2273 = vcmask 908288
    %v2274 = vsel %vm2273, %v2242, %v2244
    %v2275 = vsel %vm2273, %v2246, %v2248
    %v2276 = vsel %vm2273, %v2250, %v2252
    %v2277 = vsel %vm2273, %v2254, %v2256
    %v2278 = vsel %vm2273, %v2258, %v2260
    %v2279 = vsel %vm2273, %v2262, %v2264
    %v2280 = vsel %vm2273, %v2266, %v2268
    %v2281 = vsel %vm2273, %v2270, %v2272
    %v2291 = vsel %vm67, %v2240, 0
    %2293 = vmatprep.subr.mxu0 0.0
    %2294 = vmatpush1.msra.mxu0 %v2274
    %2295 = vmatprep.subr.mxu0 0.0
    %2296 = vmatpush1.msra.mxu0 %v2275
    %2297 = vmatprep.subr.mxu0 0.0
    %2298 = vmatpush1.msra.mxu0 %v2276
    %2299 = vmatprep.subr.mxu0 0.0
    %2300 = vmatpush1.msra.mxu0 %v2277
    %2301 = vmatprep.subr.mxu0 0.0
    %2302 = vmatpush1.msra.mxu0 %v2278
    %2303 = vmatprep.subr.mxu0 0.0
    %2304 = vmatpush1.msra.mxu0 %v2279
    %2305 = vmatprep.subr.mxu0 0.0
    %2306 = vmatpush1.msra.mxu0 %v2280
    %2307 = vmatprep.subr.mxu0 0.0
    %2308 = vmatpush1.msra.mxu0 %v2281
    %2309 = vmatprep.subr.mxu0 0.0
    %2310 = vmatpush1.msra.mxu0 0.0
    %2311 = vmatprep.subr.mxu0 0.0
    %2312 = vmatpush1.msra.mxu0 0.0
    %2313 = vmatprep.subr.mxu0 0.0
    %2314 = vmatpush1.msra.mxu0 0.0
    %2315 = vmatprep.subr.mxu0 0.0
    %2316 = vmatpush1.msra.mxu0 0.0
    %2317 = vmatprep.subr.mxu0 0.0
    %2318 = vmatpush1.msra.mxu0 0.0
    %2319 = vmatprep.subr.mxu0 0.0
    %2320 = vmatpush1.msra.mxu0 0.0
    %2321 = vmatprep.subr.mxu0 0.0
    %2322 = vmatpush1.msra.mxu0 0.0
    %2323 = vmatprep.subr.mxu0 0.0
    %2324 = vmatpush1.msra.mxu0 0.0
    %2325 = vmatprep.subr.mxu0 0.0
    %2326 = vmatpush1.msra.mxu0 0.0
    %2327 = vmatprep.subr.mxu0 0.0
    %2328 = vmatpush1.msra.mxu0 0.0
    %2329 = vmatprep.subr.mxu0 0.0
    %2330 = vmatpush1.msra.mxu0 0.0
    %2331 = vmatprep.subr.mxu0 0.0
    %2332 = vmatpush1.msra.mxu0 0.0
    %2333 = vmatprep.subr.mxu0 0.0
    %2334 = vmatpush1.msra.mxu0 0.0
    %2335 = vmatprep.subr.mxu0 0.0
    %2336 = vmatpush1.msra.mxu0 0.0
    %2337 = vmatprep.subr.mxu0 0.0
    %2338 = vmatpush1.msra.mxu0 0.0
    %2339 = vmatprep.subr.mxu0 0.0
    %2340 = vmatpush1.msra.mxu0 0.0
    %2341 = vmatprep.subr.mxu0 0.0
    %2342 = vmatpush1.msra.mxu0 0.0
    %2343 = vmatprep.subr.mxu0 0.0
    %2344 = vmatpush1.msra.mxu0 0.0
    %2345 = vmatprep.subr.mxu0 0.0
    %2346 = vmatpush1.msra.mxu0 0.0
    %2347 = vmatprep.subr.mxu0 0.0
    %2348 = vmatpush1.msra.mxu0 0.0
    %2349 = vmatprep.subr.mxu0 0.0
    %2350 = vmatpush1.msra.mxu0 0.0
    %2351 = vmatprep.subr.mxu0 0.0
    %2352 = vmatpush1.msra.mxu0 0.0
    %2353 = vmatprep.subr.mxu0 0.0
    %2354 = vmatpush1.msra.mxu0 0.0
    %2355 = vmatprep.subr.mxu0 0.0
    %2356 = vmatpush1.msra.mxu0 0.0
    %2357 = vmatprep.mubr.f32.mxu0 0.0
    %2358 = vmatmul.mubr.f32.gmra.mrb[0].mxu0 %v2291
    %v2359 = vpop.f32.mrb[0].mxu0
    %v2360 = vadd.f32 0.0, %v2359
    %v2361 = vpop.f32.mrb[0].mxu0
    %2362 = vdwg.mxu0
    %v2363 = vadd.f32 %v2238, %v2360
    %s2364 = scalar_lea.vmem [#allocation6], 144
    %v2365 = vld [vmem:[%s2364] sm:$0xff]
    %2366 = vrot.lane.b32.xlu0 %v137, 110
    %v2367 = vpop.permute.xlu0 %2366
    %2368 = vrot.lane.b32.xlu0 %v138, 110
    %v2369 = vpop.permute.xlu0 %2368
    %2370 = vrot.lane.b32.xlu0 %v139, 110
    %v2371 = vpop.permute.xlu0 %2370
    %2372 = vrot.lane.b32.xlu0 %v140, 110
    %v2373 = vpop.permute.xlu0 %2372
    %2374 = vrot.lane.b32.xlu0 %v141, 110
    %v2375 = vpop.permute.xlu0 %2374
    %2376 = vrot.lane.b32.xlu0 %v142, 110
    %v2377 = vpop.permute.xlu0 %2376
    %2378 = vrot.lane.b32.xlu0 %v143, 110
    %v2379 = vpop.permute.xlu0 %2378
    %2380 = vrot.lane.b32.xlu0 %v144, 110
    %v2381 = vpop.permute.xlu0 %2380
    %2382 = vrot.lane.b32.xlu0 %v145, 110
    %v2383 = vpop.permute.xlu0 %2382
    %2384 = vrot.lane.b32.xlu0 %v146, 110
    %v2385 = vpop.permute.xlu0 %2384
    %2386 = vrot.lane.b32.xlu0 %v147, 110
    %v2387 = vpop.permute.xlu0 %2386
    %2388 = vrot.lane.b32.xlu0 %v148, 110
    %v2389 = vpop.permute.xlu0 %2388
    %2390 = vrot.lane.b32.xlu0 %v149, 110
    %v2391 = vpop.permute.xlu0 %2390
    %2392 = vrot.lane.b32.xlu0 %v150, 110
    %v2393 = vpop.permute.xlu0 %2392
    %2394 = vrot.lane.b32.xlu0 %v151, 110
    %v2395 = vpop.permute.xlu0 %2394
    %2396 = vrot.lane.b32.xlu0 %v152, 110
    %v2397 = vpop.permute.xlu0 %2396
    %vm2398 = vcmask 900096
    %v2399 = vsel %vm2398, %v2367, %v2369
    %v2400 = vsel %vm2398, %v2371, %v2373
    %v2401 = vsel %vm2398, %v2375, %v2377
    %v2402 = vsel %vm2398, %v2379, %v2381
    %v2403 = vsel %vm2398, %v2383, %v2385
    %v2404 = vsel %vm2398, %v2387, %v2389
    %v2405 = vsel %vm2398, %v2391, %v2393
    %v2406 = vsel %vm2398, %v2395, %v2397
    %v2416 = vsel %vm67, %v2365, 0
    %2418 = vmatprep.subr.mxu0 0.0
    %2419 = vmatpush1.msra.mxu0 %v2399
    %2420 = vmatprep.subr.mxu0 0.0
    %2421 = vmatpush1.msra.mxu0 %v2400
    %2422 = vmatprep.subr.mxu0 0.0
    %2423 = vmatpush1.msra.mxu0 %v2401
    %2424 = vmatprep.subr.mxu0 0.0
    %2425 = vmatpush1.msra.mxu0 %v2402
    %2426 = vmatprep.subr.mxu0 0.0
    %2427 = vmatpush1.msra.mxu0 %v2403
    %2428 = vmatprep.subr.mxu0 0.0
    %2429 = vmatpush1.msra.mxu0 %v2404
    %2430 = vmatprep.subr.mxu0 0.0
    %2431 = vmatpush1.msra.mxu0 %v2405
    %2432 = vmatprep.subr.mxu0 0.0
    %2433 = vmatpush1.msra.mxu0 %v2406
    %2434 = vmatprep.subr.mxu0 0.0
    %2435 = vmatpush1.msra.mxu0 0.0
    %2436 = vmatprep.subr.mxu0 0.0
    %2437 = vmatpush1.msra.mxu0 0.0
    %2438 = vmatprep.subr.mxu0 0.0
    %2439 = vmatpush1.msra.mxu0 0.0
    %2440 = vmatprep.subr.mxu0 0.0
    %2441 = vmatpush1.msra.mxu0 0.0
    %2442 = vmatprep.subr.mxu0 0.0
    %2443 = vmatpush1.msra.mxu0 0.0
    %2444 = vmatprep.subr.mxu0 0.0
    %2445 = vmatpush1.msra.mxu0 0.0
    %2446 = vmatprep.subr.mxu0 0.0
    %2447 = vmatpush1.msra.mxu0 0.0
    %2448 = vmatprep.subr.mxu0 0.0
    %2449 = vmatpush1.msra.mxu0 0.0
    %2450 = vmatprep.subr.mxu0 0.0
    %2451 = vmatpush1.msra.mxu0 0.0
    %2452 = vmatprep.subr.mxu0 0.0
    %2453 = vmatpush1.msra.mxu0 0.0
    %2454 = vmatprep.subr.mxu0 0.0
    %2455 = vmatpush1.msra.mxu0 0.0
    %2456 = vmatprep.subr.mxu0 0.0
    %2457 = vmatpush1.msra.mxu0 0.0
    %2458 = vmatprep.subr.mxu0 0.0
    %2459 = vmatpush1.msra.mxu0 0.0
    %2460 = vmatprep.subr.mxu0 0.0
    %2461 = vmatpush1.msra.mxu0 0.0
    %2462 = vmatprep.subr.mxu0 0.0
    %2463 = vmatpush1.msra.mxu0 0.0
    %2464 = vmatprep.subr.mxu0 0.0
    %2465 = vmatpush1.msra.mxu0 0.0
    %2466 = vmatprep.subr.mxu0 0.0
    %2467 = vmatpush1.msra.mxu0 0.0
    %2468 = vmatprep.subr.mxu0 0.0
    %2469 = vmatpush1.msra.mxu0 0.0
    %2470 = vmatprep.subr.mxu0 0.0
    %2471 = vmatpush1.msra.mxu0 0.0
    %2472 = vmatprep.subr.mxu0 0.0
    %2473 = vmatpush1.msra.mxu0 0.0
    %2474 = vmatprep.subr.mxu0 0.0
    %2475 = vmatpush1.msra.mxu0 0.0
    %2476 = vmatprep.subr.mxu0 0.0
    %2477 = vmatpush1.msra.mxu0 0.0
    %2478 = vmatprep.subr.mxu0 0.0
    %2479 = vmatpush1.msra.mxu0 0.0
    %2480 = vmatprep.subr.mxu0 0.0
    %2481 = vmatpush1.msra.mxu0 0.0
    %2482 = vmatprep.mubr.f32.mxu0 0.0
    %2483 = vmatmul.mubr.f32.gmra.mrb[0].mxu0 %v2416
    %v2484 = vpop.f32.mrb[0].mxu0
    %v2485 = vadd.f32 0.0, %v2484
    %v2486 = vpop.f32.mrb[0].mxu0
    %2487 = vdwg.mxu0
    %v2488 = vadd.f32 %v2363, %v2485
    %s2489 = scalar_lea.vmem [#allocation6], 152
    %v2490 = vld [vmem:[%s2489] sm:$0xff]
    %2491 = vrot.lane.b32.xlu0 %v137, 109
    %v2492 = vpop.permute.xlu0 %2491
    %2493 = vrot.lane.b32.xlu0 %v138, 109
    %v2494 = vpop.permute.xlu0 %2493
    %2495 = vrot.lane.b32.xlu0 %v139, 109
    %v2496 = vpop.permute.xlu0 %2495
    %2497 = vrot.lane.b32.xlu0 %v140, 109
    %v2498 = vpop.permute.xlu0 %2497
    %2499 = vrot.lane.b32.xlu0 %v141, 109
    %v2500 = vpop.permute.xlu0 %2499
    %2501 = vrot.lane.b32.xlu0 %v142, 109
    %v2502 = vpop.permute.xlu0 %2501
    %2503 = vrot.lane.b32.xlu0 %v143, 109
    %v2504 = vpop.permute.xlu0 %2503
    %2505 = vrot.lane.b32.xlu0 %v144, 109
    %v2506 = vpop.permute.xlu0 %2505
    %2507 = vrot.lane.b32.xlu0 %v145, 109
    %v2508 = vpop.permute.xlu0 %2507
    %2509 = vrot.lane.b32.xlu0 %v146, 109
    %v2510 = vpop.permute.xlu0 %2509
    %2511 = vrot.lane.b32.xlu0 %v147, 109
    %v2512 = vpop.permute.xlu0 %2511
    %2513 = vrot.lane.b32.xlu0 %v148, 109
    %v2514 = vpop.permute.xlu0 %2513
    %2515 = vrot.lane.b32.xlu0 %v149, 109
    %v2516 = vpop.permute.xlu0 %2515
    %2517 = vrot.lane.b32.xlu0 %v150, 109
    %v2518 = vpop.permute.xlu0 %2517
    %2519 = vrot.lane.b32.xlu0 %v151, 109
    %v2520 = vpop.permute.xlu0 %2519
    %2521 = vrot.lane.b32.xlu0 %v152, 109
    %v2522 = vpop.permute.xlu0 %2521
    %vm2523 = vcmask 891904
    %v2524 = vsel %vm2523, %v2492, %v2494
    %v2525 = vsel %vm2523, %v2496, %v2498
    %v2526 = vsel %vm2523, %v2500, %v2502
    %v2527 = vsel %vm2523, %v2504, %v2506
    %v2528 = vsel %vm2523, %v2508, %v2510
    %v2529 = vsel %vm2523, %v2512, %v2514
    %v2530 = vsel %vm2523, %v2516, %v2518
    %v2531 = vsel %vm2523, %v2520, %v2522
    %v2541 = vsel %vm67, %v2490, 0
    %2543 = vmatprep.subr.mxu0 0.0
    %2544 = vmatpush1.msra.mxu0 %v2524
    %2545 = vmatprep.subr.mxu0 0.0
    %2546 = vmatpush1.msra.mxu0 %v2525
    %2547 = vmatprep.subr.mxu0 0.0
    %2548 = vmatpush1.msra.mxu0 %v2526
    %2549 = vmatprep.subr.mxu0 0.0
    %2550 = vmatpush1.msra.mxu0 %v2527
    %2551 = vmatprep.subr.mxu0 0.0
    %2552 = vmatpush1.msra.mxu0 %v2528
    %2553 = vmatprep.subr.mxu0 0.0
    %2554 = vmatpush1.msra.mxu0 %v2529
    %2555 = vmatprep.subr.mxu0 0.0
    %2556 = vmatpush1.msra.mxu0 %v2530
    %2557 = vmatprep.subr.mxu0 0.0
    %2558 = vmatpush1.msra.mxu0 %v2531
    %2559 = vmatprep.subr.mxu0 0.0
    %2560 = vmatpush1.msra.mxu0 0.0
    %2561 = vmatprep.subr.mxu0 0.0
    %2562 = vmatpush1.msra.mxu0 0.0
    %2563 = vmatprep.subr.mxu0 0.0
    %2564 = vmatpush1.msra.mxu0 0.0
    %2565 = vmatprep.subr.mxu0 0.0
    %2566 = vmatpush1.msra.mxu0 0.0
    %2567 = vmatprep.subr.mxu0 0.0
    %2568 = vmatpush1.msra.mxu0 0.0
    %2569 = vmatprep.subr.mxu0 0.0
    %2570 = vmatpush1.msra.mxu0 0.0
    %2571 = vmatprep.subr.mxu0 0.0
    %2572 = vmatpush1.msra.mxu0 0.0
    %2573 = vmatprep.subr.mxu0 0.0
    %2574 = vmatpush1.msra.mxu0 0.0
    %2575 = vmatprep.subr.mxu0 0.0
    %2576 = vmatpush1.msra.mxu0 0.0
    %2577 = vmatprep.subr.mxu0 0.0
    %2578 = vmatpush1.msra.mxu0 0.0
    %2579 = vmatprep.subr.mxu0 0.0
    %2580 = vmatpush1.msra.mxu0 0.0
    %2581 = vmatprep.subr.mxu0 0.0
    %2582 = vmatpush1.msra.mxu0 0.0
    %2583 = vmatprep.subr.mxu0 0.0
    %2584 = vmatpush1.msra.mxu0 0.0
    %2585 = vmatprep.subr.mxu0 0.0
    %2586 = vmatpush1.msra.mxu0 0.0
    %2587 = vmatprep.subr.mxu0 0.0
    %2588 = vmatpush1.msra.mxu0 0.0
    %2589 = vmatprep.subr.mxu0 0.0
    %2590 = vmatpush1.msra.mxu0 0.0
    %2591 = vmatprep.subr.mxu0 0.0
    %2592 = vmatpush1.msra.mxu0 0.0
    %2593 = vmatprep.subr.mxu0 0.0
    %2594 = vmatpush1.msra.mxu0 0.0
    %2595 = vmatprep.subr.mxu0 0.0
    %2596 = vmatpush1.msra.mxu0 0.0
    %2597 = vmatprep.subr.mxu0 0.0
    %2598 = vmatpush1.msra.mxu0 0.0
    %2599 = vmatprep.subr.mxu0 0.0
    %2600 = vmatpush1.msra.mxu0 0.0
    %2601 = vmatprep.subr.mxu0 0.0
    %2602 = vmatpush1.msra.mxu0 0.0
    %2603 = vmatprep.subr.mxu0 0.0
    %2604 = vmatpush1.msra.mxu0 0.0
    %2605 = vmatprep.subr.mxu0 0.0
    %2606 = vmatpush1.msra.mxu0 0.0
    %2607 = vmatprep.mubr.f32.mxu0 0.0
    %2608 = vmatmul.mubr.f32.gmra.mrb[0].mxu0 %v2541
    %v2609 = vpop.f32.mrb[0].mxu0
    %v2610 = vadd.f32 0.0, %v2609
    %v2611 = vpop.f32.mrb[0].mxu0
    %2612 = vdwg.mxu0
    %v2613 = vadd.f32 %v2488, %v2610
    %s2614 = scalar_lea.vmem [#allocation6], 160
    %v2615 = vld [vmem:[%s2614] sm:$0xff]
    %2616 = vrot.lane.b32.xlu0 %v137, 108
    %v2617 = vpop.permute.xlu0 %2616
    %2618 = vrot.lane.b32.xlu0 %v138, 108
    %v2619 = vpop.permute.xlu0 %2618
    %2620 = vrot.lane.b32.xlu0 %v139, 108
    %v2621 = vpop.permute.xlu0 %2620
    %2622 = vrot.lane.b32.xlu0 %v140, 108
    %v2623 = vpop.permute.xlu0 %2622
    %2624 = vrot.lane.b32.xlu0 %v141, 108
    %v2625 = vpop.permute.xlu0 %2624
    %2626 = vrot.lane.b32.xlu0 %v142, 108
    %v2627 = vpop.permute.xlu0 %2626
    %2628 = vrot.lane.b32.xlu0 %v143, 108
    %v2629 = vpop.permute.xlu0 %2628
    %2630 = vrot.lane.b32.xlu0 %v144, 108
    %v2631 = vpop.permute.xlu0 %2630
    %2632 = vrot.lane.b32.xlu0 %v145, 108
    %v2633 = vpop.permute.xlu0 %2632
    %2634 = vrot.lane.b32.xlu0 %v146, 108
    %v2635 = vpop.permute.xlu0 %2634
    %2636 = vrot.lane.b32.xlu0 %v147, 108
    %v2637 = vpop.permute.xlu0 %2636
    %2638 = vrot.lane.b32.xlu0 %v148, 108
    %v2639 = vpop.permute.xlu0 %2638
    %2640 = vrot.lane.b32.xlu0 %v149, 108
    %v2641 = vpop.permute.xlu0 %2640
    %2642 = vrot.lane.b32.xlu0 %v150, 108
    %v2643 = vpop.permute.xlu0 %2642
    %2644 = vrot.lane.b32.xlu0 %v151, 108
    %v2645 = vpop.permute.xlu0 %2644
    %2646 = vrot.lane.b32.xlu0 %v152, 108
    %v2647 = vpop.permute.xlu0 %2646
    %vm2648 = vcmask 883712
    %v2649 = vsel %vm2648, %v2617, %v2619
    %v2650 = vsel %vm2648, %v2621, %v2623
    %v2651 = vsel %vm2648, %v2625, %v2627
    %v2652 = vsel %vm2648, %v2629, %v2631
    %v2653 = vsel %vm2648, %v2633, %v2635
    %v2654 = vsel %vm2648, %v2637, %v2639
    %v2655 = vsel %vm2648, %v2641, %v2643
    %v2656 = vsel %vm2648, %v2645, %v2647
    %v2666 = vsel %vm67, %v2615, 0
    %2668 = vmatprep.subr.mxu0 0.0
    %2669 = vmatpush1.msra.mxu0 %v2649
    %2670 = vmatprep.subr.mxu0 0.0
    %2671 = vmatpush1.msra.mxu0 %v2650
    %2672 = vmatprep.subr.mxu0 0.0
    %2673 = vmatpush1.msra.mxu0 %v2651
    %2674 = vmatprep.subr.mxu0 0.0
    %2675 = vmatpush1.msra.mxu0 %v2652
    %2676 = vmatprep.subr.mxu0 0.0
    %2677 = vmatpush1.msra.mxu0 %v2653
    %2678 = vmatprep.subr.mxu0 0.0
    %2679 = vmatpush1.msra.mxu0 %v2654
    %2680 = vmatprep.subr.mxu0 0.0
    %2681 = vmatpush1.msra.mxu0 %v2655
    %2682 = vmatprep.subr.mxu0 0.0
    %2683 = vmatpush1.msra.mxu0 %v2656
    %2684 = vmatprep.subr.mxu0 0.0
    %2685 = vmatpush1.msra.mxu0 0.0
    %2686 = vmatprep.subr.mxu0 0.0
    %2687 = vmatpush1.msra.mxu0 0.0
    %2688 = vmatprep.subr.mxu0 0.0
    %2689 = vmatpush1.msra.mxu0 0.0
    %2690 = vmatprep.subr.mxu0 0.0
    %2691 = vmatpush1.msra.mxu0 0.0
    %2692 = vmatprep.subr.mxu0 0.0
    %2693 = vmatpush1.msra.mxu0 0.0
    %2694 = vmatprep.subr.mxu0 0.0
    %2695 = vmatpush1.msra.mxu0 0.0
    %2696 = vmatprep.subr.mxu0 0.0
    %2697 = vmatpush1.msra.mxu0 0.0
    %2698 = vmatprep.subr.mxu0 0.0
    %2699 = vmatpush1.msra.mxu0 0.0
    %2700 = vmatprep.subr.mxu0 0.0
    %2701 = vmatpush1.msra.mxu0 0.0
    %2702 = vmatprep.subr.mxu0 0.0
    %2703 = vmatpush1.msra.mxu0 0.0
    %2704 = vmatprep.subr.mxu0 0.0
    %2705 = vmatpush1.msra.mxu0 0.0
    %2706 = vmatprep.subr.mxu0 0.0
    %2707 = vmatpush1.msra.mxu0 0.0
    %2708 = vmatprep.subr.mxu0 0.0
    %2709 = vmatpush1.msra.mxu0 0.0
    %2710 = vmatprep.subr.mxu0 0.0
    %2711 = vmatpush1.msra.mxu0 0.0
    %2712 = vmatprep.subr.mxu0 0.0
    %2713 = vmatpush1.msra.mxu0 0.0
    %2714 = vmatprep.subr.mxu0 0.0
    %2715 = vmatpush1.msra.mxu0 0.0
    %2716 = vmatprep.subr.mxu0 0.0
    %2717 = vmatpush1.msra.mxu0 0.0
    %2718 = vmatprep.subr.mxu0 0.0
    %2719 = vmatpush1.msra.mxu0 0.0
    %2720 = vmatprep.subr.mxu0 0.0
    %2721 = vmatpush1.msra.mxu0 0.0
    %2722 = vmatprep.subr.mxu0 0.0
    %2723 = vmatpush1.msra.mxu0 0.0
    %2724 = vmatprep.subr.mxu0 0.0
    %2725 = vmatpush1.msra.mxu0 0.0
    %2726 = vmatprep.subr.mxu0 0.0
    %2727 = vmatpush1.msra.mxu0 0.0
    %2728 = vmatprep.subr.mxu0 0.0
    %2729 = vmatpush1.msra.mxu0 0.0
    %2730 = vmatprep.subr.mxu0 0.0
    %2731 = vmatpush1.msra.mxu0 0.0
    %2732 = vmatprep.mubr.f32.mxu0 0.0
    %2733 = vmatmul.mubr.f32.gmra.mrb[0].mxu0 %v2666
    %v2734 = vpop.f32.mrb[0].mxu0
    %v2735 = vadd.f32 0.0, %v2734
    %v2736 = vpop.f32.mrb[0].mxu0
    %2737 = vdwg.mxu0
    %v2738 = vadd.f32 %v2613, %v2735
    %s2739 = scalar_lea.vmem [#allocation6], 168
    %v2740 = vld [vmem:[%s2739] sm:$0xff]
    %2741 = vrot.lane.b32.xlu0 %v137, 107
    %v2742 = vpop.permute.xlu0 %2741
    %2743 = vrot.lane.b32.xlu0 %v138, 107
    %v2744 = vpop.permute.xlu0 %2743
    %2745 = vrot.lane.b32.xlu0 %v139, 107
    %v2746 = vpop.permute.xlu0 %2745
    %2747 = vrot.lane.b32.xlu0 %v140, 107
    %v2748 = vpop.permute.xlu0 %2747
    %2749 = vrot.lane.b32.xlu0 %v141, 107
    %v2750 = vpop.permute.xlu0 %2749
    %2751 = vrot.lane.b32.xlu0 %v142, 107
    %v2752 = vpop.permute.xlu0 %2751
    %2753 = vrot.lane.b32.xlu0 %v143, 107
    %v2754 = vpop.permute.xlu0 %2753
    %2755 = vrot.lane.b32.xlu0 %v144, 107
    %v2756 = vpop.permute.xlu0 %2755
    %2757 = vrot.lane.b32.xlu0 %v145, 107
    %v2758 = vpop.permute.xlu0 %2757
    %2759 = vrot.lane.b32.xlu0 %v146, 107
    %v2760 = vpop.permute.xlu0 %2759
    %2761 = vrot.lane.b32.xlu0 %v147, 107
    %v2762 = vpop.permute.xlu0 %2761
    %2763 = vrot.lane.b32.xlu0 %v148, 107
    %v2764 = vpop.permute.xlu0 %2763
    %2765 = vrot.lane.b32.xlu0 %v149, 107
    %v2766 = vpop.permute.xlu0 %2765
    %2767 = vrot.lane.b32.xlu0 %v150, 107
    %v2768 = vpop.permute.xlu0 %2767
    %2769 = vrot.lane.b32.xlu0 %v151, 107
    %v2770 = vpop.permute.xlu0 %2769
    %2771 = vrot.lane.b32.xlu0 %v152, 107
    %v2772 = vpop.permute.xlu0 %2771
    %vm2773 = vcmask 875520
    %v2774 = vsel %vm2773, %v2742, %v2744
    %v2775 = vsel %vm2773, %v2746, %v2748
    %v2776 = vsel %vm2773, %v2750, %v2752
    %v2777 = vsel %vm2773, %v2754, %v2756
    %v2778 = vsel %vm2773, %v2758, %v2760
    %v2779 = vsel %vm2773, %v2762, %v2764
    %v2780 = vsel %vm2773, %v2766, %v2768
    %v2781 = vsel %vm2773, %v2770, %v2772
    %v2791 = vsel %vm67, %v2740, 0
    %2793 = vmatprep.subr.mxu0 0.0
    %2794 = vmatpush1.msra.mxu0 %v2774
    %2795 = vmatprep.subr.mxu0 0.0
    %2796 = vmatpush1.msra.mxu0 %v2775
    %2797 = vmatprep.subr.mxu0 0.0
    %2798 = vmatpush1.msra.mxu0 %v2776
    %2799 = vmatprep.subr.mxu0 0.0
    %2800 = vmatpush1.msra.mxu0 %v2777
    %2801 = vmatprep.subr.mxu0 0.0
    %2802 = vmatpush1.msra.mxu0 %v2778
    %2803 = vmatprep.subr.mxu0 0.0
    %2804 = vmatpush1.msra.mxu0 %v2779
    %2805 = vmatprep.subr.mxu0 0.0
    %2806 = vmatpush1.msra.mxu0 %v2780
    %2807 = vmatprep.subr.mxu0 0.0
    %2808 = vmatpush1.msra.mxu0 %v2781
    %2809 = vmatprep.subr.mxu0 0.0
    %2810 = vmatpush1.msra.mxu0 0.0
    %2811 = vmatprep.subr.mxu0 0.0
    %2812 = vmatpush1.msra.mxu0 0.0
    %2813 = vmatprep.subr.mxu0 0.0
    %2814 = vmatpush1.msra.mxu0 0.0
    %2815 = vmatprep.subr.mxu0 0.0
    %2816 = vmatpush1.msra.mxu0 0.0
    %2817 = vmatprep.subr.mxu0 0.0
    %2818 = vmatpush1.msra.mxu0 0.0
    %2819 = vmatprep.subr.mxu0 0.0
    %2820 = vmatpush1.msra.mxu0 0.0
    %2821 = vmatprep.subr.mxu0 0.0
    %2822 = vmatpush1.msra.mxu0 0.0
    %2823 = vmatprep.subr.mxu0 0.0
    %2824 = vmatpush1.msra.mxu0 0.0
    %2825 = vmatprep.subr.mxu0 0.0
    %2826 = vmatpush1.msra.mxu0 0.0
    %2827 = vmatprep.subr.mxu0 0.0
    %2828 = vmatpush1.msra.mxu0 0.0
    %2829 = vmatprep.subr.mxu0 0.0
    %2830 = vmatpush1.msra.mxu0 0.0
    %2831 = vmatprep.subr.mxu0 0.0
    %2832 = vmatpush1.msra.mxu0 0.0
    %2833 = vmatprep.subr.mxu0 0.0
    %2834 = vmatpush1.msra.mxu0 0.0
    %2835 = vmatprep.subr.mxu0 0.0
    %2836 = vmatpush1.msra.mxu0 0.0
    %2837 = vmatprep.subr.mxu0 0.0
    %2838 = vmatpush1.msra.mxu0 0.0
    %2839 = vmatprep.subr.mxu0 0.0
    %2840 = vmatpush1.msra.mxu0 0.0
    %2841 = vmatprep.subr.mxu0 0.0
    %2842 = vmatpush1.msra.mxu0 0.0
    %2843 = vmatprep.subr.mxu0 0.0
    %2844 = vmatpush1.msra.mxu0 0.0
    %2845 = vmatprep.subr.mxu0 0.0
    %2846 = vmatpush1.msra.mxu0 0.0
    %2847 = vmatprep.subr.mxu0 0.0
    %2848 = vmatpush1.msra.mxu0 0.0
    %2849 = vmatprep.subr.mxu0 0.0
    %2850 = vmatpush1.msra.mxu0 0.0
    %2851 = vmatprep.subr.mxu0 0.0
    %2852 = vmatpush1.msra.mxu0 0.0
    %2853 = vmatprep.subr.mxu0 0.0
    %2854 = vmatpush1.msra.mxu0 0.0
    %2855 = vmatprep.subr.mxu0 0.0
    %2856 = vmatpush1.msra.mxu0 0.0
    %2857 = vmatprep.mubr.f32.mxu0 0.0
    %2858 = vmatmul.mubr.f32.gmra.mrb[0].mxu0 %v2791
    %v2859 = vpop.f32.mrb[0].mxu0
    %v2860 = vadd.f32 0.0, %v2859
    %v2861 = vpop.f32.mrb[0].mxu0
    %2862 = vdwg.mxu0
    %v2863 = vadd.f32 %v2738, %v2860
    %s2864 = scalar_lea.vmem [#allocation6], 176
    %v2865 = vld [vmem:[%s2864] sm:$0xff]
    %2866 = vrot.lane.b32.xlu0 %v137, 106
    %v2867 = vpop.permute.xlu0 %2866
    %2868 = vrot.lane.b32.xlu0 %v138, 106
    %v2869 = vpop.permute.xlu0 %2868
    %2870 = vrot.lane.b32.xlu0 %v139, 106
    %v2871 = vpop.permute.xlu0 %2870
    %2872 = vrot.lane.b32.xlu0 %v140, 106
    %v2873 = vpop.permute.xlu0 %2872
    %2874 = vrot.lane.b32.xlu0 %v141, 106
    %v2875 = vpop.permute.xlu0 %2874
    %2876 = vrot.lane.b32.xlu0 %v142, 106
    %v2877 = vpop.permute.xlu0 %2876
    %2878 = vrot.lane.b32.xlu0 %v143, 106
    %v2879 = vpop.permute.xlu0 %2878
    %2880 = vrot.lane.b32.xlu0 %v144, 106
    %v2881 = vpop.permute.xlu0 %2880
    %2882 = vrot.lane.b32.xlu0 %v145, 106
    %v2883 = vpop.permute.xlu0 %2882
    %2884 = vrot.lane.b32.xlu0 %v146, 106
    %v2885 = vpop.permute.xlu0 %2884
    %2886 = vrot.lane.b32.xlu0 %v147, 106
    %v2887 = vpop.permute.xlu0 %2886
    %2888 = vrot.lane.b32.xlu0 %v148, 106
    %v2889 = vpop.permute.xlu0 %2888
    %2890 = vrot.lane.b32.xlu0 %v149, 106
    %v2891 = vpop.permute.xlu0 %2890
    %2892 = vrot.lane.b32.xlu0 %v150, 106
    %v2893 = vpop.permute.xlu0 %2892
    %2894 = vrot.lane.b32.xlu0 %v151, 106
    %v2895 = vpop.permute.xlu0 %2894
    %2896 = vrot.lane.b32.xlu0 %v152, 106
    %v2897 = vpop.permute.xlu0 %2896
    %vm2898 = vcmask 867328
    %v2899 = vsel %vm2898, %v2867, %v2869
    %v2900 = vsel %vm2898, %v2871, %v2873
    %v2901 = vsel %vm2898, %v2875, %v2877
    %v2902 = vsel %vm2898, %v2879, %v2881
    %v2903 = vsel %vm2898, %v2883, %v2885
    %v2904 = vsel %vm2898, %v2887, %v2889
    %v2905 = vsel %vm2898, %v2891, %v2893
    %v2906 = vsel %vm2898, %v2895, %v2897
    %v2916 = vsel %vm67, %v2865, 0
    %2918 = vmatprep.subr.mxu0 0.0
    %2919 = vmatpush1.msra.mxu0 %v2899
    %2920 = vmatprep.subr.mxu0 0.0
    %2921 = vmatpush1.msra.mxu0 %v2900
    %2922 = vmatprep.subr.mxu0 0.0
    %2923 = vmatpush1.msra.mxu0 %v2901
    %2924 = vmatprep.subr.mxu0 0.0
    %2925 = vmatpush1.msra.mxu0 %v2902
    %2926 = vmatprep.subr.mxu0 0.0
    %2927 = vmatpush1.msra.mxu0 %v2903
    %2928 = vmatprep.subr.mxu0 0.0
    %2929 = vmatpush1.msra.mxu0 %v2904
    %2930 = vmatprep.subr.mxu0 0.0
    %2931 = vmatpush1.msra.mxu0 %v2905
    %2932 = vmatprep.subr.mxu0 0.0
    %2933 = vmatpush1.msra.mxu0 %v2906
    %2934 = vmatprep.subr.mxu0 0.0
    %2935 = vmatpush1.msra.mxu0 0.0
    %2936 = vmatprep.subr.mxu0 0.0
    %2937 = vmatpush1.msra.mxu0 0.0
    %2938 = vmatprep.subr.mxu0 0.0
    %2939 = vmatpush1.msra.mxu0 0.0
    %2940 = vmatprep.subr.mxu0 0.0
    %2941 = vmatpush1.msra.mxu0 0.0
    %2942 = vmatprep.subr.mxu0 0.0
    %2943 = vmatpush1.msra.mxu0 0.0
    %2944 = vmatprep.subr.mxu0 0.0
    %2945 = vmatpush1.msra.mxu0 0.0
    %2946 = vmatprep.subr.mxu0 0.0
    %2947 = vmatpush1.msra.mxu0 0.0
    %2948 = vmatprep.subr.mxu0 0.0
    %2949 = vmatpush1.msra.mxu0 0.0
    %2950 = vmatprep.subr.mxu0 0.0
    %2951 = vmatpush1.msra.mxu0 0.0
    %2952 = vmatprep.subr.mxu0 0.0
    %2953 = vmatpush1.msra.mxu0 0.0
    %2954 = vmatprep.subr.mxu0 0.0
    %2955 = vmatpush1.msra.mxu0 0.0
    %2956 = vmatprep.subr.mxu0 0.0
    %2957 = vmatpush1.msra.mxu0 0.0
    %2958 = vmatprep.subr.mxu0 0.0
    %2959 = vmatpush1.msra.mxu0 0.0
    %2960 = vmatprep.subr.mxu0 0.0
    %2961 = vmatpush1.msra.mxu0 0.0
    %2962 = vmatprep.subr.mxu0 0.0
    %2963 = vmatpush1.msra.mxu0 0.0
    %2964 = vmatprep.subr.mxu0 0.0
    %2965 = vmatpush1.msra.mxu0 0.0
    %2966 = vmatprep.subr.mxu0 0.0
    %2967 = vmatpush1.msra.mxu0 0.0
    %2968 = vmatprep.subr.mxu0 0.0
    %2969 = vmatpush1.msra.mxu0 0.0
    %2970 = vmatprep.subr.mxu0 0.0
    %2971 = vmatpush1.msra.mxu0 0.0
    %2972 = vmatprep.subr.mxu0 0.0
    %2973 = vmatpush1.msra.mxu0 0.0
    %2974 = vmatprep.subr.mxu0 0.0
    %2975 = vmatpush1.msra.mxu0 0.0
    %2976 = vmatprep.subr.mxu0 0.0
    %2977 = vmatpush1.msra.mxu0 0.0
    %2978 = vmatprep.subr.mxu0 0.0
    %2979 = vmatpush1.msra.mxu0 0.0
    %2980 = vmatprep.subr.mxu0 0.0
    %2981 = vmatpush1.msra.mxu0 0.0
    %2982 = vmatprep.mubr.f32.mxu0 0.0
    %2983 = vmatmul.mubr.f32.gmra.mrb[0].mxu0 %v2916
    %v2984 = vpop.f32.mrb[0].mxu0
    %v2985 = vadd.f32 0.0, %v2984
    %v2986 = vpop.f32.mrb[0].mxu0
    %2987 = vdwg.mxu0
    %v2988 = vadd.f32 %v2863, %v2985
    %s2989 = scalar_lea.vmem [#allocation6], 184
    %v2990 = vld [vmem:[%s2989] sm:$0xff]
    %2991 = vrot.lane.b32.xlu0 %v137, 105
    %v2992 = vpop.permute.xlu0 %2991
    %2993 = vrot.lane.b32.xlu0 %v138, 105
    %v2994 = vpop.permute.xlu0 %2993
    %2995 = vrot.lane.b32.xlu0 %v139, 105
    %v2996 = vpop.permute.xlu0 %2995
    %2997 = vrot.lane.b32.xlu0 %v140, 105
    %v2998 = vpop.permute.xlu0 %2997
    %2999 = vrot.lane.b32.xlu0 %v141, 105
    %v3000 = vpop.permute.xlu0 %2999
    %3001 = vrot.lane.b32.xlu0 %v142, 105
    %v3002 = vpop.permute.xlu0 %3001
    %3003 = vrot.lane.b32.xlu0 %v143, 105
    %v3004 = vpop.permute.xlu0 %3003
    %3005 = vrot.lane.b32.xlu0 %v144, 105
    %v3006 = vpop.permute.xlu0 %3005
    %3007 = vrot.lane.b32.xlu0 %v145, 105
    %v3008 = vpop.permute.xlu0 %3007
    %3009 = vrot.lane.b32.xlu0 %v146, 105
    %v3010 = vpop.permute.xlu0 %3009
    %3011 = vrot.lane.b32.xlu0 %v147, 105
    %v3012 = vpop.permute.xlu0 %3011
    %3013 = vrot.lane.b32.xlu0 %v148, 105
    %v3014 = vpop.permute.xlu0 %3013
    %3015 = vrot.lane.b32.xlu0 %v149, 105
    %v3016 = vpop.permute.xlu0 %3015
    %3017 = vrot.lane.b32.xlu0 %v150, 105
    %v3018 = vpop.permute.xlu0 %3017
    %3019 = vrot.lane.b32.xlu0 %v151, 105
    %v3020 = vpop.permute.xlu0 %3019
    %3021 = vrot.lane.b32.xlu0 %v152, 105
    %v3022 = vpop.permute.xlu0 %3021
    %vm3023 = vcmask 859136
    %v3024 = vsel %vm3023, %v2992, %v2994
    %v3025 = vsel %vm3023, %v2996, %v2998
    %v3026 = vsel %vm3023, %v3000, %v3002
    %v3027 = vsel %vm3023, %v3004, %v3006
    %v3028 = vsel %vm3023, %v3008, %v3010
    %v3029 = vsel %vm3023, %v3012, %v3014
    %v3030 = vsel %vm3023, %v3016, %v3018
    %v3031 = vsel %vm3023, %v3020, %v3022
    %v3041 = vsel %vm67, %v2990, 0
    %3043 = vmatprep.subr.mxu0 0.0
    %3044 = vmatpush1.msra.mxu0 %v3024
    %3045 = vmatprep.subr.mxu0 0.0
    %3046 = vmatpush1.msra.mxu0 %v3025
    %3047 = vmatprep.subr.mxu0 0.0
    %3048 = vmatpush1.msra.mxu0 %v3026
    %3049 = vmatprep.subr.mxu0 0.0
    %3050 = vmatpush1.msra.mxu0 %v3027
    %3051 = vmatprep.subr.mxu0 0.0
    %3052 = vmatpush1.msra.mxu0 %v3028
    %3053 = vmatprep.subr.mxu0 0.0
    %3054 = vmatpush1.msra.mxu0 %v3029
    %3055 = vmatprep.subr.mxu0 0.0
    %3056 = vmatpush1.msra.mxu0 %v3030
    %3057 = vmatprep.subr.mxu0 0.0
    %3058 = vmatpush1.msra.mxu0 %v3031
    %3059 = vmatprep.subr.mxu0 0.0
    %3060 = vmatpush1.msra.mxu0 0.0
    %3061 = vmatprep.subr.mxu0 0.0
    %3062 = vmatpush1.msra.mxu0 0.0
    %3063 = vmatprep.subr.mxu0 0.0
    %3064 = vmatpush1.msra.mxu0 0.0
    %3065 = vmatprep.subr.mxu0 0.0
    %3066 = vmatpush1.msra.mxu0 0.0
    %3067 = vmatprep.subr.mxu0 0.0
    %3068 = vmatpush1.msra.mxu0 0.0
    %3069 = vmatprep.subr.mxu0 0.0
    %3070 = vmatpush1.msra.mxu0 0.0
    %3071 = vmatprep.subr.mxu0 0.0
    %3072 = vmatpush1.msra.mxu0 0.0
    %3073 = vmatprep.subr.mxu0 0.0
    %3074 = vmatpush1.msra.mxu0 0.0
    %3075 = vmatprep.subr.mxu0 0.0
    %3076 = vmatpush1.msra.mxu0 0.0
    %3077 = vmatprep.subr.mxu0 0.0
    %3078 = vmatpush1.msra.mxu0 0.0
    %3079 = vmatprep.subr.mxu0 0.0
    %3080 = vmatpush1.msra.mxu0 0.0
    %3081 = vmatprep.subr.mxu0 0.0
    %3082 = vmatpush1.msra.mxu0 0.0
    %3083 = vmatprep.subr.mxu0 0.0
    %3084 = vmatpush1.msra.mxu0 0.0
    %3085 = vmatprep.subr.mxu0 0.0
    %3086 = vmatpush1.msra.mxu0 0.0
    %3087 = vmatprep.subr.mxu0 0.0
    %3088 = vmatpush1.msra.mxu0 0.0
    %3089 = vmatprep.subr.mxu0 0.0
    %3090 = vmatpush1.msra.mxu0 0.0
    %3091 = vmatprep.subr.mxu0 0.0
    %3092 = vmatpush1.msra.mxu0 0.0
    %3093 = vmatprep.subr.mxu0 0.0
    %3094 = vmatpush1.msra.mxu0 0.0
    %3095 = vmatprep.subr.mxu0 0.0
    %3096 = vmatpush1.msra.mxu0 0.0
    %3097 = vmatprep.subr.mxu0 0.0
    %3098 = vmatpush1.msra.mxu0 0.0
    %3099 = vmatprep.subr.mxu0 0.0
    %3100 = vmatpush1.msra.mxu0 0.0
    %3101 = vmatprep.subr.mxu0 0.0
    %3102 = vmatpush1.msra.mxu0 0.0
    %3103 = vmatprep.subr.mxu0 0.0
    %3104 = vmatpush1.msra.mxu0 0.0
    %3105 = vmatprep.subr.mxu0 0.0
    %3106 = vmatpush1.msra.mxu0 0.0
    %3107 = vmatprep.mubr.f32.mxu0 0.0
    %3108 = vmatmul.mubr.f32.gmra.mrb[0].mxu0 %v3041
    %v3109 = vpop.f32.mrb[0].mxu0
    %v3110 = vadd.f32 0.0, %v3109
    %v3111 = vpop.f32.mrb[0].mxu0
    %3112 = vdwg.mxu0
    %v3113 = vadd.f32 %v2988, %v3110
    %s3114 = scalar_lea.vmem [#allocation6], 192
    %v3115 = vld [vmem:[%s3114] sm:$0xff]
    %3116 = vrot.lane.b32.xlu0 %v137, 104
    %v3117 = vpop.permute.xlu0 %3116
    %3118 = vrot.lane.b32.xlu0 %v138, 104
    %v3119 = vpop.permute.xlu0 %3118
    %3120 = vrot.lane.b32.xlu0 %v139, 104
    %v3121 = vpop.permute.xlu0 %3120
    %3122 = vrot.lane.b32.xlu0 %v140, 104
    %v3123 = vpop.permute.xlu0 %3122
    %3124 = vrot.lane.b32.xlu0 %v141, 104
    %v3125 = vpop.permute.xlu0 %3124
    %3126 = vrot.lane.b32.xlu0 %v142, 104
    %v3127 = vpop.permute.xlu0 %3126
    %3128 = vrot.lane.b32.xlu0 %v143, 104
    %v3129 = vpop.permute.xlu0 %3128
    %3130 = vrot.lane.b32.xlu0 %v144, 104
    %v3131 = vpop.permute.xlu0 %3130
    %3132 = vrot.lane.b32.xlu0 %v145, 104
    %v3133 = vpop.permute.xlu0 %3132
    %3134 = vrot.lane.b32.xlu0 %v146, 104
    %v3135 = vpop.permute.xlu0 %3134
    %3136 = vrot.lane.b32.xlu0 %v147, 104
    %v3137 = vpop.permute.xlu0 %3136
    %3138 = vrot.lane.b32.xlu0 %v148, 104
    %v3139 = vpop.permute.xlu0 %3138
    %3140 = vrot.lane.b32.xlu0 %v149, 104
    %v3141 = vpop.permute.xlu0 %3140
    %3142 = vrot.lane.b32.xlu0 %v150, 104
    %v3143 = vpop.permute.xlu0 %3142
    %3144 = vrot.lane.b32.xlu0 %v151, 104
    %v3145 = vpop.permute.xlu0 %3144
    %3146 = vrot.lane.b32.xlu0 %v152, 104
    %v3147 = vpop.permute.xlu0 %3146
    %vm3148 = vcmask 850944
    %v3149 = vsel %vm3148, %v3117, %v3119
    %v3150 = vsel %vm3148, %v3121, %v3123
    %v3151 = vsel %vm3148, %v3125, %v3127
    %v3152 = vsel %vm3148, %v3129, %v3131
    %v3153 = vsel %vm3148, %v3133, %v3135
    %v3154 = vsel %vm3148, %v3137, %v3139
    %v3155 = vsel %vm3148, %v3141, %v3143
    %v3156 = vsel %vm3148, %v3145, %v3147
    %v3166 = vsel %vm67, %v3115, 0
    %3168 = vmatprep.subr.mxu0 0.0
    %3169 = vmatpush1.msra.mxu0 %v3149
    %3170 = vmatprep.subr.mxu0 0.0
    %3171 = vmatpush1.msra.mxu0 %v3150
    %3172 = vmatprep.subr.mxu0 0.0
    %3173 = vmatpush1.msra.mxu0 %v3151
    %3174 = vmatprep.subr.mxu0 0.0
    %3175 = vmatpush1.msra.mxu0 %v3152
    %3176 = vmatprep.subr.mxu0 0.0
    %3177 = vmatpush1.msra.mxu0 %v3153
    %3178 = vmatprep.subr.mxu0 0.0
    %3179 = vmatpush1.msra.mxu0 %v3154
    %3180 = vmatprep.subr.mxu0 0.0
    %3181 = vmatpush1.msra.mxu0 %v3155
    %3182 = vmatprep.subr.mxu0 0.0
    %3183 = vmatpush1.msra.mxu0 %v3156
    %3184 = vmatprep.subr.mxu0 0.0
    %3185 = vmatpush1.msra.mxu0 0.0
    %3186 = vmatprep.subr.mxu0 0.0
    %3187 = vmatpush1.msra.mxu0 0.0
    %3188 = vmatprep.subr.mxu0 0.0
    %3189 = vmatpush1.msra.mxu0 0.0
    %3190 = vmatprep.subr.mxu0 0.0
    %3191 = vmatpush1.msra.mxu0 0.0
    %3192 = vmatprep.subr.mxu0 0.0
    %3193 = vmatpush1.msra.mxu0 0.0
    %3194 = vmatprep.subr.mxu0 0.0
    %3195 = vmatpush1.msra.mxu0 0.0
    %3196 = vmatprep.subr.mxu0 0.0
    %3197 = vmatpush1.msra.mxu0 0.0
    %3198 = vmatprep.subr.mxu0 0.0
    %3199 = vmatpush1.msra.mxu0 0.0
    %3200 = vmatprep.subr.mxu0 0.0
    %3201 = vmatpush1.msra.mxu0 0.0
    %3202 = vmatprep.subr.mxu0 0.0
    %3203 = vmatpush1.msra.mxu0 0.0
    %3204 = vmatprep.subr.mxu0 0.0
    %3205 = vmatpush1.msra.mxu0 0.0
    %3206 = vmatprep.subr.mxu0 0.0
    %3207 = vmatpush1.msra.mxu0 0.0
    %3208 = vmatprep.subr.mxu0 0.0
    %3209 = vmatpush1.msra.mxu0 0.0
    %3210 = vmatprep.subr.mxu0 0.0
    %3211 = vmatpush1.msra.mxu0 0.0
    %3212 = vmatprep.subr.mxu0 0.0
    %3213 = vmatpush1.msra.mxu0 0.0
    %3214 = vmatprep.subr.mxu0 0.0
    %3215 = vmatpush1.msra.mxu0 0.0
    %3216 = vmatprep.subr.mxu0 0.0
    %3217 = vmatpush1.msra.mxu0 0.0
    %3218 = vmatprep.subr.mxu0 0.0
    %3219 = vmatpush1.msra.mxu0 0.0
    %3220 = vmatprep.subr.mxu0 0.0
    %3221 = vmatpush1.msra.mxu0 0.0
    %3222 = vmatprep.subr.mxu0 0.0
    %3223 = vmatpush1.msra.mxu0 0.0
    %3224 = vmatprep.subr.mxu0 0.0
    %3225 = vmatpush1.msra.mxu0 0.0
    %3226 = vmatprep.subr.mxu0 0.0
    %3227 = vmatpush1.msra.mxu0 0.0
    %3228 = vmatprep.subr.mxu0 0.0
    %3229 = vmatpush1.msra.mxu0 0.0
    %3230 = vmatprep.subr.mxu0 0.0
    %3231 = vmatpush1.msra.mxu0 0.0
    %3232 = vmatprep.mubr.f32.mxu0 0.0
    %3233 = vmatmul.mubr.f32.gmra.mrb[0].mxu0 %v3166
    %v3234 = vpop.f32.mrb[0].mxu0
    %v3235 = vadd.f32 0.0, %v3234
    %v3236 = vpop.f32.mrb[0].mxu0
    %3237 = vdwg.mxu0
    %v3238 = vadd.f32 %v3113, %v3235
    %s3239 = scalar_lea.vmem [#allocation6], 200
    %v3240 = vld [vmem:[%s3239] sm:$0xff]
    %3241 = vrot.lane.b32.xlu0 %v137, 103
    %v3242 = vpop.permute.xlu0 %3241
    %3243 = vrot.lane.b32.xlu0 %v138, 103
    %v3244 = vpop.permute.xlu0 %3243
    %3245 = vrot.lane.b32.xlu0 %v139, 103
    %v3246 = vpop.permute.xlu0 %3245
    %3247 = vrot.lane.b32.xlu0 %v140, 103
    %v3248 = vpop.permute.xlu0 %3247
    %3249 = vrot.lane.b32.xlu0 %v141, 103
    %v3250 = vpop.permute.xlu0 %3249
    %3251 = vrot.lane.b32.xlu0 %v142, 103
    %v3252 = vpop.permute.xlu0 %3251
    %3253 = vrot.lane.b32.xlu0 %v143, 103
    %v3254 = vpop.permute.xlu0 %3253
    %3255 = vrot.lane.b32.xlu0 %v144, 103
    %v3256 = vpop.permute.xlu0 %3255
    %3257 = vrot.lane.b32.xlu0 %v145, 103
    %v3258 = vpop.permute.xlu0 %3257
    %3259 = vrot.lane.b32.xlu0 %v146, 103
    %v3260 = vpop.permute.xlu0 %3259
    %3261 = vrot.lane.b32.xlu0 %v147, 103
    %v3262 = vpop.permute.xlu0 %3261
    %3263 = vrot.lane.b32.xlu0 %v148, 103
    %v3264 = vpop.permute.xlu0 %3263
    %3265 = vrot.lane.b32.xlu0 %v149, 103
    %v3266 = vpop.permute.xlu0 %3265
    %3267 = vrot.lane.b32.xlu0 %v150, 103
    %v3268 = vpop.permute.xlu0 %3267
    %3269 = vrot.lane.b32.xlu0 %v151, 103
    %v3270 = vpop.permute.xlu0 %3269
    %3271 = vrot.lane.b32.xlu0 %v152, 103
    %v3272 = vpop.permute.xlu0 %3271
    %vm3273 = vcmask 842752
    %v3274 = vsel %vm3273, %v3242, %v3244
    %v3275 = vsel %vm3273, %v3246, %v3248
    %v3276 = vsel %vm3273, %v3250, %v3252
    %v3277 = vsel %vm3273, %v3254, %v3256
    %v3278 = vsel %vm3273, %v3258, %v3260
    %v3279 = vsel %vm3273, %v3262, %v3264
    %v3280 = vsel %vm3273, %v3266, %v3268
    %v3281 = vsel %vm3273, %v3270, %v3272
    %v3291 = vsel %vm67, %v3240, 0
    %3293 = vmatprep.subr.mxu0 0.0
    %3294 = vmatpush1.msra.mxu0 %v3274
    %3295 = vmatprep.subr.mxu0 0.0
    %3296 = vmatpush1.msra.mxu0 %v3275
    %3297 = vmatprep.subr.mxu0 0.0
    %3298 = vmatpush1.msra.mxu0 %v3276
    %3299 = vmatprep.subr.mxu0 0.0
    %3300 = vmatpush1.msra.mxu0 %v3277
    %3301 = vmatprep.subr.mxu0 0.0
    %3302 = vmatpush1.msra.mxu0 %v3278
    %3303 = vmatprep.subr.mxu0 0.0
    %3304 = vmatpush1.msra.mxu0 %v3279
    %3305 = vmatprep.subr.mxu0 0.0
    %3306 = vmatpush1.msra.mxu0 %v3280
    %3307 = vmatprep.subr.mxu0 0.0
    %3308 = vmatpush1.msra.mxu0 %v3281
    %3309 = vmatprep.subr.mxu0 0.0
    %3310 = vmatpush1.msra.mxu0 0.0
    %3311 = vmatprep.subr.mxu0 0.0
    %3312 = vmatpush1.msra.mxu0 0.0
    %3313 = vmatprep.subr.mxu0 0.0
    %3314 = vmatpush1.msra.mxu0 0.0
    %3315 = vmatprep.subr.mxu0 0.0
    %3316 = vmatpush1.msra.mxu0 0.0
    %3317 = vmatprep.subr.mxu0 0.0
    %3318 = vmatpush1.msra.mxu0 0.0
    %3319 = vmatprep.subr.mxu0 0.0
    %3320 = vmatpush1.msra.mxu0 0.0
    %3321 = vmatprep.subr.mxu0 0.0
    %3322 = vmatpush1.msra.mxu0 0.0
    %3323 = vmatprep.subr.mxu0 0.0
    %3324 = vmatpush1.msra.mxu0 0.0
    %3325 = vmatprep.subr.mxu0 0.0
    %3326 = vmatpush1.msra.mxu0 0.0
    %3327 = vmatprep.subr.mxu0 0.0
    %3328 = vmatpush1.msra.mxu0 0.0
    %3329 = vmatprep.subr.mxu0 0.0
    %3330 = vmatpush1.msra.mxu0 0.0
    %3331 = vmatprep.subr.mxu0 0.0
    %3332 = vmatpush1.msra.mxu0 0.0
    %3333 = vmatprep.subr.mxu0 0.0
    %3334 = vmatpush1.msra.mxu0 0.0
    %3335 = vmatprep.subr.mxu0 0.0
    %3336 = vmatpush1.msra.mxu0 0.0
    %3337 = vmatprep.subr.mxu0 0.0
    %3338 = vmatpush1.msra.mxu0 0.0
    %3339 = vmatprep.subr.mxu0 0.0
    %3340 = vmatpush1.msra.mxu0 0.0
    %3341 = vmatprep.subr.mxu0 0.0
    %3342 = vmatpush1.msra.mxu0 0.0
    %3343 = vmatprep.subr.mxu0 0.0
    %3344 = vmatpush1.msra.mxu0 0.0
    %3345 = vmatprep.subr.mxu0 0.0
    %3346 = vmatpush1.msra.mxu0 0.0
    %3347 = vmatprep.subr.mxu0 0.0
    %3348 = vmatpush1.msra.mxu0 0.0
    %3349 = vmatprep.subr.mxu0 0.0
    %3350 = vmatpush1.msra.mxu0 0.0
    %3351 = vmatprep.subr.mxu0 0.0
    %3352 = vmatpush1.msra.mxu0 0.0
    %3353 = vmatprep.subr.mxu0 0.0
    %3354 = vmatpush1.msra.mxu0 0.0
    %3355 = vmatprep.subr.mxu0 0.0
    %3356 = vmatpush1.msra.mxu0 0.0
    %3357 = vmatprep.mubr.f32.mxu0 0.0
    %3358 = vmatmul.mubr.f32.gmra.mrb[0].mxu0 %v3291
    %v3359 = vpop.f32.mrb[0].mxu0
    %v3360 = vadd.f32 0.0, %v3359
    %v3361 = vpop.f32.mrb[0].mxu0
    %3362 = vdwg.mxu0
    %v3363 = vadd.f32 %v3238, %v3360
    %s3364 = scalar_lea.vmem [#allocation6], 208
    %v3365 = vld [vmem:[%s3364] sm:$0xff]
    %3366 = vrot.lane.b32.xlu0 %v137, 102
    %v3367 = vpop.permute.xlu0 %3366
    %3368 = vrot.lane.b32.xlu0 %v138, 102
    %v3369 = vpop.permute.xlu0 %3368
    %3370 = vrot.lane.b32.xlu0 %v139, 102
    %v3371 = vpop.permute.xlu0 %3370
    %3372 = vrot.lane.b32.xlu0 %v140, 102
    %v3373 = vpop.permute.xlu0 %3372
    %3374 = vrot.lane.b32.xlu0 %v141, 102
    %v3375 = vpop.permute.xlu0 %3374
    %3376 = vrot.lane.b32.xlu0 %v142, 102
    %v3377 = vpop.permute.xlu0 %3376
    %3378 = vrot.lane.b32.xlu0 %v143, 102
    %v3379 = vpop.permute.xlu0 %3378
    %3380 = vrot.lane.b32.xlu0 %v144, 102
    %v3381 = vpop.permute.xlu0 %3380
    %3382 = vrot.lane.b32.xlu0 %v145, 102
    %v3383 = vpop.permute.xlu0 %3382
    %3384 = vrot.lane.b32.xlu0 %v146, 102
    %v3385 = vpop.permute.xlu0 %3384
    %3386 = vrot.lane.b32.xlu0 %v147, 102
    %v3387 = vpop.permute.xlu0 %3386
    %3388 = vrot.lane.b32.xlu0 %v148, 102
    %v3389 = vpop.permute.xlu0 %3388
    %3390 = vrot.lane.b32.xlu0 %v149, 102
    %v3391 = vpop.permute.xlu0 %3390
    %3392 = vrot.lane.b32.xlu0 %v150, 102
    %v3393 = vpop.permute.xlu0 %3392
    %3394 = vrot.lane.b32.xlu0 %v151, 102
    %v3395 = vpop.permute.xlu0 %3394
    %3396 = vrot.lane.b32.xlu0 %v152, 102
    %v3397 = vpop.permute.xlu0 %3396
    %vm3398 = vcmask 834560
    %v3399 = vsel %vm3398, %v3367, %v3369
    %v3400 = vsel %vm3398, %v3371, %v3373
    %v3401 = vsel %vm3398, %v3375, %v3377
    %v3402 = vsel %vm3398, %v3379, %v3381
    %v3403 = vsel %vm3398, %v3383, %v3385
    %v3404 = vsel %vm3398, %v3387, %v3389
    %v3405 = vsel %vm3398, %v3391, %v3393
    %v3406 = vsel %vm3398, %v3395, %v3397
    %v3416 = vsel %vm67, %v3365, 0
    %3418 = vmatprep.subr.mxu0 0.0
    %3419 = vmatpush1.msra.mxu0 %v3399
    %3420 = vmatprep.subr.mxu0 0.0
    %3421 = vmatpush1.msra.mxu0 %v3400
    %3422 = vmatprep.subr.mxu0 0.0
    %3423 = vmatpush1.msra.mxu0 %v3401
    %3424 = vmatprep.subr.mxu0 0.0
    %3425 = vmatpush1.msra.mxu0 %v3402
    %3426 = vmatprep.subr.mxu0 0.0
    %3427 = vmatpush1.msra.mxu0 %v3403
    %3428 = vmatprep.subr.mxu0 0.0
    %3429 = vmatpush1.msra.mxu0 %v3404
    %3430 = vmatprep.subr.mxu0 0.0
    %3431 = vmatpush1.msra.mxu0 %v3405
    %3432 = vmatprep.subr.mxu0 0.0
    %3433 = vmatpush1.msra.mxu0 %v3406
    %3434 = vmatprep.subr.mxu0 0.0
    %3435 = vmatpush1.msra.mxu0 0.0
    %3436 = vmatprep.subr.mxu0 0.0
    %3437 = vmatpush1.msra.mxu0 0.0
    %3438 = vmatprep.subr.mxu0 0.0
    %3439 = vmatpush1.msra.mxu0 0.0
    %3440 = vmatprep.subr.mxu0 0.0
    %3441 = vmatpush1.msra.mxu0 0.0
    %3442 = vmatprep.subr.mxu0 0.0
    %3443 = vmatpush1.msra.mxu0 0.0
    %3444 = vmatprep.subr.mxu0 0.0
    %3445 = vmatpush1.msra.mxu0 0.0
    %3446 = vmatprep.subr.mxu0 0.0
    %3447 = vmatpush1.msra.mxu0 0.0
    %3448 = vmatprep.subr.mxu0 0.0
    %3449 = vmatpush1.msra.mxu0 0.0
    %3450 = vmatprep.subr.mxu0 0.0
    %3451 = vmatpush1.msra.mxu0 0.0
    %3452 = vmatprep.subr.mxu0 0.0
    %3453 = vmatpush1.msra.mxu0 0.0
    %3454 = vmatprep.subr.mxu0 0.0
    %3455 = vmatpush1.msra.mxu0 0.0
    %3456 = vmatprep.subr.mxu0 0.0
    %3457 = vmatpush1.msra.mxu0 0.0
    %3458 = vmatprep.subr.mxu0 0.0
    %3459 = vmatpush1.msra.mxu0 0.0
    %3460 = vmatprep.subr.mxu0 0.0
    %3461 = vmatpush1.msra.mxu0 0.0
    %3462 = vmatprep.subr.mxu0 0.0
    %3463 = vmatpush1.msra.mxu0 0.0
    %3464 = vmatprep.subr.mxu0 0.0
    %3465 = vmatpush1.msra.mxu0 0.0
    %3466 = vmatprep.subr.mxu0 0.0
    %3467 = vmatpush1.msra.mxu0 0.0
    %3468 = vmatprep.subr.mxu0 0.0
    %3469 = vmatpush1.msra.mxu0 0.0
    %3470 = vmatprep.subr.mxu0 0.0
    %3471 = vmatpush1.msra.mxu0 0.0
    %3472 = vmatprep.subr.mxu0 0.0
    %3473 = vmatpush1.msra.mxu0 0.0
    %3474 = vmatprep.subr.mxu0 0.0
    %3475 = vmatpush1.msra.mxu0 0.0
    %3476 = vmatprep.subr.mxu0 0.0
    %3477 = vmatpush1.msra.mxu0 0.0
    %3478 = vmatprep.subr.mxu0 0.0
    %3479 = vmatpush1.msra.mxu0 0.0
    %3480 = vmatprep.subr.mxu0 0.0
    %3481 = vmatpush1.msra.mxu0 0.0
    %3482 = vmatprep.mubr.f32.mxu0 0.0
    %3483 = vmatmul.mubr.f32.gmra.mrb[0].mxu0 %v3416
    %v3484 = vpop.f32.mrb[0].mxu0
    %v3485 = vadd.f32 0.0, %v3484
    %v3486 = vpop.f32.mrb[0].mxu0
    %3487 = vdwg.mxu0
    %v3488 = vadd.f32 %v3363, %v3485
    %s3489 = scalar_lea.vmem [#allocation6], 216
    %v3490 = vld [vmem:[%s3489] sm:$0xff]
    %3491 = vrot.lane.b32.xlu0 %v137, 101
    %v3492 = vpop.permute.xlu0 %3491
    %3493 = vrot.lane.b32.xlu0 %v138, 101
    %v3494 = vpop.permute.xlu0 %3493
    %3495 = vrot.lane.b32.xlu0 %v139, 101
    %v3496 = vpop.permute.xlu0 %3495
    %3497 = vrot.lane.b32.xlu0 %v140, 101
    %v3498 = vpop.permute.xlu0 %3497
    %3499 = vrot.lane.b32.xlu0 %v141, 101
    %v3500 = vpop.permute.xlu0 %3499
    %3501 = vrot.lane.b32.xlu0 %v142, 101
    %v3502 = vpop.permute.xlu0 %3501
    %3503 = vrot.lane.b32.xlu0 %v143, 101
    %v3504 = vpop.permute.xlu0 %3503
    %3505 = vrot.lane.b32.xlu0 %v144, 101
    %v3506 = vpop.permute.xlu0 %3505
    %3507 = vrot.lane.b32.xlu0 %v145, 101
    %v3508 = vpop.permute.xlu0 %3507
    %3509 = vrot.lane.b32.xlu0 %v146, 101
    %v3510 = vpop.permute.xlu0 %3509
    %3511 = vrot.lane.b32.xlu0 %v147, 101
    %v3512 = vpop.permute.xlu0 %3511
    %3513 = vrot.lane.b32.xlu0 %v148, 101
    %v3514 = vpop.permute.xlu0 %3513
    %3515 = vrot.lane.b32.xlu0 %v149, 101
    %v3516 = vpop.permute.xlu0 %3515
    %3517 = vrot.lane.b32.xlu0 %v150, 101
    %v3518 = vpop.permute.xlu0 %3517
    %3519 = vrot.lane.b32.xlu0 %v151, 101
    %v3520 = vpop.permute.xlu0 %3519
    %3521 = vrot.lane.b32.xlu0 %v152, 101
    %v3522 = vpop.permute.xlu0 %3521
    %vm3523 = vcmask 826368
    %v3524 = vsel %vm3523, %v3492, %v3494
    %v3525 = vsel %vm3523, %v3496, %v3498
    %v3526 = vsel %vm3523, %v3500, %v3502
    %v3527 = vsel %vm3523, %v3504, %v3506
    %v3528 = vsel %vm3523, %v3508, %v3510
    %v3529 = vsel %vm3523, %v3512, %v3514
    %v3530 = vsel %vm3523, %v3516, %v3518
    %v3531 = vsel %vm3523, %v3520, %v3522
    %v3541 = vsel %vm67, %v3490, 0
    %3543 = vmatprep.subr.mxu0 0.0
    %3544 = vmatpush1.msra.mxu0 %v3524
    %3545 = vmatprep.subr.mxu0 0.0
    %3546 = vmatpush1.msra.mxu0 %v3525
    %3547 = vmatprep.subr.mxu0 0.0
    %3548 = vmatpush1.msra.mxu0 %v3526
    %3549 = vmatprep.subr.mxu0 0.0
    %3550 = vmatpush1.msra.mxu0 %v3527
    %3551 = vmatprep.subr.mxu0 0.0
    %3552 = vmatpush1.msra.mxu0 %v3528
    %3553 = vmatprep.subr.mxu0 0.0
    %3554 = vmatpush1.msra.mxu0 %v3529
    %3555 = vmatprep.subr.mxu0 0.0
    %3556 = vmatpush1.msra.mxu0 %v3530
    %3557 = vmatprep.subr.mxu0 0.0
    %3558 = vmatpush1.msra.mxu0 %v3531
    %3559 = vmatprep.subr.mxu0 0.0
    %3560 = vmatpush1.msra.mxu0 0.0
    %3561 = vmatprep.subr.mxu0 0.0
    %3562 = vmatpush1.msra.mxu0 0.0
    %3563 = vmatprep.subr.mxu0 0.0
    %3564 = vmatpush1.msra.mxu0 0.0
    %3565 = vmatprep.subr.mxu0 0.0
    %3566 = vmatpush1.msra.mxu0 0.0
    %3567 = vmatprep.subr.mxu0 0.0
    %3568 = vmatpush1.msra.mxu0 0.0
    %3569 = vmatprep.subr.mxu0 0.0
    %3570 = vmatpush1.msra.mxu0 0.0
    %3571 = vmatprep.subr.mxu0 0.0
    %3572 = vmatpush1.msra.mxu0 0.0
    %3573 = vmatprep.subr.mxu0 0.0
    %3574 = vmatpush1.msra.mxu0 0.0
    %3575 = vmatprep.subr.mxu0 0.0
    %3576 = vmatpush1.msra.mxu0 0.0
    %3577 = vmatprep.subr.mxu0 0.0
    %3578 = vmatpush1.msra.mxu0 0.0
    %3579 = vmatprep.subr.mxu0 0.0
    %3580 = vmatpush1.msra.mxu0 0.0
    %3581 = vmatprep.subr.mxu0 0.0
    %3582 = vmatpush1.msra.mxu0 0.0
    %3583 = vmatprep.subr.mxu0 0.0
    %3584 = vmatpush1.msra.mxu0 0.0
    %3585 = vmatprep.subr.mxu0 0.0
    %3586 = vmatpush1.msra.mxu0 0.0
    %3587 = vmatprep.subr.mxu0 0.0
    %3588 = vmatpush1.msra.mxu0 0.0
    %3589 = vmatprep.subr.mxu0 0.0
    %3590 = vmatpush1.msra.mxu0 0.0
    %3591 = vmatprep.subr.mxu0 0.0
    %3592 = vmatpush1.msra.mxu0 0.0
    %3593 = vmatprep.subr.mxu0 0.0
    %3594 = vmatpush1.msra.mxu0 0.0
    %3595 = vmatprep.subr.mxu0 0.0
    %3596 = vmatpush1.msra.mxu0 0.0
    %3597 = vmatprep.subr.mxu0 0.0
    %3598 = vmatpush1.msra.mxu0 0.0
    %3599 = vmatprep.subr.mxu0 0.0
    %3600 = vmatpush1.msra.mxu0 0.0
    %3601 = vmatprep.subr.mxu0 0.0
    %3602 = vmatpush1.msra.mxu0 0.0
    %3603 = vmatprep.subr.mxu0 0.0
    %3604 = vmatpush1.msra.mxu0 0.0
    %3605 = vmatprep.subr.mxu0 0.0
    %3606 = vmatpush1.msra.mxu0 0.0
    %3607 = vmatprep.mubr.f32.mxu0 0.0
    %3608 = vmatmul.mubr.f32.gmra.mrb[0].mxu0 %v3541
    %v3609 = vpop.f32.mrb[0].mxu0
    %v3610 = vadd.f32 0.0, %v3609
    %v3611 = vpop.f32.mrb[0].mxu0
    %3612 = vdwg.mxu0
    %v3613 = vadd.f32 %v3488, %v3610
    %s3614 = scalar_lea.vmem [#allocation6], 224
    %v3615 = vld [vmem:[%s3614] sm:$0xff]
    %3616 = vrot.lane.b32.xlu0 %v137, 100
    %v3617 = vpop.permute.xlu0 %3616
    %3618 = vrot.lane.b32.xlu0 %v138, 100
    %v3619 = vpop.permute.xlu0 %3618
    %3620 = vrot.lane.b32.xlu0 %v139, 100
    %v3621 = vpop.permute.xlu0 %3620
    %3622 = vrot.lane.b32.xlu0 %v140, 100
    %v3623 = vpop.permute.xlu0 %3622
    %3624 = vrot.lane.b32.xlu0 %v141, 100
    %v3625 = vpop.permute.xlu0 %3624
    %3626 = vrot.lane.b32.xlu0 %v142, 100
    %v3627 = vpop.permute.xlu0 %3626
    %3628 = vrot.lane.b32.xlu0 %v143, 100
    %v3629 = vpop.permute.xlu0 %3628
    %3630 = vrot.lane.b32.xlu0 %v144, 100
    %v3631 = vpop.permute.xlu0 %3630
    %3632 = vrot.lane.b32.xlu0 %v145, 100
    %v3633 = vpop.permute.xlu0 %3632
    %3634 = vrot.lane.b32.xlu0 %v146, 100
    %v3635 = vpop.permute.xlu0 %3634
    %3636 = vrot.lane.b32.xlu0 %v147, 100
    %v3637 = vpop.permute.xlu0 %3636
    %3638 = vrot.lane.b32.xlu0 %v148, 100
    %v3639 = vpop.permute.xlu0 %3638
    %3640 = vrot.lane.b32.xlu0 %v149, 100
    %v3641 = vpop.permute.xlu0 %3640
    %3642 = vrot.lane.b32.xlu0 %v150, 100
    %v3643 = vpop.permute.xlu0 %3642
    %3644 = vrot.lane.b32.xlu0 %v151, 100
    %v3645 = vpop.permute.xlu0 %3644
    %3646 = vrot.lane.b32.xlu0 %v152, 100
    %v3647 = vpop.permute.xlu0 %3646
    %vm3648 = vcmask 818176
    %v3649 = vsel %vm3648, %v3617, %v3619
    %v3650 = vsel %vm3648, %v3621, %v3623
    %v3651 = vsel %vm3648, %v3625, %v3627
    %v3652 = vsel %vm3648, %v3629, %v3631
    %v3653 = vsel %vm3648, %v3633, %v3635
    %v3654 = vsel %vm3648, %v3637, %v3639
    %v3655 = vsel %vm3648, %v3641, %v3643
    %v3656 = vsel %vm3648, %v3645, %v3647
    %v3666 = vsel %vm67, %v3615, 0
    %3668 = vmatprep.subr.mxu0 0.0
    %3669 = vmatpush1.msra.mxu0 %v3649
    %3670 = vmatprep.subr.mxu0 0.0
    %3671 = vmatpush1.msra.mxu0 %v3650
    %3672 = vmatprep.subr.mxu0 0.0
    %3673 = vmatpush1.msra.mxu0 %v3651
    %3674 = vmatprep.subr.mxu0 0.0
    %3675 = vmatpush1.msra.mxu0 %v3652
    %3676 = vmatprep.subr.mxu0 0.0
    %3677 = vmatpush1.msra.mxu0 %v3653
    %3678 = vmatprep.subr.mxu0 0.0
    %3679 = vmatpush1.msra.mxu0 %v3654
    %3680 = vmatprep.subr.mxu0 0.0
    %3681 = vmatpush1.msra.mxu0 %v3655
    %3682 = vmatprep.subr.mxu0 0.0
    %3683 = vmatpush1.msra.mxu0 %v3656
    %3684 = vmatprep.subr.mxu0 0.0
    %3685 = vmatpush1.msra.mxu0 0.0
    %3686 = vmatprep.subr.mxu0 0.0
    %3687 = vmatpush1.msra.mxu0 0.0
    %3688 = vmatprep.subr.mxu0 0.0
    %3689 = vmatpush1.msra.mxu0 0.0
    %3690 = vmatprep.subr.mxu0 0.0
    %3691 = vmatpush1.msra.mxu0 0.0
    %3692 = vmatprep.subr.mxu0 0.0
    %3693 = vmatpush1.msra.mxu0 0.0
    %3694 = vmatprep.subr.mxu0 0.0
    %3695 = vmatpush1.msra.mxu0 0.0
    %3696 = vmatprep.subr.mxu0 0.0
    %3697 = vmatpush1.msra.mxu0 0.0
    %3698 = vmatprep.subr.mxu0 0.0
    %3699 = vmatpush1.msra.mxu0 0.0
    %3700 = vmatprep.subr.mxu0 0.0
    %3701 = vmatpush1.msra.mxu0 0.0
    %3702 = vmatprep.subr.mxu0 0.0
    %3703 = vmatpush1.msra.mxu0 0.0
    %3704 = vmatprep.subr.mxu0 0.0
    %3705 = vmatpush1.msra.mxu0 0.0
    %3706 = vmatprep.subr.mxu0 0.0
    %3707 = vmatpush1.msra.mxu0 0.0
    %3708 = vmatprep.subr.mxu0 0.0
    %3709 = vmatpush1.msra.mxu0 0.0
    %3710 = vmatprep.subr.mxu0 0.0
    %3711 = vmatpush1.msra.mxu0 0.0
    %3712 = vmatprep.subr.mxu0 0.0
    %3713 = vmatpush1.msra.mxu0 0.0
    %3714 = vmatprep.subr.mxu0 0.0
    %3715 = vmatpush1.msra.mxu0 0.0
    %3716 = vmatprep.subr.mxu0 0.0
    %3717 = vmatpush1.msra.mxu0 0.0
    %3718 = vmatprep.subr.mxu0 0.0
    %3719 = vmatpush1.msra.mxu0 0.0
    %3720 = vmatprep.subr.mxu0 0.0
    %3721 = vmatpush1.msra.mxu0 0.0
    %3722 = vmatprep.subr.mxu0 0.0
    %3723 = vmatpush1.msra.mxu0 0.0
    %3724 = vmatprep.subr.mxu0 0.0
    %3725 = vmatpush1.msra.mxu0 0.0
    %3726 = vmatprep.subr.mxu0 0.0
    %3727 = vmatpush1.msra.mxu0 0.0
    %3728 = vmatprep.subr.mxu0 0.0
    %3729 = vmatpush1.msra.mxu0 0.0
    %3730 = vmatprep.subr.mxu0 0.0
    %3731 = vmatpush1.msra.mxu0 0.0
    %3732 = vmatprep.mubr.f32.mxu0 0.0
    %3733 = vmatmul.mubr.f32.gmra.mrb[0].mxu0 %v3666
    %v3734 = vpop.f32.mrb[0].mxu0
    %v3735 = vadd.f32 0.0, %v3734
    %v3736 = vpop.f32.mrb[0].mxu0
    %3737 = vdwg.mxu0
    %v3738 = vadd.f32 %v3613, %v3735
    %s3739 = scalar_lea.vmem [#allocation6], 232
    %v3740 = vld [vmem:[%s3739] sm:$0xff]
    %3741 = vrot.lane.b32.xlu0 %v137, 99
    %v3742 = vpop.permute.xlu0 %3741
    %3743 = vrot.lane.b32.xlu0 %v138, 99
    %v3744 = vpop.permute.xlu0 %3743
    %3745 = vrot.lane.b32.xlu0 %v139, 99
    %v3746 = vpop.permute.xlu0 %3745
    %3747 = vrot.lane.b32.xlu0 %v140, 99
    %v3748 = vpop.permute.xlu0 %3747
    %3749 = vrot.lane.b32.xlu0 %v141, 99
    %v3750 = vpop.permute.xlu0 %3749
    %3751 = vrot.lane.b32.xlu0 %v142, 99
    %v3752 = vpop.permute.xlu0 %3751
    %3753 = vrot.lane.b32.xlu0 %v143, 99
    %v3754 = vpop.permute.xlu0 %3753
    %3755 = vrot.lane.b32.xlu0 %v144, 99
    %v3756 = vpop.permute.xlu0 %3755
    %3757 = vrot.lane.b32.xlu0 %v145, 99
    %v3758 = vpop.permute.xlu0 %3757
    %3759 = vrot.lane.b32.xlu0 %v146, 99
    %v3760 = vpop.permute.xlu0 %3759
    %3761 = vrot.lane.b32.xlu0 %v147, 99
    %v3762 = vpop.permute.xlu0 %3761
    %3763 = vrot.lane.b32.xlu0 %v148, 99
    %v3764 = vpop.permute.xlu0 %3763
    %3765 = vrot.lane.b32.xlu0 %v149, 99
    %v3766 = vpop.permute.xlu0 %3765
    %3767 = vrot.lane.b32.xlu0 %v150, 99
    %v3768 = vpop.permute.xlu0 %3767
    %3769 = vrot.lane.b32.xlu0 %v151, 99
    %v3770 = vpop.permute.xlu0 %3769
    %3771 = vrot.lane.b32.xlu0 %v152, 99
    %v3772 = vpop.permute.xlu0 %3771
    %vm3773 = vcmask 809984
    %v3774 = vsel %vm3773, %v3742, %v3744
    %v3775 = vsel %vm3773, %v3746, %v3748
    %v3776 = vsel %vm3773, %v3750, %v3752
    %v3777 = vsel %vm3773, %v3754, %v3756
    %v3778 = vsel %vm3773, %v3758, %v3760
    %v3779 = vsel %vm3773, %v3762, %v3764
    %v3780 = vsel %vm3773, %v3766, %v3768
    %v3781 = vsel %vm3773, %v3770, %v3772
    %v3791 = vsel %vm67, %v3740, 0
    %3793 = vmatprep.subr.mxu0 0.0
    %3794 = vmatpush1.msra.mxu0 %v3774
    %3795 = vmatprep.subr.mxu0 0.0
    %3796 = vmatpush1.msra.mxu0 %v3775
    %3797 = vmatprep.subr.mxu0 0.0
    %3798 = vmatpush1.msra.mxu0 %v3776
    %3799 = vmatprep.subr.mxu0 0.0
    %3800 = vmatpush1.msra.mxu0 %v3777
    %3801 = vmatprep.subr.mxu0 0.0
    %3802 = vmatpush1.msra.mxu0 %v3778
    %3803 = vmatprep.subr.mxu0 0.0
    %3804 = vmatpush1.msra.mxu0 %v3779
    %3805 = vmatprep.subr.mxu0 0.0
    %3806 = vmatpush1.msra.mxu0 %v3780
    %3807 = vmatprep.subr.mxu0 0.0
    %3808 = vmatpush1.msra.mxu0 %v3781
    %3809 = vmatprep.subr.mxu0 0.0
    %3810 = vmatpush1.msra.mxu0 0.0
    %3811 = vmatprep.subr.mxu0 0.0
    %3812 = vmatpush1.msra.mxu0 0.0
    %3813 = vmatprep.subr.mxu0 0.0
    %3814 = vmatpush1.msra.mxu0 0.0
    %3815 = vmatprep.subr.mxu0 0.0
    %3816 = vmatpush1.msra.mxu0 0.0
    %3817 = vmatprep.subr.mxu0 0.0
    %3818 = vmatpush1.msra.mxu0 0.0
    %3819 = vmatprep.subr.mxu0 0.0
    %3820 = vmatpush1.msra.mxu0 0.0
    %3821 = vmatprep.subr.mxu0 0.0
    %3822 = vmatpush1.msra.mxu0 0.0
    %3823 = vmatprep.subr.mxu0 0.0
    %3824 = vmatpush1.msra.mxu0 0.0
    %3825 = vmatprep.subr.mxu0 0.0
    %3826 = vmatpush1.msra.mxu0 0.0
    %3827 = vmatprep.subr.mxu0 0.0
    %3828 = vmatpush1.msra.mxu0 0.0
    %3829 = vmatprep.subr.mxu0 0.0
    %3830 = vmatpush1.msra.mxu0 0.0
    %3831 = vmatprep.subr.mxu0 0.0
    %3832 = vmatpush1.msra.mxu0 0.0
    %3833 = vmatprep.subr.mxu0 0.0
    %3834 = vmatpush1.msra.mxu0 0.0
    %3835 = vmatprep.subr.mxu0 0.0
    %3836 = vmatpush1.msra.mxu0 0.0
    %3837 = vmatprep.subr.mxu0 0.0
    %3838 = vmatpush1.msra.mxu0 0.0
    %3839 = vmatprep.subr.mxu0 0.0
    %3840 = vmatpush1.msra.mxu0 0.0
    %3841 = vmatprep.subr.mxu0 0.0
    %3842 = vmatpush1.msra.mxu0 0.0
    %3843 = vmatprep.subr.mxu0 0.0
    %3844 = vmatpush1.msra.mxu0 0.0
    %3845 = vmatprep.subr.mxu0 0.0
    %3846 = vmatpush1.msra.mxu0 0.0
    %3847 = vmatprep.subr.mxu0 0.0
    %3848 = vmatpush1.msra.mxu0 0.0
    %3849 = vmatprep.subr.mxu0 0.0
    %3850 = vmatpush1.msra.mxu0 0.0
    %3851 = vmatprep.subr.mxu0 0.0
    %3852 = vmatpush1.msra.mxu0 0.0
    %3853 = vmatprep.subr.mxu0 0.0
    %3854 = vmatpush1.msra.mxu0 0.0
    %3855 = vmatprep.subr.mxu0 0.0
    %3856 = vmatpush1.msra.mxu0 0.0
    %3857 = vmatprep.mubr.f32.mxu0 0.0
    %3858 = vmatmul.mubr.f32.gmra.mrb[0].mxu0 %v3791
    %v3859 = vpop.f32.mrb[0].mxu0
    %v3860 = vadd.f32 0.0, %v3859
    %v3861 = vpop.f32.mrb[0].mxu0
    %3862 = vdwg.mxu0
    %v3863 = vadd.f32 %v3738, %v3860
    %s3864 = scalar_lea.vmem [#allocation6], 240
    %v3865 = vld [vmem:[%s3864] sm:$0xff]
    %3866 = vrot.lane.b32.xlu0 %v137, 98
    %v3867 = vpop.permute.xlu0 %3866
    %3868 = vrot.lane.b32.xlu0 %v138, 98
    %v3869 = vpop.permute.xlu0 %3868
    %3870 = vrot.lane.b32.xlu0 %v139, 98
    %v3871 = vpop.permute.xlu0 %3870
    %3872 = vrot.lane.b32.xlu0 %v140, 98
    %v3873 = vpop.permute.xlu0 %3872
    %3874 = vrot.lane.b32.xlu0 %v141, 98
    %v3875 = vpop.permute.xlu0 %3874
    %3876 = vrot.lane.b32.xlu0 %v142, 98
    %v3877 = vpop.permute.xlu0 %3876
    %3878 = vrot.lane.b32.xlu0 %v143, 98
    %v3879 = vpop.permute.xlu0 %3878
    %3880 = vrot.lane.b32.xlu0 %v144, 98
    %v3881 = vpop.permute.xlu0 %3880
    %3882 = vrot.lane.b32.xlu0 %v145, 98
    %v3883 = vpop.permute.xlu0 %3882
    %3884 = vrot.lane.b32.xlu0 %v146, 98
    %v3885 = vpop.permute.xlu0 %3884
    %3886 = vrot.lane.b32.xlu0 %v147, 98
    %v3887 = vpop.permute.xlu0 %3886
    %3888 = vrot.lane.b32.xlu0 %v148, 98
    %v3889 = vpop.permute.xlu0 %3888
    %3890 = vrot.lane.b32.xlu0 %v149, 98
    %v3891 = vpop.permute.xlu0 %3890
    %3892 = vrot.lane.b32.xlu0 %v150, 98
    %v3893 = vpop.permute.xlu0 %3892
    %3894 = vrot.lane.b32.xlu0 %v151, 98
    %v3895 = vpop.permute.xlu0 %3894
    %3896 = vrot.lane.b32.xlu0 %v152, 98
    %v3897 = vpop.permute.xlu0 %3896
    %vm3898 = vcmask 801792
    %v3899 = vsel %vm3898, %v3867, %v3869
    %v3900 = vsel %vm3898, %v3871, %v3873
    %v3901 = vsel %vm3898, %v3875, %v3877
    %v3902 = vsel %vm3898, %v3879, %v3881
    %v3903 = vsel %vm3898, %v3883, %v3885
    %v3904 = vsel %vm3898, %v3887, %v3889
    %v3905 = vsel %vm3898, %v3891, %v3893
    %v3906 = vsel %vm3898, %v3895, %v3897
    %v3916 = vsel %vm67, %v3865, 0
    %3918 = vmatprep.subr.mxu0 0.0
    %3919 = vmatpush1.msra.mxu0 %v3899
    %3920 = vmatprep.subr.mxu0 0.0
    %3921 = vmatpush1.msra.mxu0 %v3900
    %3922 = vmatprep.subr.mxu0 0.0
    %3923 = vmatpush1.msra.mxu0 %v3901
    %3924 = vmatprep.subr.mxu0 0.0
    %3925 = vmatpush1.msra.mxu0 %v3902
    %3926 = vmatprep.subr.mxu0 0.0
    %3927 = vmatpush1.msra.mxu0 %v3903
    %3928 = vmatprep.subr.mxu0 0.0
    %3929 = vmatpush1.msra.mxu0 %v3904
    %3930 = vmatprep.subr.mxu0 0.0
    %3931 = vmatpush1.msra.mxu0 %v3905
    %3932 = vmatprep.subr.mxu0 0.0
    %3933 = vmatpush1.msra.mxu0 %v3906
    %3934 = vmatprep.subr.mxu0 0.0
    %3935 = vmatpush1.msra.mxu0 0.0
    %3936 = vmatprep.subr.mxu0 0.0
    %3937 = vmatpush1.msra.mxu0 0.0
    %3938 = vmatprep.subr.mxu0 0.0
    %3939 = vmatpush1.msra.mxu0 0.0
    %3940 = vmatprep.subr.mxu0 0.0
    %3941 = vmatpush1.msra.mxu0 0.0
    %3942 = vmatprep.subr.mxu0 0.0
    %3943 = vmatpush1.msra.mxu0 0.0
    %3944 = vmatprep.subr.mxu0 0.0
    %3945 = vmatpush1.msra.mxu0 0.0
    %3946 = vmatprep.subr.mxu0 0.0
    %3947 = vmatpush1.msra.mxu0 0.0
    %3948 = vmatprep.subr.mxu0 0.0
    %3949 = vmatpush1.msra.mxu0 0.0
    %3950 = vmatprep.subr.mxu0 0.0
    %3951 = vmatpush1.msra.mxu0 0.0
    %3952 = vmatprep.subr.mxu0 0.0
    %3953 = vmatpush1.msra.mxu0 0.0
    %3954 = vmatprep.subr.mxu0 0.0
    %3955 = vmatpush1.msra.mxu0 0.0
    %3956 = vmatprep.subr.mxu0 0.0
    %3957 = vmatpush1.msra.mxu0 0.0
    %3958 = vmatprep.subr.mxu0 0.0
    %3959 = vmatpush1.msra.mxu0 0.0
    %3960 = vmatprep.subr.mxu0 0.0
    %3961 = vmatpush1.msra.mxu0 0.0
    %3962 = vmatprep.subr.mxu0 0.0
    %3963 = vmatpush1.msra.mxu0 0.0
    %3964 = vmatprep.subr.mxu0 0.0
    %3965 = vmatpush1.msra.mxu0 0.0
    %3966 = vmatprep.subr.mxu0 0.0
    %3967 = vmatpush1.msra.mxu0 0.0
    %3968 = vmatprep.subr.mxu0 0.0
    %3969 = vmatpush1.msra.mxu0 0.0
    %3970 = vmatprep.subr.mxu0 0.0
    %3971 = vmatpush1.msra.mxu0 0.0
    %3972 = vmatprep.subr.mxu0 0.0
    %3973 = vmatpush1.msra.mxu0 0.0
    %3974 = vmatprep.subr.mxu0 0.0
    %3975 = vmatpush1.msra.mxu0 0.0
    %3976 = vmatprep.subr.mxu0 0.0
    %3977 = vmatpush1.msra.mxu0 0.0
    %3978 = vmatprep.subr.mxu0 0.0
    %3979 = vmatpush1.msra.mxu0 0.0
    %3980 = vmatprep.subr.mxu0 0.0
    %3981 = vmatpush1.msra.mxu0 0.0
    %3982 = vmatprep.mubr.f32.mxu0 0.0
    %3983 = vmatmul.mubr.f32.gmra.mrb[0].mxu0 %v3916
    %v3984 = vpop.f32.mrb[0].mxu0
    %v3985 = vadd.f32 0.0, %v3984
    %v3986 = vpop.f32.mrb[0].mxu0
    %3987 = vdwg.mxu0
    %v3988 = vadd.f32 %v3863, %v3985
    %s3989 = scalar_lea.vmem [#allocation6], 248
    %v3990 = vld [vmem:[%s3989] sm:$0xff]
    %3991 = vrot.lane.b32.xlu0 %v137, 97
    %v3992 = vpop.permute.xlu0 %3991
    %3993 = vrot.lane.b32.xlu0 %v138, 97
    %v3994 = vpop.permute.xlu0 %3993
    %3995 = vrot.lane.b32.xlu0 %v139, 97
    %v3996 = vpop.permute.xlu0 %3995
    %3997 = vrot.lane.b32.xlu0 %v140, 97
    %v3998 = vpop.permute.xlu0 %3997
    %3999 = vrot.lane.b32.xlu0 %v141, 97
    %v4000 = vpop.permute.xlu0 %3999
    %4001 = vrot.lane.b32.xlu0 %v142, 97
    %v4002 = vpop.permute.xlu0 %4001
    %4003 = vrot.lane.b32.xlu0 %v143, 97
    %v4004 = vpop.permute.xlu0 %4003
    %4005 = vrot.lane.b32.xlu0 %v144, 97
    %v4006 = vpop.permute.xlu0 %4005
    %4007 = vrot.lane.b32.xlu0 %v145, 97
    %v4008 = vpop.permute.xlu0 %4007
    %4009 = vrot.lane.b32.xlu0 %v146, 97
    %v4010 = vpop.permute.xlu0 %4009
    %4011 = vrot.lane.b32.xlu0 %v147, 97
    %v4012 = vpop.permute.xlu0 %4011
    %4013 = vrot.lane.b32.xlu0 %v148, 97
    %v4014 = vpop.permute.xlu0 %4013
    %4015 = vrot.lane.b32.xlu0 %v149, 97
    %v4016 = vpop.permute.xlu0 %4015
    %4017 = vrot.lane.b32.xlu0 %v150, 97
    %v4018 = vpop.permute.xlu0 %4017
    %4019 = vrot.lane.b32.xlu0 %v151, 97
    %v4020 = vpop.permute.xlu0 %4019
    %4021 = vrot.lane.b32.xlu0 %v152, 97
    %v4022 = vpop.permute.xlu0 %4021
    %vm4023 = vcmask 793600
    %v4024 = vsel %vm4023, %v3992, %v3994
    %v4025 = vsel %vm4023, %v3996, %v3998
    %v4026 = vsel %vm4023, %v4000, %v4002
    %v4027 = vsel %vm4023, %v4004, %v4006
    %v4028 = vsel %vm4023, %v4008, %v4010
    %v4029 = vsel %vm4023, %v4012, %v4014
    %v4030 = vsel %vm4023, %v4016, %v4018
    %v4031 = vsel %vm4023, %v4020, %v4022
    %v4041 = vsel %vm67, %v3990, 0
    %4043 = vmatprep.subr.mxu0 0.0
    %4044 = vmatpush1.msra.mxu0 %v4024
    %4045 = vmatprep.subr.mxu0 0.0
    %4046 = vmatpush1.msra.mxu0 %v4025
    %4047 = vmatprep.subr.mxu0 0.0
    %4048 = vmatpush1.msra.mxu0 %v4026
    %4049 = vmatprep.subr.mxu0 0.0
    %4050 = vmatpush1.msra.mxu0 %v4027
    %4051 = vmatprep.subr.mxu0 0.0
    %4052 = vmatpush1.msra.mxu0 %v4028
    %4053 = vmatprep.subr.mxu0 0.0
    %4054 = vmatpush1.msra.mxu0 %v4029
    %4055 = vmatprep.subr.mxu0 0.0
    %4056 = vmatpush1.msra.mxu0 %v4030
    %4057 = vmatprep.subr.mxu0 0.0
    %4058 = vmatpush1.msra.mxu0 %v4031
    %4059 = vmatprep.subr.mxu0 0.0
    %4060 = vmatpush1.msra.mxu0 0.0
    %4061 = vmatprep.subr.mxu0 0.0
    %4062 = vmatpush1.msra.mxu0 0.0
    %4063 = vmatprep.subr.mxu0 0.0
    %4064 = vmatpush1.msra.mxu0 0.0
    %4065 = vmatprep.subr.mxu0 0.0
    %4066 = vmatpush1.msra.mxu0 0.0
    %4067 = vmatprep.subr.mxu0 0.0
    %4068 = vmatpush1.msra.mxu0 0.0
    %4069 = vmatprep.subr.mxu0 0.0
    %4070 = vmatpush1.msra.mxu0 0.0
    %4071 = vmatprep.subr.mxu0 0.0
    %4072 = vmatpush1.msra.mxu0 0.0
    %4073 = vmatprep.subr.mxu0 0.0
    %4074 = vmatpush1.msra.mxu0 0.0
    %4075 = vmatprep.subr.mxu0 0.0
    %4076 = vmatpush1.msra.mxu0 0.0
    %4077 = vmatprep.subr.mxu0 0.0
    %4078 = vmatpush1.msra.mxu0 0.0
    %4079 = vmatprep.subr.mxu0 0.0
    %4080 = vmatpush1.msra.mxu0 0.0
    %4081 = vmatprep.subr.mxu0 0.0
    %4082 = vmatpush1.msra.mxu0 0.0
    %4083 = vmatprep.subr.mxu0 0.0
    %4084 = vmatpush1.msra.mxu0 0.0
    %4085 = vmatprep.subr.mxu0 0.0
    %4086 = vmatpush1.msra.mxu0 0.0
    %4087 = vmatprep.subr.mxu0 0.0
    %4088 = vmatpush1.msra.mxu0 0.0
    %4089 = vmatprep.subr.mxu0 0.0
    %4090 = vmatpush1.msra.mxu0 0.0
    %4091 = vmatprep.subr.mxu0 0.0
    %4092 = vmatpush1.msra.mxu0 0.0
    %4093 = vmatprep.subr.mxu0 0.0
    %4094 = vmatpush1.msra.mxu0 0.0
    %4095 = vmatprep.subr.mxu0 0.0
    %4096 = vmatpush1.msra.mxu0 0.0
    %4097 = vmatprep.subr.mxu0 0.0
    %4098 = vmatpush1.msra.mxu0 0.0
    %4099 = vmatprep.subr.mxu0 0.0
    %4100 = vmatpush1.msra.mxu0 0.0
    %4101 = vmatprep.subr.mxu0 0.0
    %4102 = vmatpush1.msra.mxu0 0.0
    %4103 = vmatprep.subr.mxu0 0.0
    %4104 = vmatpush1.msra.mxu0 0.0
    %4105 = vmatprep.subr.mxu0 0.0
    %4106 = vmatpush1.msra.mxu0 0.0
    %4107 = vmatprep.mubr.f32.mxu0 0.0
    %4108 = vmatmul.mubr.f32.gmra.mrb[0].mxu0 %v4041
    %v4109 = vpop.f32.mrb[0].mxu0
    %v4110 = vadd.f32 0.0, %v4109
    %v4111 = vpop.f32.mrb[0].mxu0
    %4112 = vdwg.mxu0
    %v4113 = vadd.f32 %v3988, %v4110
    %v4114 = vld [vmem:[%s2] sm:$0xff]
    %4116 = vset.pattern.permute.xlu0 0
    %4117 = vperm.xlu0 %4116, %v4114
    %v4118 = vpop.permute.xlu0 %4117
    %v4120 = vadd.f32 %v4113, %v4118
    %4121 = vst [vmem:[#allocation8] sm:$0xff] %v4120
    // Predicated region
    $region22: #{tpu_custom_call.1} parent=1 // pred_check
      _
    $region23: #{tpu_custom_call.1} parent=1 // pred_check_branch
      %4123 = sbr.rel (0) target = $region25
    $region24: #{tpu_custom_call.1} parent=1 // pred_region
      %s4125 = ssub.s32 128, 128
      %4126 = vsyncadd [#allocation5], %s4125
      %s4128 = sshll.u32 [#allocation8], 4
      %s4129 = int_to_ptr.vmem [resolvable:$true] %s4128
      %4131 = dma.vmem_to_hbm [thread:$0]  %s4129, 128, %s3, [#allocation5]
    $region25: #{tpu_custom_call.1} parent=1 // pred_fallthru
      _
    // Predicated region
    $region26: #{tpu_custom_call.1} parent=1 // pred_check
      _
    $region27: #{tpu_custom_call.1} parent=1 // pred_check_branch
      %4133 = sbr.rel (0) target = $region29
    $region28: #{tpu_custom_call.1} parent=1 // pred_region
      %4134 = dma.done [#allocation5], 128
    $region29: #{tpu_custom_call.1} parent=1 // pred_fallthru
      _
    %4135 = vsyncpa [#allocation4], 1
    %4136 = vsyncpa [#allocation7], 1
    %4137 = vsyncpa [#allocation5], 1

</llo_original>
